<compile_context>
chip_gen: v7x
topology: tpu7x:2x2x1
jax: 0.10.0
libtpu: 0.0.40
codegen_flags: <defaults>
</compile_context>

<pallas_src>
import math

import numpy as np
import jax
import jax.numpy as jnp
from jax.experimental import pallas as pl
from jax.experimental.pallas import tpu as pltpu


# ----------------------------------------------------------------------------
# small helpers
# ----------------------------------------------------------------------------
def _round_up(x, m):
    return ((x + m - 1) // m) * m


def _cdiv(a, b):
    return -(-a // b)


def _tpu_vmem_capacity():
    """Physical VMEM per core (generation-aware; safe fallback off-TPU)."""
    try:
        info = pltpu.get_tpu_info()
        return int(getattr(info, "vmem_capacity_bytes", 128 * 2 ** 20))
    except Exception:
        return 128 * 2 ** 20


# ----------------------------------------------------------------------------
# Positional encoding (faithful port of anomalib positional_encoding_2d)
# ----------------------------------------------------------------------------
def positional_encoding_2d(condition_vector, height, width):
    assert condition_vector % 4 == 0
    pe = np.zeros((condition_vector, height, width), dtype=np.float32)
    d = condition_vector // 2
    div_term = np.exp(np.arange(0.0, d, 2) * -(math.log(10000.0) / d))
    pos_w = np.arange(0.0, width)[:, None]
    pos_h = np.arange(0.0, height)[:, None]
    pe[0:d:2, :, :] = np.sin(pos_w * div_term).T[:, None, :]
    pe[1:d:2, :, :] = np.cos(pos_w * div_term).T[:, None, :]
    pe[d::2, :, :] = np.sin(pos_h * div_term).T[:, :, None]
    pe[d + 1::2, :, :] = np.cos(pos_h * div_term).T[:, :, None]
    return pe


# ----------------------------------------------------------------------------
# Bilinear (align_corners=True) 1-D operators (separable form:  a_h @ P @ a_w^T)
# Matches torch F.interpolate(..., mode='bilinear', align_corners=True).
# ----------------------------------------------------------------------------
def _bilinear_matrix_np(out_size, in_size):
    A = np.zeros((out_size, in_size), dtype=np.float32)
    if in_size == 1:
        A[:, 0] = 1.0
        return A
    scale = (in_size - 1) / (out_size - 1)
    for i in range(out_size):
        src = i * scale
        i0 = int(math.floor(src))
        i1 = min(i0 + 1, in_size - 1)
        f = src - i0
        A[i, i0] += 1.0 - f
        A[i, i1] += f
    return A


# ----------------------------------------------------------------------------
# Pallas kernel: fused encoder projection + conditional normalizing flow
# (FrEIA AllInOneBlock stack, permute_soft=False) + get_logp.
# ----------------------------------------------------------------------------
def make_flow_kernel(n_blocks, split0, split1, clamp, mm_dtype):
    dim = split0 + split1
    neg_half_log2pi_d = -0.5 * dim * math.log(2.0 * math.pi)
    inv_dim = 1.0 / dim

    def kernel(*refs):
        f_ref, c_ref, glob_ref, ew_ref, eb_ref = refs[:5]
        param_refs = refs[5:5 + 8 * n_blocks]
        out_ref = refs[5 + 8 * n_blocks]

        fb = f_ref.shape[0]

        # fused encoder 1x1-conv projection: tanh(fibers @ W + b)
        x = jnp.tanh(
            jnp.dot(f_ref[...].astype(mm_dtype), ew_ref[...],
                    preferred_element_type=jnp.float32) + eb_ref[...])
        cond = c_ref[...].astype(mm_dtype)

        jac = jnp.zeros((fb, 1), jnp.float32)
        sq = jnp.zeros((fb, 1), jnp.float32)

        for blk in range(n_blocks):
            (w1x, w1c, b1, w2, b2, pa, pb, off) = param_refs[8 * blk: 8 * blk + 8]
            x1 = x[:, :split0]
            x2 = x[:, split0:]
            x1m = x1.astype(mm_dtype)

            # subnet_fc([x1, cond]) without the concatenate: split matmul.
            h = (jnp.dot(x1m, w1x[...], preferred_element_type=jnp.float32)
                 + jnp.dot(cond, w1c[...], preferred_element_type=jnp.float32)
                 + b1[...])
            h = jnp.maximum(h, 0.0)
            a1 = (jnp.dot(h.astype(mm_dtype), w2[...],
                          preferred_element_type=jnp.float32) + b2[...]) * 0.1

            # affine coupling with soft clamp (element-wise math kept in f32)
            s = clamp * jnp.tanh(a1[:, :split1])
            t = a1[:, split1:]
            x2 = x2 * jnp.exp(s) + t
            jac = jac + jnp.sum(s, axis=1, keepdims=True)

            if blk < n_blocks - 1:
                # global affine + hard permutation folded offline:
                #   x_next = [x1, x2] @ (diag(scale) @ w_perm.T) + go @ w_perm.T
                x = (jnp.dot(x1m, pa[...], preferred_element_type=jnp.float32)
                     + jnp.dot(x2.astype(mm_dtype), pb[...],
                               preferred_element_type=jnp.float32)
                     + off[...])
            else:
                # last block: the permutation is orthogonal so it is dropped
                # (sum(z**2) is permutation-invariant); only the element-wise
                # global affine survives.
                offv = off[...]
                y1 = x1 * pa[...] + offv[:, :split0]
                y2 = x2 * pb[...] + offv[:, split0:]
                sq = (jnp.sum(y1 * y1, axis=1, keepdims=True)
                      + jnp.sum(y2 * y2, axis=1, keepdims=True))

        # glob_ref[0] = sum over blocks of sum(log(scale)), precomputed on host.
        logp_col = (neg_half_log2pi_d + glob_ref[0]) - 0.5 * sq + jac   # (fb, 1)

        # column -> lane-dense row without streaming an fb x fb identity from
        # HBM: build the diagonal mask with iota (VPU) and reduce over sublanes
        # (XLU); the store stays one lane-dense (1, fb) slab.
        rows = jax.lax.broadcasted_iota(jnp.int32, (fb, fb), 0)
        cols = jax.lax.broadcasted_iota(jnp.int32, (fb, fb), 1)
        diag = jnp.where(rows == cols, logp_col, 0.0)
        out_ref[...] = jnp.sum(diag, axis=0, keepdims=True) * inv_dim

    return kernel


def _choose_fiber_tile(n, *, is_v7x, big_vmem):
    """Lane-dense (multiple-of-128) fiber tile, generation aware.

    The torch fiber_batch_size is only a host-memory batching knob (results are
    independent of it).  v7x (2 TensorCores, 64 MiB VMEM) targets >=8 grid
    steps so both cores get work and DMA/compute overlap exists; v5e/v6e
    (single TC, 128 MiB VMEM) prefer large tiles (up to 1024 rows) to amortize
    the ~600-cycle per-step overhead.
    """
    n128 = _round_up(max(n, 1), 128)
    max_fb = 1024 if (big_vmem and not is_v7x) else 512
    start = min(max_fb, n128)
    target_steps = 8 if is_v7x else 2

    chosen = None
    for cand in range(start, 0, -128):               # prefer exact divisors
        if n128 % cand == 0 and n128 // cand >= target_steps:
            chosen = cand
            break
    if chosen is None:
        for cand in range(start, 0, -128):           # else accept some padding
            if _cdiv(n128, cand) >= target_steps:
                chosen = cand
                break
    if chosen is None:
        chosen = start
    return chosen, _round_up(n, chosen)


def _flow_vmem_limit(fb, stream_itemsize, chans, cond_dim, d, hid, consts,
                     vmem_cap):
    # constants are single-buffered (Buffered(1)); streamed tiles double-buffer.
    const_bytes = sum(int(a.size) * a.dtype.itemsize for a in consts)
    stream_bytes = 2 * fb * (chans + cond_dim) * stream_itemsize + 2 * fb * 4
    live_bytes = fb * (4 * d + 2 * hid) * 4 + 8 * fb * fb
    need = const_bytes + stream_bytes + live_bytes + (4 << 20)
    # leave ~8 MiB headroom below physical VMEM for Mosaic internal scratch;
    # never ask for more than ~112 MiB even on 128-MiB parts.
    ceiling = min(max(vmem_cap - (8 << 20), 32 << 20), 112 << 20)
    return int(min(ceiling, max(32 << 20, need)))


def flow_log_prob(fibers, c_single, hw, enc_w, enc_b, folded_blocks, glob_total,
                  *, clamp, mm_dtype, is_v7x, vmem_cap):
    n, chans = fibers.shape
    d = enc_w.shape[1]
    cond_dim = c_single.shape[1]
    split1 = d // 2
    split0 = d - split1
    n_blocks = len(folded_blocks)
    hid = folded_blocks[0][0].shape[1]
    dout = folded_blocks[0][3].shape[1]

    fb, n_pad = _choose_fiber_tile(n, is_v7x=is_v7x,
                                   big_vmem=(vmem_cap >= 96 * 2 ** 20))
    if n_pad != n:                       # ragged fiber counts: pad, then slice
        fibers = jnp.pad(fibers, ((0, n_pad - n), (0, 0)))

    # stream activations / condition in bf16 (halves HBM bytes; the MXU already
    # consumed them in mm_dtype so results are unchanged).
    stream_dtype = jnp.bfloat16 if mm_dtype == jnp.bfloat16 else jnp.float32
    fibers = fibers.astype(stream_dtype)
    c_single = c_single.astype(stream_dtype)

    # condition input without B-fold replication: the positional encoding
    # repeats every hw fibers, so one fb-row tile serves every block
    # (fb % hw == 0) or the blocks cycle through hw // fb tiles.
    if fb % hw == 0:
        c_in = jnp.tile(c_single, (fb // hw, 1))
        c_mode = "const"
    elif hw % fb == 0:
        c_in = c_single
        c_mode = "cycle"
    else:
        c_in = jnp.tile(c_single, (_cdiv(n_pad, hw), 1))[:n_pad]
        c_mode = "full"
    nb_c = max(hw // fb, 1)

    flat = [p for blk_p in folded_blocks for p in blk_p]
    consts = [enc_w, enc_b] + flat

    # advisory cost estimate so XLA schedules glue around the long kernel
    flops_row = 2 * chans * d
    for blk in range(n_blocks):
        flops_row += 2 * (split0 * hid + cond_dim * hid + hid * dout)
        if blk < n_blocks - 1:
            flops_row += 2 * d * d
    trans_row = d + n_blocks * 2 * split1
    const_bytes = sum(int(a.size) * a.dtype.itemsize for a in consts)
    cost = pl.CostEstimate(
        flops=int(n_pad * flops_row),
        transcendentals=int(n_pad * trans_row),
        bytes_accessed=int(fibers.size * fibers.dtype.itemsize
                           + c_in.size * c_in.dtype.itemsize
                           + const_bytes + n_pad * 4 + 4))

    vmem_limit = _flow_vmem_limit(fb, np.dtype(stream_dtype).itemsize, chans,
                                  cond_dim, d, hid, consts, vmem_cap)

    kernel = make_flow_kernel(n_blocks, split0, split1, clamp, mm_dtype)

    def run(single_buffer):
        def const_spec(shape):
            if single_buffer:
                # constant index_map -> DMA'd once; single-buffer to halve VMEM
                return pl.BlockSpec(shape, lambda i: (0, 0),
                                    pipeline_mode=pl.Buffered(1))
            return pl.BlockSpec(shape, lambda i: (0, 0))

        if c_mode == "const":
            c_spec = const_spec((fb, cond_dim))
        elif c_mode == "cycle":
            c_spec = pl.BlockSpec((fb, cond_dim), lambda i: (i % nb_c, 0))
        else:
            c_spec = pl.BlockSpec((fb, cond_dim), lambda i: (i, 0))

        in_specs = [
            pl.BlockSpec((fb, chans), lambda i: (i, 0)),
            c_spec,
            pl.BlockSpec(memory_space=pltpu.MemorySpace.SMEM),  # glob_jac scalar
        ] + [const_spec(p.shape) for p in consts]

        return pl.pallas_call(
            kernel,
            out_shape=jax.ShapeDtypeStruct((1, n_pad), jnp.float32),
            grid=(n_pad // fb,),
            in_specs=in_specs,
            out_specs=pl.BlockSpec((1, fb), lambda i: (0, i)),  # lane-dense out
            compiler_params=pltpu.CompilerParams(
                dimension_semantics=("parallel",),
                vmem_limit_bytes=vmem_limit),
            cost_estimate=cost,
        )(fibers, c_in, glob_total, *consts)

    try:
        out = run(single_buffer=True)
    except Exception:
        # fallback for Pallas versions without pipeline_mode / Buffered(1)
        out = run(single_buffer=False)
    return out[0, :n]


# ----------------------------------------------------------------------------
# Pallas kernel: likelihood exp + separable bilinear upsample (two small
# matmuls: a_h @ P @ a_w^T) + running score accumulation, tiled over batch.
# ----------------------------------------------------------------------------
def _upsample_add_kernel(x_ref, ah_ref, awt_ref, acc_ref, o_ref):
    # x_ref: (h, w) max-normalized mean log-probs for one image
    p = jnp.exp(x_ref[...])                                            # (h, w)
    t = jnp.dot(p, awt_ref[...], preferred_element_type=jnp.float32)   # (h, W)
    up = jnp.dot(ah_ref[...], t, preferred_element_type=jnp.float32)   # (H, W)
    o_ref[...] = acc_ref[...] + up


def upsample_accumulate(dist_norm, a_h, a_wT, acc):
    B, h, w = dist_norm.shape
    _, H, W = acc.shape
    return pl.pallas_call(
        _upsample_add_kernel,
        out_shape=jax.ShapeDtypeStruct((B, H, W), jnp.float32),
        grid=(B,),
        in_specs=[
            pl.BlockSpec((None, h, w), lambda b: (b, 0, 0)),
            pl.BlockSpec((H, h), lambda b: (0, 0)),
            pl.BlockSpec((w, W), lambda b: (0, 0)),
            pl.BlockSpec((None, H, W), lambda b: (b, 0, 0)),
        ],
        out_specs=pl.BlockSpec((None, H, W), lambda b: (b, 0, 0)),
        compiler_params=pltpu.CompilerParams(
            dimension_semantics=("arbitrary",)),
    )(dist_norm, a_h, a_wT, acc)


# ----------------------------------------------------------------------------
# Deterministic parameter init (shapes follow cflow_head / FrEIA AllInOneBlock
# with permute_soft=False, global_affine_type='SOFTPLUS') + offline folding.
# ----------------------------------------------------------------------------
def init_decoder_params(key, n_feat, cond, n_blocks):
    split1 = n_feat // 2
    split0 = n_feat - split1
    din = split0 + cond
    hid = 2 * din
    dout = 2 * split1
    gs_init = 2.0 * math.log(math.exp(0.5 * 10.0 * 1.0) - 1.0)   # SOFTPLUS init

    blocks = []
    for _ in range(n_blocks):
        key, k1, k2, k3, k4, k5 = jax.random.split(key, 6)
        perm = jax.random.permutation(k1, n_feat)
        w_perm = jnp.zeros((n_feat, n_feat), jnp.float32).at[
            jnp.arange(n_feat), perm].set(1.0)
        gs = jnp.full((1, n_feat), gs_init, jnp.float32)         # global_scale
        go = jnp.zeros((1, n_feat), jnp.float32)                 # global_offset
        w1 = jax.random.normal(k2, (din, hid), jnp.float32) / math.sqrt(din)
        b1 = jax.random.normal(k3, (1, hid), jnp.float32) * 0.1
        w2 = jax.random.normal(k4, (hid, dout), jnp.float32) / math.sqrt(hid)
        b2 = jax.random.normal(k5, (1, dout), jnp.float32) * 0.1
        blocks.append((w_perm, gs, go, w1, b1, w2, b2))
    return blocks


def fold_decoder_params(raw_blocks, n_feat, mm_dtype):
    """Precompute scale/glob_jac, split w1, fold the permutation into weights."""
    split1 = n_feat // 2
    split0 = n_feat - split1
    n_blocks = len(raw_blocks)
    folded = []
    glob_total = jnp.float32(0.0)
    for blk, (w_perm, gs, go, w1, b1, w2, b2) in enumerate(raw_blocks):
        # scale = 0.1 * Softplus(beta=0.5)(global_scale)   (host precompute)
        scale = 0.1 * 2.0 * jnp.log1p(jnp.exp(0.5 * gs))          # (1, n_feat)
        glob_total = glob_total + jnp.sum(jnp.log(scale))
        w1x = w1[:split0, :].astype(mm_dtype)
        w1c = w1[split0:, :].astype(mm_dtype)
        if blk < n_blocks - 1:
            a = scale.reshape(n_feat, 1) * w_perm.T               # diag(scale)@Pt
            pa = a[:split0, :].astype(mm_dtype)
            pb = a[split0:, :].astype(mm_dtype)
            off = go @ w_perm.T                                   # (1, n_feat)
        else:
            pa = scale[:, :split0]                                # f32, elementwise
            pb = scale[:, split0:]
            off = go
        folded.append((w1x, w1c, b1, w2.astype(mm_dtype), b2, pa, pb, off))
    return folded, glob_total.reshape((1,)).astype(jnp.float32)


# ----------------------------------------------------------------------------
# Full CFLOW forward
# ----------------------------------------------------------------------------
def cflow_forward(images, pool_cfg, enc_params, dec_params, glob_totals,
                  condition_vector, clamp_alpha, mm_dtype=jnp.bfloat16):
    B, C, H, W = images.shape
    acc = jnp.zeros((B, H, W), jnp.float32)

    vmem_cap = _tpu_vmem_capacity()
    is_v7x = vmem_cap <= (64 * 2 ** 20 + (1 << 20))   # 64 MiB VMEM => v7x-class

    for layer_idx, (pool, _dim) in enumerate(pool_cfg):
        h, w = H // pool, W // pool
        # synthetic encoder stem: avg-pool (XLA glue); the 1x1-conv projection
        # itself is fused into the flow kernel below.
        pooled = images.reshape(B, C, h, pool, w, pool).mean(axis=(3, 5))
        fibers = pooled.transpose(0, 2, 3, 1).reshape(B * h * w, C)  # '(b h w) c'

        pe = positional_encoding_2d(condition_vector, h, w)          # (cond,h,w)
        c_single = jnp.asarray(
            pe.transpose(1, 2, 0).reshape(h * w, condition_vector), jnp.float32)

        enc_w, enc_b = enc_params[layer_idx]
        log_prob = flow_log_prob(fibers, c_single, h * w, enc_w, enc_b,
                                 dec_params[layer_idx], glob_totals[layer_idx],
                                 clamp=clamp_alpha, mm_dtype=mm_dtype,
                                 is_v7x=is_v7x, vmem_cap=vmem_cap)
        dist = log_prob.reshape(B, h, w)
        # per-layer normalization against the whole-batch max (XLA glue; tiny)
        dist = dist - jnp.max(dist)

        a_h = jnp.asarray(_bilinear_matrix_np(H, h))                 # (H, h)
        a_wT = jnp.asarray(_bilinear_matrix_np(W, w).T)              # (w, W)
        acc = upsample_accumulate(dist, a_h, a_wT, acc)

    # invert probs -> anomaly scores (whole-batch max; tiny XLA reduction)
    return jnp.max(acc) - acc


if __name__ == "__main__":
    key = jax.random.PRNGKey(0)
    B, C, H, W = 2, 4, 16, 16
    condition_vector = 8          # must be divisible by 4
    coupling_blocks = 2
    clamp_alpha = 1.9
    pool_cfg = [(2, 16), (4, 32)]  # (pool stride, feature dim) per pool layer
    # NOTE: the torch `fiber_batch_size` hyperparameter only controls host-side
    # batching granularity and does not change the result; the Pallas flow
    # kernel picks its own lane-dense, MXU-friendly fiber tile.

    mm_dtype = jnp.bfloat16       # MXU operand dtype; accumulation stays f32

    k_img, k_enc, k_dec = jax.random.split(key, 3)
    images = jax.random.normal(k_img, (B, C, H, W), jnp.float32)

    enc_params = []
    kk = k_enc
    for _, dim in pool_cfg:
        kk, kw, kb = jax.random.split(kk, 3)
        enc_params.append((
            (jax.random.normal(kw, (C, dim), jnp.float32)
             / math.sqrt(C)).astype(mm_dtype),
            jax.random.normal(kb, (1, dim), jnp.float32) * 0.1,
        ))

    dec_params = []
    glob_totals = []
    kk = k_dec
    for _, dim in pool_cfg:
        kk, sub = jax.random.split(kk)
        raw = init_decoder_params(sub, dim, condition_vector, coupling_blocks)
        folded, glob = fold_decoder_params(raw, dim, mm_dtype)
        dec_params.append(folded)
        glob_totals.append(glob)

    anomaly_map = cflow_forward(images, pool_cfg, enc_params, dec_params,
                                glob_totals, condition_vector, clamp_alpha,
                                mm_dtype=mm_dtype)
    anomaly_map = jax.block_until_ready(anomaly_map)

    assert anomaly_map.shape == (B, H, W)
    assert bool(jnp.all(jnp.isfinite(anomaly_map)))
    print("KERNEL_OK")
</pallas_src>

<mosaic_0001>
module attributes {stable_mosaic.version = 11 : i64} {
  func.func @kernel(%arg0: i32, %arg1: memref<128x4xbf16, #tpu.memory_space<vmem>>, %arg2: memref<128x8xbf16, #tpu.memory_space<vmem>>, %arg3: memref<1xf32, #tpu.memory_space<smem>>, %arg4: memref<4x16xbf16, #tpu.memory_space<vmem>>, %arg5: memref<1x16xf32, #tpu.memory_space<vmem>>, %arg6: memref<8x32xbf16, #tpu.memory_space<vmem>>, %arg7: memref<8x32xbf16, #tpu.memory_space<vmem>>, %arg8: memref<1x32xf32, #tpu.memory_space<vmem>>, %arg9: memref<32x16xbf16, #tpu.memory_space<vmem>>, %arg10: memref<1x16xf32, #tpu.memory_space<vmem>>, %arg11: memref<8x16xbf16, #tpu.memory_space<vmem>>, %arg12: memref<8x16xbf16, #tpu.memory_space<vmem>>, %arg13: memref<1x16xf32, #tpu.memory_space<vmem>>, %arg14: memref<8x32xbf16, #tpu.memory_space<vmem>>, %arg15: memref<8x32xbf16, #tpu.memory_space<vmem>>, %arg16: memref<1x32xf32, #tpu.memory_space<vmem>>, %arg17: memref<32x16xbf16, #tpu.memory_space<vmem>>, %arg18: memref<1x16xf32, #tpu.memory_space<vmem>>, %arg19: memref<1x8xf32, #tpu.memory_space<vmem>>, %arg20: memref<1x8xf32, #tpu.memory_space<vmem>>, %arg21: memref<1x16xf32, #tpu.memory_space<vmem>>, %arg22: memref<1x128xf32, #tpu.memory_space<vmem>>) attributes {dimension_semantics = [#tpu.dimension_semantics<parallel>], iteration_bounds = array<i64: 1>, scalar_prefetch = 0 : i64, scratch_operands = 0 : i64, tpu.core_type = #tpu.core_type<tc>, window_params = [{transform_indices = @transform_0, window_bounds = array<i64: 128, 4>}, {pipeline_mode = #tpu.pipeline_mode<synchronous>, transform_indices = @transform_1, window_bounds = array<i64: 128, 8>}, {transform_indices = @transform_2, window_bounds = array<i64: 1>}, {pipeline_mode = #tpu.pipeline_mode<synchronous>, transform_indices = @transform_3, window_bounds = array<i64: 4, 16>}, {pipeline_mode = #tpu.pipeline_mode<synchronous>, transform_indices = @transform_4, window_bounds = array<i64: 1, 16>}, {pipeline_mode = #tpu.pipeline_mode<synchronous>, transform_indices = @transform_5, window_bounds = array<i64: 8, 32>}, {pipeline_mode = #tpu.pipeline_mode<synchronous>, transform_indices = @transform_6, window_bounds = array<i64: 8, 32>}, {pipeline_mode = #tpu.pipeline_mode<synchronous>, transform_indices = @transform_7, window_bounds = array<i64: 1, 32>}, {pipeline_mode = #tpu.pipeline_mode<synchronous>, transform_indices = @transform_8, window_bounds = array<i64: 32, 16>}, {pipeline_mode = #tpu.pipeline_mode<synchronous>, transform_indices = @transform_9, window_bounds = array<i64: 1, 16>}, {pipeline_mode = #tpu.pipeline_mode<synchronous>, transform_indices = @transform_10, window_bounds = array<i64: 8, 16>}, {pipeline_mode = #tpu.pipeline_mode<synchronous>, transform_indices = @transform_11, window_bounds = array<i64: 8, 16>}, {pipeline_mode = #tpu.pipeline_mode<synchronous>, transform_indices = @transform_12, window_bounds = array<i64: 1, 16>}, {pipeline_mode = #tpu.pipeline_mode<synchronous>, transform_indices = @transform_13, window_bounds = array<i64: 8, 32>}, {pipeline_mode = #tpu.pipeline_mode<synchronous>, transform_indices = @transform_14, window_bounds = array<i64: 8, 32>}, {pipeline_mode = #tpu.pipeline_mode<synchronous>, transform_indices = @transform_15, window_bounds = array<i64: 1, 32>}, {pipeline_mode = #tpu.pipeline_mode<synchronous>, transform_indices = @transform_16, window_bounds = array<i64: 32, 16>}, {pipeline_mode = #tpu.pipeline_mode<synchronous>, transform_indices = @transform_17, window_bounds = array<i64: 1, 16>}, {pipeline_mode = #tpu.pipeline_mode<synchronous>, transform_indices = @transform_18, window_bounds = array<i64: 1, 8>}, {pipeline_mode = #tpu.pipeline_mode<synchronous>, transform_indices = @transform_19, window_bounds = array<i64: 1, 8>}, {pipeline_mode = #tpu.pipeline_mode<synchronous>, transform_indices = @transform_20, window_bounds = array<i64: 1, 16>}, {transform_indices = @transform_21, window_bounds = array<i64: 1, 128>}]} {
    %c0 = arith.constant 0 : index
    %c0_0 = arith.constant 0 : index
    %0 = vector.load %arg1[%c0, %c0_0] : memref<128x4xbf16, #tpu.memory_space<vmem>>, vector<128x4xbf16>
    %c0_1 = arith.constant 0 : index
    %c0_2 = arith.constant 0 : index
    %1 = vector.load %arg4[%c0_1, %c0_2] : memref<4x16xbf16, #tpu.memory_space<vmem>>, vector<4x16xbf16>
    %cst = arith.constant dense<0.000000e+00> : vector<128x16xf32>
    %2 = tpu.matmul %0, %1, %cst {dimension_numbers = #tpu.dot_dimension_numbers<[1], [0], [0], [1], [0, 0, 1, 1], [], []>} : vector<128x4xbf16>, vector<4x16xbf16>, vector<128x16xf32> -> vector<128x16xf32>
    %c0_3 = arith.constant 0 : index
    %c0_4 = arith.constant 0 : index
    %3 = vector.load %arg5[%c0_3, %c0_4] : memref<1x16xf32, #tpu.memory_space<vmem>>, vector<1x16xf32>
    %4 = vector.broadcast %3 : vector<1x16xf32> to vector<128x16xf32>
    %5 = arith.addf %2, %4 : vector<128x16xf32>
    %6 = math.tanh %5 : vector<128x16xf32>
    %c0_5 = arith.constant 0 : index
    %c0_6 = arith.constant 0 : index
    %7 = vector.load %arg2[%c0_5, %c0_6] : memref<128x8xbf16, #tpu.memory_space<vmem>>, vector<128x8xbf16>
    %cst_7 = arith.constant 0.000000e+00 : f32
    %8 = vector.broadcast %cst_7 : f32 to vector<128x1xf32>
    %9 = vector.extract_strided_slice %6 {offsets = [0, 0], sizes = [128, 8], strides = [1, 1]} : vector<128x16xf32> to vector<128x8xf32>
    %10 = vector.extract_strided_slice %6 {offsets = [0, 8], sizes = [128, 8], strides = [1, 1]} : vector<128x16xf32> to vector<128x8xf32>
    %11 = arith.truncf %9 : vector<128x8xf32> to vector<128x8xbf16>
    %c0_8 = arith.constant 0 : index
    %c0_9 = arith.constant 0 : index
    %12 = vector.load %arg6[%c0_8, %c0_9] : memref<8x32xbf16, #tpu.memory_space<vmem>>, vector<8x32xbf16>
    %cst_10 = arith.constant dense<0.000000e+00> : vector<128x32xf32>
    %13 = tpu.matmul %11, %12, %cst_10 {dimension_numbers = #tpu.dot_dimension_numbers<[1], [0], [0], [1], [0, 0, 1, 1], [], []>} : vector<128x8xbf16>, vector<8x32xbf16>, vector<128x32xf32> -> vector<128x32xf32>
    %c0_11 = arith.constant 0 : index
    %c0_12 = arith.constant 0 : index
    %14 = vector.load %arg7[%c0_11, %c0_12] : memref<8x32xbf16, #tpu.memory_space<vmem>>, vector<8x32xbf16>
    %cst_13 = arith.constant dense<0.000000e+00> : vector<128x32xf32>
    %15 = tpu.matmul %7, %14, %cst_13 {dimension_numbers = #tpu.dot_dimension_numbers<[1], [0], [0], [1], [0, 0, 1, 1], [], []>} : vector<128x8xbf16>, vector<8x32xbf16>, vector<128x32xf32> -> vector<128x32xf32>
    %16 = arith.addf %13, %15 : vector<128x32xf32>
    %c0_14 = arith.constant 0 : index
    %c0_15 = arith.constant 0 : index
    %17 = vector.load %arg8[%c0_14, %c0_15] : memref<1x32xf32, #tpu.memory_space<vmem>>, vector<1x32xf32>
    %18 = vector.broadcast %17 : vector<1x32xf32> to vector<128x32xf32>
    %19 = arith.addf %16, %18 : vector<128x32xf32>
    %cst_16 = arith.constant 0.000000e+00 : f32
    %20 = vector.broadcast %cst_16 : f32 to vector<128x32xf32>
    %21 = arith.maximumf %19, %20 : vector<128x32xf32>
    %22 = arith.truncf %21 : vector<128x32xf32> to vector<128x32xbf16>
    %c0_17 = arith.constant 0 : index
    %c0_18 = arith.constant 0 : index
    %23 = vector.load %arg9[%c0_17, %c0_18] : memref<32x16xbf16, #tpu.memory_space<vmem>>, vector<32x16xbf16>
    %cst_19 = arith.constant dense<0.000000e+00> : vector<128x16xf32>
    %24 = tpu.matmul %22, %23, %cst_19 {dimension_numbers = #tpu.dot_dimension_numbers<[1], [0], [0], [1], [0, 0, 1, 1], [], []>} : vector<128x32xbf16>, vector<32x16xbf16>, vector<128x16xf32> -> vector<128x16xf32>
    %c0_20 = arith.constant 0 : index
    %c0_21 = arith.constant 0 : index
    %25 = vector.load %arg10[%c0_20, %c0_21] : memref<1x16xf32, #tpu.memory_space<vmem>>, vector<1x16xf32>
    %26 = vector.broadcast %25 : vector<1x16xf32> to vector<128x16xf32>
    %27 = arith.addf %24, %26 : vector<128x16xf32>
    %cst_22 = arith.constant 1.000000e-01 : f32
    %28 = vector.broadcast %cst_22 : f32 to vector<128x16xf32>
    %29 = arith.mulf %27, %28 : vector<128x16xf32>
    %30 = vector.extract_strided_slice %29 {offsets = [0, 0], sizes = [128, 8], strides = [1, 1]} : vector<128x16xf32> to vector<128x8xf32>
    %31 = math.tanh %30 : vector<128x8xf32>
    %cst_23 = arith.constant 1.900000e+00 : f32
    %32 = vector.broadcast %cst_23 : f32 to vector<128x8xf32>
    %33 = arith.mulf %32, %31 : vector<128x8xf32>
    %34 = vector.extract_strided_slice %29 {offsets = [0, 8], sizes = [128, 8], strides = [1, 1]} : vector<128x16xf32> to vector<128x8xf32>
    %35 = math.exp %33 : vector<128x8xf32>
    %36 = arith.mulf %10, %35 : vector<128x8xf32>
    %37 = arith.addf %36, %34 : vector<128x8xf32>
    %cst_24 = arith.constant dense<0.000000e+00> : vector<128xf32>
    %38 = vector.multi_reduction <add>, %33, %cst_24 [1] : vector<128x8xf32> to vector<128xf32>
    %39 = vector.shape_cast %38 : vector<128xf32> to vector<128x1xf32>
    %40 = arith.addf %8, %39 : vector<128x1xf32>
    %c0_25 = arith.constant 0 : index
    %c0_26 = arith.constant 0 : index
    %41 = vector.load %arg11[%c0_25, %c0_26] : memref<8x16xbf16, #tpu.memory_space<vmem>>, vector<8x16xbf16>
    %cst_27 = arith.constant dense<0.000000e+00> : vector<128x16xf32>
    %42 = tpu.matmul %11, %41, %cst_27 {dimension_numbers = #tpu.dot_dimension_numbers<[1], [0], [0], [1], [0, 0, 1, 1], [], []>} : vector<128x8xbf16>, vector<8x16xbf16>, vector<128x16xf32> -> vector<128x16xf32>
    %43 = arith.truncf %37 : vector<128x8xf32> to vector<128x8xbf16>
    %c0_28 = arith.constant 0 : index
    %c0_29 = arith.constant 0 : index
    %44 = vector.load %arg12[%c0_28, %c0_29] : memref<8x16xbf16, #tpu.memory_space<vmem>>, vector<8x16xbf16>
    %cst_30 = arith.constant dense<0.000000e+00> : vector<128x16xf32>
    %45 = tpu.matmul %43, %44, %cst_30 {dimension_numbers = #tpu.dot_dimension_numbers<[1], [0], [0], [1], [0, 0, 1, 1], [], []>} : vector<128x8xbf16>, vector<8x16xbf16>, vector<128x16xf32> -> vector<128x16xf32>
    %46 = arith.addf %42, %45 : vector<128x16xf32>
    %c0_31 = arith.constant 0 : index
    %c0_32 = arith.constant 0 : index
    %47 = vector.load %arg13[%c0_31, %c0_32] : memref<1x16xf32, #tpu.memory_space<vmem>>, vector<1x16xf32>
    %48 = vector.broadcast %47 : vector<1x16xf32> to vector<128x16xf32>
    %49 = arith.addf %46, %48 : vector<128x16xf32>
    %50 = vector.extract_strided_slice %49 {offsets = [0, 0], sizes = [128, 8], strides = [1, 1]} : vector<128x16xf32> to vector<128x8xf32>
    %51 = vector.extract_strided_slice %49 {offsets = [0, 8], sizes = [128, 8], strides = [1, 1]} : vector<128x16xf32> to vector<128x8xf32>
    %52 = arith.truncf %50 : vector<128x8xf32> to vector<128x8xbf16>
    %c0_33 = arith.constant 0 : index
    %c0_34 = arith.constant 0 : index
    %53 = vector.load %arg14[%c0_33, %c0_34] : memref<8x32xbf16, #tpu.memory_space<vmem>>, vector<8x32xbf16>
    %cst_35 = arith.constant dense<0.000000e+00> : vector<128x32xf32>
    %54 = tpu.matmul %52, %53, %cst_35 {dimension_numbers = #tpu.dot_dimension_numbers<[1], [0], [0], [1], [0, 0, 1, 1], [], []>} : vector<128x8xbf16>, vector<8x32xbf16>, vector<128x32xf32> -> vector<128x32xf32>
    %c0_36 = arith.constant 0 : index
    %c0_37 = arith.constant 0 : index
    %55 = vector.load %arg15[%c0_36, %c0_37] : memref<8x32xbf16, #tpu.memory_space<vmem>>, vector<8x32xbf16>
    %cst_38 = arith.constant dense<0.000000e+00> : vector<128x32xf32>
    %56 = tpu.matmul %7, %55, %cst_38 {dimension_numbers = #tpu.dot_dimension_numbers<[1], [0], [0], [1], [0, 0, 1, 1], [], []>} : vector<128x8xbf16>, vector<8x32xbf16>, vector<128x32xf32> -> vector<128x32xf32>
    %57 = arith.addf %54, %56 : vector<128x32xf32>
    %c0_39 = arith.constant 0 : index
    %c0_40 = arith.constant 0 : index
    %58 = vector.load %arg16[%c0_39, %c0_40] : memref<1x32xf32, #tpu.memory_space<vmem>>, vector<1x32xf32>
    %59 = vector.broadcast %58 : vector<1x32xf32> to vector<128x32xf32>
    %60 = arith.addf %57, %59 : vector<128x32xf32>
    %cst_41 = arith.constant 0.000000e+00 : f32
    %61 = vector.broadcast %cst_41 : f32 to vector<128x32xf32>
    %62 = arith.maximumf %60, %61 : vector<128x32xf32>
    %63 = arith.truncf %62 : vector<128x32xf32> to vector<128x32xbf16>
    %c0_42 = arith.constant 0 : index
    %c0_43 = arith.constant 0 : index
    %64 = vector.load %arg17[%c0_42, %c0_43] : memref<32x16xbf16, #tpu.memory_space<vmem>>, vector<32x16xbf16>
    %cst_44 = arith.constant dense<0.000000e+00> : vector<128x16xf32>
    %65 = tpu.matmul %63, %64, %cst_44 {dimension_numbers = #tpu.dot_dimension_numbers<[1], [0], [0], [1], [0, 0, 1, 1], [], []>} : vector<128x32xbf16>, vector<32x16xbf16>, vector<128x16xf32> -> vector<128x16xf32>
    %c0_45 = arith.constant 0 : index
    %c0_46 = arith.constant 0 : index
    %66 = vector.load %arg18[%c0_45, %c0_46] : memref<1x16xf32, #tpu.memory_space<vmem>>, vector<1x16xf32>
    %67 = vector.broadcast %66 : vector<1x16xf32> to vector<128x16xf32>
    %68 = arith.addf %65, %67 : vector<128x16xf32>
    %cst_47 = arith.constant 1.000000e-01 : f32
    %69 = vector.broadcast %cst_47 : f32 to vector<128x16xf32>
    %70 = arith.mulf %68, %69 : vector<128x16xf32>
    %71 = vector.extract_strided_slice %70 {offsets = [0, 0], sizes = [128, 8], strides = [1, 1]} : vector<128x16xf32> to vector<128x8xf32>
    %72 = math.tanh %71 : vector<128x8xf32>
    %cst_48 = arith.constant 1.900000e+00 : f32
    %73 = vector.broadcast %cst_48 : f32 to vector<128x8xf32>
    %74 = arith.mulf %73, %72 : vector<128x8xf32>
    %75 = vector.extract_strided_slice %70 {offsets = [0, 8], sizes = [128, 8], strides = [1, 1]} : vector<128x16xf32> to vector<128x8xf32>
    %76 = math.exp %74 : vector<128x8xf32>
    %77 = arith.mulf %51, %76 : vector<128x8xf32>
    %78 = arith.addf %77, %75 : vector<128x8xf32>
    %cst_49 = arith.constant dense<0.000000e+00> : vector<128xf32>
    %79 = vector.multi_reduction <add>, %74, %cst_49 [1] : vector<128x8xf32> to vector<128xf32>
    %80 = vector.shape_cast %79 : vector<128xf32> to vector<128x1xf32>
    %81 = arith.addf %40, %80 : vector<128x1xf32>
    %c0_50 = arith.constant 0 : index
    %c0_51 = arith.constant 0 : index
    %82 = vector.load %arg21[%c0_50, %c0_51] : memref<1x16xf32, #tpu.memory_space<vmem>>, vector<1x16xf32>
    %c0_52 = arith.constant 0 : index
    %c0_53 = arith.constant 0 : index
    %83 = vector.load %arg19[%c0_52, %c0_53] : memref<1x8xf32, #tpu.memory_space<vmem>>, vector<1x8xf32>
    %84 = vector.broadcast %83 : vector<1x8xf32> to vector<128x8xf32>
    %85 = arith.mulf %50, %84 : vector<128x8xf32>
    %86 = vector.extract_strided_slice %82 {offsets = [0, 0], sizes = [1, 8], strides = [1, 1]} : vector<1x16xf32> to vector<1x8xf32>
    %87 = vector.broadcast %86 : vector<1x8xf32> to vector<128x8xf32>
    %88 = arith.addf %85, %87 : vector<128x8xf32>
    %c0_54 = arith.constant 0 : index
    %c0_55 = arith.constant 0 : index
    %89 = vector.load %arg20[%c0_54, %c0_55] : memref<1x8xf32, #tpu.memory_space<vmem>>, vector<1x8xf32>
    %90 = vector.broadcast %89 : vector<1x8xf32> to vector<128x8xf32>
    %91 = arith.mulf %78, %90 : vector<128x8xf32>
    %92 = vector.extract_strided_slice %82 {offsets = [0, 8], sizes = [1, 8], strides = [1, 1]} : vector<1x16xf32> to vector<1x8xf32>
    %93 = vector.broadcast %92 : vector<1x8xf32> to vector<128x8xf32>
    %94 = arith.addf %91, %93 : vector<128x8xf32>
    %95 = arith.mulf %88, %88 : vector<128x8xf32>
    %cst_56 = arith.constant dense<0.000000e+00> : vector<128xf32>
    %96 = vector.multi_reduction <add>, %95, %cst_56 [1] : vector<128x8xf32> to vector<128xf32>
    %97 = vector.shape_cast %96 : vector<128xf32> to vector<128x1xf32>
    %98 = arith.mulf %94, %94 : vector<128x8xf32>
    %cst_57 = arith.constant dense<0.000000e+00> : vector<128xf32>
    %99 = vector.multi_reduction <add>, %98, %cst_57 [1] : vector<128x8xf32> to vector<128xf32>
    %100 = vector.shape_cast %99 : vector<128xf32> to vector<128x1xf32>
    %101 = arith.addf %97, %100 : vector<128x1xf32>
    %c0_58 = arith.constant 0 : index
    %102 = memref.load %arg3[%c0_58] : memref<1xf32, #tpu.memory_space<smem>>
    %cst_59 = arith.constant -14.7030163 : f32
    %103 = arith.addf %cst_59, %102 : f32
    %cst_60 = arith.constant 5.000000e-01 : f32
    %104 = vector.broadcast %cst_60 : f32 to vector<128x1xf32>
    %105 = arith.mulf %104, %101 : vector<128x1xf32>
    %106 = vector.broadcast %103 : f32 to vector<128x1xf32>
    %107 = arith.subf %106, %105 : vector<128x1xf32>
    %108 = arith.addf %107, %81 : vector<128x1xf32>
    %109 = tpu.iota {dimensions = array<i32: 0>} : vector<128x128xi32>
    %110 = tpu.iota {dimensions = array<i32: 1>} : vector<128x128xi32>
    %111 = arith.cmpi eq, %109, %110 : vector<128x128xi32>
    %cst_61 = arith.constant 0.000000e+00 : f32
    %112 = vector.shape_cast %108 : vector<128x1xf32> to vector<128x1xf32>
    %113 = vector.broadcast %112 : vector<128x1xf32> to vector<128x128xf32>
    %114 = vector.broadcast %cst_61 : f32 to vector<128x128xf32>
    %115 = arith.select %111, %113, %114 : vector<128x128xi1>, vector<128x128xf32>
    %cst_62 = arith.constant dense<0.000000e+00> : vector<128xf32>
    %116 = vector.multi_reduction <add>, %115, %cst_62 [0] : vector<128x128xf32> to vector<128xf32>
    %117 = vector.shape_cast %116 : vector<128xf32> to vector<1x128xf32>
    %cst_63 = arith.constant 6.250000e-02 : f32
    %118 = vector.broadcast %cst_63 : f32 to vector<1x128xf32>
    %119 = arith.mulf %117, %118 : vector<1x128xf32>
    %c0_64 = arith.constant 0 : index
    %c0_65 = arith.constant 0 : index
    %120 = vector.load %arg22[%c0_64, %c0_65] : memref<1x128xf32, #tpu.memory_space<vmem>>, vector<1x128xf32>
    tpu.vector_store %arg22[%c0_64, %c0_65], %119 {strides = array<i32>} : memref<1x128xf32, #tpu.memory_space<vmem>>, vector<1x128xf32>,
    return
  }
  func.func @transform_0(%arg0: i32) -> (i32, i32) {
    %c0_i32 = arith.constant 0 : i32
    %c0_i32_0 = arith.constant 0 : i32
    return %arg0, %c0_i32 : i32, i32
  }
  func.func @transform_1(%arg0: i32) -> (i32, i32) {
    %c0_i32 = arith.constant 0 : i32
    %c0_i32_0 = arith.constant 0 : i32
    %c0_i32_1 = arith.constant 0 : i32
    return %c0_i32, %c0_i32_0 : i32, i32
  }
  func.func @transform_2(%arg0: i32) -> i32 {
    %c0_i32 = arith.constant 0 : i32
    %c0_i32_0 = arith.constant 0 : i32
    return %c0_i32 : i32
  }
  func.func @transform_3(%arg0: i32) -> (i32, i32) {
    %c0_i32 = arith.constant 0 : i32
    %c0_i32_0 = arith.constant 0 : i32
    %c0_i32_1 = arith.constant 0 : i32
    return %c0_i32, %c0_i32_0 : i32, i32
  }
  func.func @transform_4(%arg0: i32) -> (i32, i32) {
    %c0_i32 = arith.constant 0 : i32
    %c0_i32_0 = arith.constant 0 : i32
    %c0_i32_1 = arith.constant 0 : i32
    return %c0_i32, %c0_i32_0 : i32, i32
  }
  func.func @transform_5(%arg0: i32) -> (i32, i32) {
    %c0_i32 = arith.constant 0 : i32
    %c0_i32_0 = arith.constant 0 : i32
    %c0_i32_1 = arith.constant 0 : i32
    return %c0_i32, %c0_i32_0 : i32, i32
  }
  func.func @transform_6(%arg0: i32) -> (i32, i32) {
    %c0_i32 = arith.constant 0 : i32
    %c0_i32_0 = arith.constant 0 : i32
    %c0_i32_1 = arith.constant 0 : i32
    return %c0_i32, %c0_i32_0 : i32, i32
  }
  func.func @transform_7(%arg0: i32) -> (i32, i32) {
    %c0_i32 = arith.constant 0 : i32
    %c0_i32_0 = arith.constant 0 : i32
    %c0_i32_1 = arith.constant 0 : i32
    return %c0_i32, %c0_i32_0 : i32, i32
  }
  func.func @transform_8(%arg0: i32) -> (i32, i32) {
    %c0_i32 = arith.constant 0 : i32
    %c0_i32_0 = arith.constant 0 : i32
    %c0_i32_1 = arith.constant 0 : i32
    return %c0_i32, %c0_i32_0 : i32, i32
  }
  func.func @transform_9(%arg0: i32) -> (i32, i32) {
    %c0_i32 = arith.constant 0 : i32
    %c0_i32_0 = arith.constant 0 : i32
    %c0_i32_1 = arith.constant 0 : i32
    return %c0_i32, %c0_i32_0 : i32, i32
  }
  func.func @transform_10(%arg0: i32) -> (i32, i32) {
    %c0_i32 = arith.constant 0 : i32
    %c0_i32_0 = arith.constant 0 : i32
    %c0_i32_1 = arith.constant 0 : i32
    return %c0_i32, %c0_i32_0 : i32, i32
  }
  func.func @transform_11(%arg0: i32) -> (i32, i32) {
    %c0_i32 = arith.constant 0 : i32
    %c0_i32_0 = arith.constant 0 : i32
    %c0_i32_1 = arith.constant 0 : i32
    return %c0_i32, %c0_i32_0 : i32, i32
  }
  func.func @transform_12(%arg0: i32) -> (i32, i32) {
    %c0_i32 = arith.constant 0 : i32
    %c0_i32_0 = arith.constant 0 : i32
    %c0_i32_1 = arith.constant 0 : i32
    return %c0_i32, %c0_i32_0 : i32, i32
  }
  func.func @transform_13(%arg0: i32) -> (i32, i32) {
    %c0_i32 = arith.constant 0 : i32
    %c0_i32_0 = arith.constant 0 : i32
    %c0_i32_1 = arith.constant 0 : i32
    return %c0_i32, %c0_i32_0 : i32, i32
  }
  func.func @transform_14(%arg0: i32) -> (i32, i32) {
    %c0_i32 = arith.constant 0 : i32
    %c0_i32_0 = arith.constant 0 : i32
    %c0_i32_1 = arith.constant 0 : i32
    return %c0_i32, %c0_i32_0 : i32, i32
  }
  func.func @transform_15(%arg0: i32) -> (i32, i32) {
    %c0_i32 = arith.constant 0 : i32
    %c0_i32_0 = arith.constant 0 : i32
    %c0_i32_1 = arith.constant 0 : i32
    return %c0_i32, %c0_i32_0 : i32, i32
  }
  func.func @transform_16(%arg0: i32) -> (i32, i32) {
    %c0_i32 = arith.constant 0 : i32
    %c0_i32_0 = arith.constant 0 : i32
    %c0_i32_1 = arith.constant 0 : i32
    return %c0_i32, %c0_i32_0 : i32, i32
  }
  func.func @transform_17(%arg0: i32) -> (i32, i32) {
    %c0_i32 = arith.constant 0 : i32
    %c0_i32_0 = arith.constant 0 : i32
    %c0_i32_1 = arith.constant 0 : i32
    return %c0_i32, %c0_i32_0 : i32, i32
  }
  func.func @transform_18(%arg0: i32) -> (i32, i32) {
    %c0_i32 = arith.constant 0 : i32
    %c0_i32_0 = arith.constant 0 : i32
    %c0_i32_1 = arith.constant 0 : i32
    return %c0_i32, %c0_i32_0 : i32, i32
  }
  func.func @transform_19(%arg0: i32) -> (i32, i32) {
    %c0_i32 = arith.constant 0 : i32
    %c0_i32_0 = arith.constant 0 : i32
    %c0_i32_1 = arith.constant 0 : i32
    return %c0_i32, %c0_i32_0 : i32, i32
  }
  func.func @transform_20(%arg0: i32) -> (i32, i32) {
    %c0_i32 = arith.constant 0 : i32
    %c0_i32_0 = arith.constant 0 : i32
    %c0_i32_1 = arith.constant 0 : i32
    return %c0_i32, %c0_i32_0 : i32, i32
  }
  func.func @transform_21(%arg0: i32) -> (i32, i32) {
    %c0_i32 = arith.constant 0 : i32
    %c0_i32_0 = arith.constant 0 : i32
    return %c0_i32, %arg0 : i32, i32
  }
}

module attributes {stable_mosaic.version = 11 : i64} {
  func.func @kernel(%arg0: i32, %arg1: memref<128x4xbf16, #tpu.memory_space<vmem>>, %arg2: memref<128x8xbf16, #tpu.memory_space<vmem>>, %arg3: memref<1xf32, #tpu.memory_space<smem>>, %arg4: memref<4x16xbf16, #tpu.memory_space<vmem>>, %arg5: memref<1x16xf32, #tpu.memory_space<vmem>>, %arg6: memref<8x32xbf16, #tpu.memory_space<vmem>>, %arg7: memref<8x32xbf16, #tpu.memory_space<vmem>>, %arg8: memref<1x32xf32, #tpu.memory_space<vmem>>, %arg9: memref<32x16xbf16, #tpu.memory_space<vmem>>, %arg10: memref<1x16xf32, #tpu.memory_space<vmem>>, %arg11: memref<8x16xbf16, #tpu.memory_space<vmem>>, %arg12: memref<8x16xbf16, #tpu.memory_space<vmem>>, %arg13: memref<1x16xf32, #tpu.memory_space<vmem>>, %arg14: memref<8x32xbf16, #tpu.memory_space<vmem>>, %arg15: memref<8x32xbf16, #tpu.memory_space<vmem>>, %arg16: memref<1x32xf32, #tpu.memory_space<vmem>>, %arg17: memref<32x16xbf16, #tpu.memory_space<vmem>>, %arg18: memref<1x16xf32, #tpu.memory_space<vmem>>, %arg19: memref<1x8xf32, #tpu.memory_space<vmem>>, %arg20: memref<1x8xf32, #tpu.memory_space<vmem>>, %arg21: memref<1x16xf32, #tpu.memory_space<vmem>>, %arg22: memref<1x128xf32, #tpu.memory_space<vmem>>) attributes {dimension_semantics = [#tpu.dimension_semantics<parallel>], iteration_bounds = array<i64: 1>, scalar_prefetch = 0 : i64, scratch_operands = 0 : i64, tpu.core_type = #tpu.core_type<tc>, window_params = [{transform_indices = @transform_0, window_bounds = array<i64: 128, 4>}, {pipeline_mode = #tpu.pipeline_mode<synchronous>, transform_indices = @transform_1, window_bounds = array<i64: 128, 8>}, {transform_indices = @transform_2, window_bounds = array<i64: 1>}, {pipeline_mode = #tpu.pipeline_mode<synchronous>, transform_indices = @transform_3, window_bounds = array<i64: 4, 16>}, {pipeline_mode = #tpu.pipeline_mode<synchronous>, transform_indices = @transform_4, window_bounds = array<i64: 1, 16>}, {pipeline_mode = #tpu.pipeline_mode<synchronous>, transform_indices = @transform_5, window_bounds = array<i64: 8, 32>}, {pipeline_mode = #tpu.pipeline_mode<synchronous>, transform_indices = @transform_6, window_bounds = array<i64: 8, 32>}, {pipeline_mode = #tpu.pipeline_mode<synchronous>, transform_indices = @transform_7, window_bounds = array<i64: 1, 32>}, {pipeline_mode = #tpu.pipeline_mode<synchronous>, transform_indices = @transform_8, window_bounds = array<i64: 32, 16>}, {pipeline_mode = #tpu.pipeline_mode<synchronous>, transform_indices = @transform_9, window_bounds = array<i64: 1, 16>}, {pipeline_mode = #tpu.pipeline_mode<synchronous>, transform_indices = @transform_10, window_bounds = array<i64: 8, 16>}, {pipeline_mode = #tpu.pipeline_mode<synchronous>, transform_indices = @transform_11, window_bounds = array<i64: 8, 16>}, {pipeline_mode = #tpu.pipeline_mode<synchronous>, transform_indices = @transform_12, window_bounds = array<i64: 1, 16>}, {pipeline_mode = #tpu.pipeline_mode<synchronous>, transform_indices = @transform_13, window_bounds = array<i64: 8, 32>}, {pipeline_mode = #tpu.pipeline_mode<synchronous>, transform_indices = @transform_14, window_bounds = array<i64: 8, 32>}, {pipeline_mode = #tpu.pipeline_mode<synchronous>, transform_indices = @transform_15, window_bounds = array<i64: 1, 32>}, {pipeline_mode = #tpu.pipeline_mode<synchronous>, transform_indices = @transform_16, window_bounds = array<i64: 32, 16>}, {pipeline_mode = #tpu.pipeline_mode<synchronous>, transform_indices = @transform_17, window_bounds = array<i64: 1, 16>}, {pipeline_mode = #tpu.pipeline_mode<synchronous>, transform_indices = @transform_18, window_bounds = array<i64: 1, 8>}, {pipeline_mode = #tpu.pipeline_mode<synchronous>, transform_indices = @transform_19, window_bounds = array<i64: 1, 8>}, {pipeline_mode = #tpu.pipeline_mode<synchronous>, transform_indices = @transform_20, window_bounds = array<i64: 1, 16>}, {transform_indices = @transform_21, window_bounds = array<i64: 1, 128>}]} {
    %c0 = arith.constant 0 : index
    %c0_0 = arith.constant 0 : index
    %0 = vector.load %arg1[%c0, %c0_0] : memref<128x4xbf16, #tpu.memory_space<vmem>>, vector<128x4xbf16>
    %c0_1 = arith.constant 0 : index
    %c0_2 = arith.constant 0 : index
    %1 = vector.load %arg4[%c0_1, %c0_2] : memref<4x16xbf16, #tpu.memory_space<vmem>>, vector<4x16xbf16>
    %cst = arith.constant dense<0.000000e+00> : vector<128x16xf32>
    %2 = tpu.matmul %0, %1, %cst {dimension_numbers = #tpu.dot_dimension_numbers<[1], [0], [0], [1], [0, 0, 1, 1], [], []>} : vector<128x4xbf16>, vector<4x16xbf16>, vector<128x16xf32> -> vector<128x16xf32>
    %c0_3 = arith.constant 0 : index
    %c0_4 = arith.constant 0 : index
    %3 = vector.load %arg5[%c0_3, %c0_4] : memref<1x16xf32, #tpu.memory_space<vmem>>, vector<1x16xf32>
    %4 = vector.broadcast %3 : vector<1x16xf32> to vector<128x16xf32>
    %5 = arith.addf %2, %4 : vector<128x16xf32>
    %6 = math.tanh %5 : vector<128x16xf32>
    %c0_5 = arith.constant 0 : index
    %c0_6 = arith.constant 0 : index
    %7 = vector.load %arg2[%c0_5, %c0_6] : memref<128x8xbf16, #tpu.memory_space<vmem>>, vector<128x8xbf16>
    %cst_7 = arith.constant 0.000000e+00 : f32
    %8 = vector.broadcast %cst_7 : f32 to vector<128x1xf32>
    %9 = vector.extract_strided_slice %6 {offsets = [0, 0], sizes = [128, 8], strides = [1, 1]} : vector<128x16xf32> to vector<128x8xf32>
    %10 = vector.extract_strided_slice %6 {offsets = [0, 8], sizes = [128, 8], strides = [1, 1]} : vector<128x16xf32> to vector<128x8xf32>
    %11 = arith.truncf %9 : vector<128x8xf32> to vector<128x8xbf16>
    %c0_8 = arith.constant 0 : index
    %c0_9 = arith.constant 0 : index
    %12 = vector.load %arg6[%c0_8, %c0_9] : memref<8x32xbf16, #tpu.memory_space<vmem>>, vector<8x32xbf16>
    %cst_10 = arith.constant dense<0.000000e+00> : vector<128x32xf32>
    %13 = tpu.matmul %11, %12, %cst_10 {dimension_numbers = #tpu.dot_dimension_numbers<[1], [0], [0], [1], [0, 0, 1, 1], [], []>} : vector<128x8xbf16>, vector<8x32xbf16>, vector<128x32xf32> -> vector<128x32xf32>
    %c0_11 = arith.constant 0 : index
    %c0_12 = arith.constant 0 : index
    %14 = vector.load %arg7[%c0_11, %c0_12] : memref<8x32xbf16, #tpu.memory_space<vmem>>, vector<8x32xbf16>
    %cst_13 = arith.constant dense<0.000000e+00> : vector<128x32xf32>
    %15 = tpu.matmul %7, %14, %cst_13 {dimension_numbers = #tpu.dot_dimension_numbers<[1], [0], [0], [1], [0, 0, 1, 1], [], []>} : vector<128x8xbf16>, vector<8x32xbf16>, vector<128x32xf32> -> vector<128x32xf32>
    %16 = arith.addf %13, %15 : vector<128x32xf32>
    %c0_14 = arith.constant 0 : index
    %c0_15 = arith.constant 0 : index
    %17 = vector.load %arg8[%c0_14, %c0_15] : memref<1x32xf32, #tpu.memory_space<vmem>>, vector<1x32xf32>
    %18 = vector.broadcast %17 : vector<1x32xf32> to vector<128x32xf32>
    %19 = arith.addf %16, %18 : vector<128x32xf32>
    %cst_16 = arith.constant 0.000000e+00 : f32
    %20 = vector.broadcast %cst_16 : f32 to vector<128x32xf32>
    %21 = arith.maximumf %19, %20 : vector<128x32xf32>
    %22 = arith.truncf %21 : vector<128x32xf32> to vector<128x32xbf16>
    %c0_17 = arith.constant 0 : index
    %c0_18 = arith.constant 0 : index
    %23 = vector.load %arg9[%c0_17, %c0_18] : memref<32x16xbf16, #tpu.memory_space<vmem>>, vector<32x16xbf16>
    %cst_19 = arith.constant dense<0.000000e+00> : vector<128x16xf32>
    %24 = tpu.matmul %22, %23, %cst_19 {dimension_numbers = #tpu.dot_dimension_numbers<[1], [0], [0], [1], [0, 0, 1, 1], [], []>} : vector<128x32xbf16>, vector<32x16xbf16>, vector<128x16xf32> -> vector<128x16xf32>
    %c0_20 = arith.constant 0 : index
    %c0_21 = arith.constant 0 : index
    %25 = vector.load %arg10[%c0_20, %c0_21] : memref<1x16xf32, #tpu.memory_space<vmem>>, vector<1x16xf32>
    %26 = vector.broadcast %25 : vector<1x16xf32> to vector<128x16xf32>
    %27 = arith.addf %24, %26 : vector<128x16xf32>
    %cst_22 = arith.constant 1.000000e-01 : f32
    %28 = vector.broadcast %cst_22 : f32 to vector<128x16xf32>
    %29 = arith.mulf %27, %28 : vector<128x16xf32>
    %30 = vector.extract_strided_slice %29 {offsets = [0, 0], sizes = [128, 8], strides = [1, 1]} : vector<128x16xf32> to vector<128x8xf32>
    %31 = math.tanh %30 : vector<128x8xf32>
    %cst_23 = arith.constant 1.900000e+00 : f32
    %32 = vector.broadcast %cst_23 : f32 to vector<128x8xf32>
    %33 = arith.mulf %32, %31 : vector<128x8xf32>
    %34 = vector.extract_strided_slice %29 {offsets = [0, 8], sizes = [128, 8], strides = [1, 1]} : vector<128x16xf32> to vector<128x8xf32>
    %35 = math.exp %33 : vector<128x8xf32>
    %36 = arith.mulf %10, %35 : vector<128x8xf32>
    %37 = arith.addf %36, %34 : vector<128x8xf32>
    %cst_24 = arith.constant dense<0.000000e+00> : vector<128xf32>
    %38 = vector.multi_reduction <add>, %33, %cst_24 [1] : vector<128x8xf32> to vector<128xf32>
    %39 = vector.shape_cast %38 : vector<128xf32> to vector<128x1xf32>
    %40 = arith.addf %8, %39 : vector<128x1xf32>
    %c0_25 = arith.constant 0 : index
    %c0_26 = arith.constant 0 : index
    %41 = vector.load %arg11[%c0_25, %c0_26] : memref<8x16xbf16, #tpu.memory_space<vmem>>, vector<8x16xbf16>
    %cst_27 = arith.constant dense<0.000000e+00> : vector<128x16xf32>
    %42 = tpu.matmul %11, %41, %cst_27 {dimension_numbers = #tpu.dot_dimension_numbers<[1], [0], [0], [1], [0, 0, 1, 1], [], []>} : vector<128x8xbf16>, vector<8x16xbf16>, vector<128x16xf32> -> vector<128x16xf32>
    %43 = arith.truncf %37 : vector<128x8xf32> to vector<128x8xbf16>
    %c0_28 = arith.constant 0 : index
    %c0_29 = arith.constant 0 : index
    %44 = vector.load %arg12[%c0_28, %c0_29] : memref<8x16xbf16, #tpu.memory_space<vmem>>, vector<8x16xbf16>
    %cst_30 = arith.constant dense<0.000000e+00> : vector<128x16xf32>
    %45 = tpu.matmul %43, %44, %cst_30 {dimension_numbers = #tpu.dot_dimension_numbers<[1], [0], [0], [1], [0, 0, 1, 1], [], []>} : vector<128x8xbf16>, vector<8x16xbf16>, vector<128x16xf32> -> vector<128x16xf32>
    %46 = arith.addf %42, %45 : vector<128x16xf32>
    %c0_31 = arith.constant 0 : index
    %c0_32 = arith.constant 0 : index
    %47 = vector.load %arg13[%c0_31, %c0_32] : memref<1x16xf32, #tpu.memory_space<vmem>>, vector<1x16xf32>
    %48 = vector.broadcast %47 : vector<1x16xf32> to vector<128x16xf32>
    %49 = arith.addf %46, %48 : vector<128x16xf32>
    %50 = vector.extract_strided_slice %49 {offsets = [0, 0], sizes = [128, 8], strides = [1, 1]} : vector<128x16xf32> to vector<128x8xf32>
    %51 = vector.extract_strided_slice %49 {offsets = [0, 8], sizes = [128, 8], strides = [1, 1]} : vector<128x16xf32> to vector<128x8xf32>
    %52 = arith.truncf %50 : vector<128x8xf32> to vector<128x8xbf16>
    %c0_33 = arith.constant 0 : index
    %c0_34 = arith.constant 0 : index
    %53 = vector.load %arg14[%c0_33, %c0_34] : memref<8x32xbf16, #tpu.memory_space<vmem>>, vector<8x32xbf16>
    %cst_35 = arith.constant dense<0.000000e+00> : vector<128x32xf32>
    %54 = tpu.matmul %52, %53, %cst_35 {dimension_numbers = #tpu.dot_dimension_numbers<[1], [0], [0], [1], [0, 0, 1, 1], [], []>} : vector<128x8xbf16>, vector<8x32xbf16>, vector<128x32xf32> -> vector<128x32xf32>
    %c0_36 = arith.constant 0 : index
    %c0_37 = arith.constant 0 : index
    %55 = vector.load %arg15[%c0_36, %c0_37] : memref<8x32xbf16, #tpu.memory_space<vmem>>, vector<8x32xbf16>
    %cst_38 = arith.constant dense<0.000000e+00> : vector<128x32xf32>
    %56 = tpu.matmul %7, %55, %cst_38 {dimension_numbers = #tpu.dot_dimension_numbers<[1], [0], [0], [1], [0, 0, 1, 1], [], []>} : vector<128x8xbf16>, vector<8x32xbf16>, vector<128x32xf32> -> vector<128x32xf32>
    %57 = arith.addf %54, %56 : vector<128x32xf32>
    %c0_39 = arith.constant 0 : index
    %c0_40 = arith.constant 0 : index
    %58 = vector.load %arg16[%c0_39, %c0_40] : memref<1x32xf32, #tpu.memory_space<vmem>>, vector<1x32xf32>
    %59 = vector.broadcast %58 : vector<1x32xf32> to vector<128x32xf32>
    %60 = arith.addf %57, %59 : vector<128x32xf32>
    %cst_41 = arith.constant 0.000000e+00 : f32
    %61 = vector.broadcast %cst_41 : f32 to vector<128x32xf32>
    %62 = arith.maximumf %60, %61 : vector<128x32xf32>
    %63 = arith.truncf %62 : vector<128x32xf32> to vector<128x32xbf16>
    %c0_42 = arith.constant 0 : index
    %c0_43 = arith.constant 0 : index
    %64 = vector.load %arg17[%c0_42, %c0_43] : memref<32x16xbf16, #tpu.memory_space<vmem>>, vector<32x16xbf16>
    %cst_44 = arith.constant dense<0.000000e+00> : vector<128x16xf32>
    %65 = tpu.matmul %63, %64, %cst_44 {dimension_numbers = #tpu.dot_dimension_numbers<[1], [0], [0], [1], [0, 0, 1, 1], [], []>} : vector<128x32xbf16>, vector<32x16xbf16>, vector<128x16xf32> -> vector<128x16xf32>
    %c0_45 = arith.constant 0 : index
    %c0_46 = arith.constant 0 : index
    %66 = vector.load %arg18[%c0_45, %c0_46] : memref<1x16xf32, #tpu.memory_space<vmem>>, vector<1x16xf32>
    %67 = vector.broadcast %66 : vector<1x16xf32> to vector<128x16xf32>
    %68 = arith.addf %65, %67 : vector<128x16xf32>
    %cst_47 = arith.constant 1.000000e-01 : f32
    %69 = vector.broadcast %cst_47 : f32 to vector<128x16xf32>
    %70 = arith.mulf %68, %69 : vector<128x16xf32>
    %71 = vector.extract_strided_slice %70 {offsets = [0, 0], sizes = [128, 8], strides = [1, 1]} : vector<128x16xf32> to vector<128x8xf32>
    %72 = math.tanh %71 : vector<128x8xf32>
    %cst_48 = arith.constant 1.900000e+00 : f32
    %73 = vector.broadcast %cst_48 : f32 to vector<128x8xf32>
    %74 = arith.mulf %73, %72 : vector<128x8xf32>
    %75 = vector.extract_strided_slice %70 {offsets = [0, 8], sizes = [128, 8], strides = [1, 1]} : vector<128x16xf32> to vector<128x8xf32>
    %76 = math.exp %74 : vector<128x8xf32>
    %77 = arith.mulf %51, %76 : vector<128x8xf32>
    %78 = arith.addf %77, %75 : vector<128x8xf32>
    %cst_49 = arith.constant dense<0.000000e+00> : vector<128xf32>
    %79 = vector.multi_reduction <add>, %74, %cst_49 [1] : vector<128x8xf32> to vector<128xf32>
    %80 = vector.shape_cast %79 : vector<128xf32> to vector<128x1xf32>
    %81 = arith.addf %40, %80 : vector<128x1xf32>
    %c0_50 = arith.constant 0 : index
    %c0_51 = arith.constant 0 : index
    %82 = vector.load %arg21[%c0_50, %c0_51] : memref<1x16xf32, #tpu.memory_space<vmem>>, vector<1x16xf32>
    %c0_52 = arith.constant 0 : index
    %c0_53 = arith.constant 0 : index
    %83 = vector.load %arg19[%c0_52, %c0_53] : memref<1x8xf32, #tpu.memory_space<vmem>>, vector<1x8xf32>
    %84 = vector.broadcast %83 : vector<1x8xf32> to vector<128x8xf32>
    %85 = arith.mulf %50, %84 : vector<128x8xf32>
    %86 = vector.extract_strided_slice %82 {offsets = [0, 0], sizes = [1, 8], strides = [1, 1]} : vector<1x16xf32> to vector<1x8xf32>
    %87 = vector.broadcast %86 : vector<1x8xf32> to vector<128x8xf32>
    %88 = arith.addf %85, %87 : vector<128x8xf32>
    %c0_54 = arith.constant 0 : index
    %c0_55 = arith.constant 0 : index
    %89 = vector.load %arg20[%c0_54, %c0_55] : memref<1x8xf32, #tpu.memory_space<vmem>>, vector<1x8xf32>
    %90 = vector.broadcast %89 : vector<1x8xf32> to vector<128x8xf32>
    %91 = arith.mulf %78, %90 : vector<128x8xf32>
    %92 = vector.extract_strided_slice %82 {offsets = [0, 8], sizes = [1, 8], strides = [1, 1]} : vector<1x16xf32> to vector<1x8xf32>
    %93 = vector.broadcast %92 : vector<1x8xf32> to vector<128x8xf32>
    %94 = arith.addf %91, %93 : vector<128x8xf32>
    %95 = arith.mulf %88, %88 : vector<128x8xf32>
    %cst_56 = arith.constant dense<0.000000e+00> : vector<128xf32>
    %96 = vector.multi_reduction <add>, %95, %cst_56 [1] : vector<128x8xf32> to vector<128xf32>
    %97 = vector.shape_cast %96 : vector<128xf32> to vector<128x1xf32>
    %98 = arith.mulf %94, %94 : vector<128x8xf32>
    %cst_57 = arith.constant dense<0.000000e+00> : vector<128xf32>
    %99 = vector.multi_reduction <add>, %98, %cst_57 [1] : vector<128x8xf32> to vector<128xf32>
    %100 = vector.shape_cast %99 : vector<128xf32> to vector<128x1xf32>
    %101 = arith.addf %97, %100 : vector<128x1xf32>
    %c0_58 = arith.constant 0 : index
    %102 = memref.load %arg3[%c0_58] : memref<1xf32, #tpu.memory_space<smem>>
    %cst_59 = arith.constant -14.7030163 : f32
    %103 = arith.addf %cst_59, %102 : f32
    %cst_60 = arith.constant 5.000000e-01 : f32
    %104 = vector.broadcast %cst_60 : f32 to vector<128x1xf32>
    %105 = arith.mulf %104, %101 : vector<128x1xf32>
    %106 = vector.broadcast %103 : f32 to vector<128x1xf32>
    %107 = arith.subf %106, %105 : vector<128x1xf32>
    %108 = arith.addf %107, %81 : vector<128x1xf32>
    %109 = tpu.iota {dimensions = array<i32: 0>} : vector<128x128xi32>
    %110 = tpu.iota {dimensions = array<i32: 1>} : vector<128x128xi32>
    %111 = arith.cmpi eq, %109, %110 : vector<128x128xi32>
    %cst_61 = arith.constant 0.000000e+00 : f32
    %112 = vector.shape_cast %108 : vector<128x1xf32> to vector<128x1xf32>
    %113 = vector.broadcast %112 : vector<128x1xf32> to vector<128x128xf32>
    %114 = vector.broadcast %cst_61 : f32 to vector<128x128xf32>
    %115 = arith.select %111, %113, %114 : vector<128x128xi1>, vector<128x128xf32>
    %cst_62 = arith.constant dense<0.000000e+00> : vector<128xf32>
    %116 = vector.multi_reduction <add>, %115, %cst_62 [0] : vector<128x128xf32> to vector<128xf32>
    %117 = vector.shape_cast %116 : vector<128xf32> to vector<1x128xf32>
    %cst_63 = arith.constant 6.250000e-02 : f32
    %118 = vector.broadcast %cst_63 : f32 to vector<1x128xf32>
    %119 = arith.mulf %117, %118 : vector<1x128xf32>
    %c0_64 = arith.constant 0 : index
    %c0_65 = arith.constant 0 : index
    %120 = vector.load %arg22[%c0_64, %c0_65] : memref<1x128xf32, #tpu.memory_space<vmem>>, vector<1x128xf32>
    tpu.vector_store %arg22[%c0_64, %c0_65], %119 {strides = array<i32>} : memref<1x128xf32, #tpu.memory_space<vmem>>, vector<1x128xf32>,
    return
  }
  func.func @transform_0(%arg0: i32) -> (i32, i32) {
    %c0_i32 = arith.constant 0 : i32
    %c0_i32_0 = arith.constant 0 : i32
    return %arg0, %c0_i32 : i32, i32
  }
  func.func @transform_1(%arg0: i32) -> (i32, i32) {
    %c0_i32 = arith.constant 0 : i32
    %c0_i32_0 = arith.constant 0 : i32
    %c0_i32_1 = arith.constant 0 : i32
    return %c0_i32, %c0_i32_0 : i32, i32
  }
  func.func @transform_2(%arg0: i32) -> i32 {
    %c0_i32 = arith.constant 0 : i32
    %c0_i32_0 = arith.constant 0 : i32
    return %c0_i32 : i32
  }
  func.func @transform_3(%arg0: i32) -> (i32, i32) {
    %c0_i32 = arith.constant 0 : i32
    %c0_i32_0 = arith.constant 0 : i32
    %c0_i32_1 = arith.constant 0 : i32
    return %c0_i32, %c0_i32_0 : i32, i32
  }
  func.func @transform_4(%arg0: i32) -> (i32, i32) {
    %c0_i32 = arith.constant 0 : i32
    %c0_i32_0 = arith.constant 0 : i32
    %c0_i32_1 = arith.constant 0 : i32
    return %c0_i32, %c0_i32_0 : i32, i32
  }
  func.func @transform_5(%arg0: i32) -> (i32, i32) {
    %c0_i32 = arith.constant 0 : i32
    %c0_i32_0 = arith.constant 0 : i32
    %c0_i32_1 = arith.constant 0 : i32
    return %c0_i32, %c0_i32_0 : i32, i32
  }
  func.func @transform_6(%arg0: i32) -> (i32, i32) {
    %c0_i32 = arith.constant 0 : i32
    %c0_i32_0 = arith.constant 0 : i32
    %c0_i32_1 = arith.constant 0 : i32
    return %c0_i32, %c0_i32_0 : i32, i32
  }
  func.func @transform_7(%arg0: i32) -> (i32, i32) {
    %c0_i32 = arith.constant 0 : i32
    %c0_i32_0 = arith.constant 0 : i32
    %c0_i32_1 = arith.constant 0 : i32
    return %c0_i32, %c0_i32_0 : i32, i32
  }
  func.func @transform_8(%arg0: i32) -> (i32, i32) {
    %c0_i32 = arith.constant 0 : i32
    %c0_i32_0 = arith.constant 0 : i32
    %c0_i32_1 = arith.constant 0 : i32
    return %c0_i32, %c0_i32_0 : i32, i32
  }
  func.func @transform_9(%arg0: i32) -> (i32, i32) {
    %c0_i32 = arith.constant 0 : i32
    %c0_i32_0 = arith.constant 0 : i32
    %c0_i32_1 = arith.constant 0 : i32
    return %c0_i32, %c0_i32_0 : i32, i32
  }
  func.func @transform_10(%arg0: i32) -> (i32, i32) {
    %c0_i32 = arith.constant 0 : i32
    %c0_i32_0 = arith.constant 0 : i32
    %c0_i32_1 = arith.constant 0 : i32
    return %c0_i32, %c0_i32_0 : i32, i32
  }
  func.func @transform_11(%arg0: i32) -> (i32, i32) {
    %c0_i32 = arith.constant 0 : i32
    %c0_i32_0 = arith.constant 0 : i32
    %c0_i32_1 = arith.constant 0 : i32
    return %c0_i32, %c0_i32_0 : i32, i32
  }
  func.func @transform_12(%arg0: i32) -> (i32, i32) {
    %c0_i32 = arith.constant 0 : i32
    %c0_i32_0 = arith.constant 0 : i32
    %c0_i32_1 = arith.constant 0 : i32
    return %c0_i32, %c0_i32_0 : i32, i32
  }
  func.func @transform_13(%arg0: i32) -> (i32, i32) {
    %c0_i32 = arith.constant 0 : i32
    %c0_i32_0 = arith.constant 0 : i32
    %c0_i32_1 = arith.constant 0 : i32
    return %c0_i32, %c0_i32_0 : i32, i32
  }
  func.func @transform_14(%arg0: i32) -> (i32, i32) {
    %c0_i32 = arith.constant 0 : i32
    %c0_i32_0 = arith.constant 0 : i32
    %c0_i32_1 = arith.constant 0 : i32
    return %c0_i32, %c0_i32_0 : i32, i32
  }
  func.func @transform_15(%arg0: i32) -> (i32, i32) {
    %c0_i32 = arith.constant 0 : i32
    %c0_i32_0 = arith.constant 0 : i32
    %c0_i32_1 = arith.constant 0 : i32
    return %c0_i32, %c0_i32_0 : i32, i32
  }
  func.func @transform_16(%arg0: i32) -> (i32, i32) {
    %c0_i32 = arith.constant 0 : i32
    %c0_i32_0 = arith.constant 0 : i32
    %c0_i32_1 = arith.constant 0 : i32
    return %c0_i32, %c0_i32_0 : i32, i32
  }
  func.func @transform_17(%arg0: i32) -> (i32, i32) {
    %c0_i32 = arith.constant 0 : i32
    %c0_i32_0 = arith.constant 0 : i32
    %c0_i32_1 = arith.constant 0 : i32
    return %c0_i32, %c0_i32_0 : i32, i32
  }
  func.func @transform_18(%arg0: i32) -> (i32, i32) {
    %c0_i32 = arith.constant 0 : i32
    %c0_i32_0 = arith.constant 0 : i32
    %c0_i32_1 = arith.constant 0 : i32
    return %c0_i32, %c0_i32_0 : i32, i32
  }
  func.func @transform_19(%arg0: i32) -> (i32, i32) {
    %c0_i32 = arith.constant 0 : i32
    %c0_i32_0 = arith.constant 0 : i32
    %c0_i32_1 = arith.constant 0 : i32
    return %c0_i32, %c0_i32_0 : i32, i32
  }
  func.func @transform_20(%arg0: i32) -> (i32, i32) {
    %c0_i32 = arith.constant 0 : i32
    %c0_i32_0 = arith.constant 0 : i32
    %c0_i32_1 = arith.constant 0 : i32
    return %c0_i32, %c0_i32_0 : i32, i32
  }
  func.func @transform_21(%arg0: i32) -> (i32, i32) {
    %c0_i32 = arith.constant 0 : i32
    %c0_i32_0 = arith.constant 0 : i32
    return %c0_i32, %arg0 : i32, i32
  }
}

</mosaic_0001>

<llo_original>
// kernel: tpu_custom_call.1
$region0: #{tpu_custom_call.1}
  #allocation0 [shape = 'u32[]', space=smem, size = 0x4, offset = 0x4, fixed_abs, tag = 'smem constant byte address 0x4 - core index']
  #allocation1 [shape = 'u32[144,128]{1,0:T(1,128)}', space=vmem, size = 0x12000, scoped, tag = 'internal scratch']
  #allocation2 [shape = 'f32[1]{0:T(128)S(6)}', space=smem, size = 0x200, scoped, tag = 'scoped memory for tpu_custom_call.1']
  %s0 = inlined_call_operand.vmem [shape: bf16[128,4], index: 0, kind: input, shape index: {}]
  %s1 = inlined_call_operand.vmem [shape: bf16[128,8], index: 1, kind: input, shape index: {}]
  %s2 = inlined_call_operand.<no memory space> [shape: f32[1], index: 2, kind: input, shape index: {}]
  %s3 = inlined_call_operand.vmem [shape: bf16[4,16], index: 3, kind: input, shape index: {}]
  %s4 = inlined_call_operand.vmem [shape: f32[1,16], index: 4, kind: input, shape index: {}]
  %s5 = inlined_call_operand.vmem [shape: bf16[8,32], index: 5, kind: input, shape index: {}]
  %s6 = inlined_call_operand.vmem [shape: bf16[8,32], index: 6, kind: input, shape index: {}]
  %s7 = inlined_call_operand.vmem [shape: f32[1,32], index: 7, kind: input, shape index: {}]
  %s8 = inlined_call_operand.vmem [shape: bf16[32,16], index: 8, kind: input, shape index: {}]
  %s9 = inlined_call_operand.vmem [shape: f32[1,16], index: 9, kind: input, shape index: {}]
  %s10 = inlined_call_operand.vmem [shape: bf16[8,16], index: 10, kind: input, shape index: {}]
  %s11 = inlined_call_operand.vmem [shape: bf16[8,16], index: 11, kind: input, shape index: {}]
  %s12 = inlined_call_operand.vmem [shape: f32[1,16], index: 12, kind: input, shape index: {}]
  %s13 = inlined_call_operand.vmem [shape: bf16[8,32], index: 13, kind: input, shape index: {}]
  %s14 = inlined_call_operand.vmem [shape: bf16[8,32], index: 14, kind: input, shape index: {}]
  %s15 = inlined_call_operand.vmem [shape: f32[1,32], index: 15, kind: input, shape index: {}]
  %s16 = inlined_call_operand.vmem [shape: bf16[32,16], index: 16, kind: input, shape index: {}]
  %s17 = inlined_call_operand.vmem [shape: f32[1,16], index: 17, kind: input, shape index: {}]
  %s18 = inlined_call_operand.vmem [shape: f32[1,8], index: 18, kind: input, shape index: {}]
  %s19 = inlined_call_operand.vmem [shape: f32[1,8], index: 19, kind: input, shape index: {}]
  %s20 = inlined_call_operand.vmem [shape: f32[1,16], index: 20, kind: input, shape index: {}]
  %s21 = inlined_call_operand.hbm [shape: f32[1,128], index: 21, kind: output, shape index: {}]
  %s22 = sld [smem:[#allocation0]]
  $region94: #{tpu_custom_call.1} parent=0
    _
  %s24 = ssub.s32 1, %s22
  %s25 = scalar_select 0, %s24, %s22
  %26 = sst [smem:[#allocation2]] %s2
  $region1: #{tpu_custom_call.1} parent=0
    #allocation3 [shape = 'u8[512]{0}', space=vmem, size = 0x400, scoped, tag = 'output window, operand 0, single buffered']
    #allocation4 [shape = 's32[1]{0}', space=sflag, size = 0x4, scoped, tag = 'scoped memory for tpu_custom_call.1']
    %27 = vsyncpa [#allocation4], 0
    // Predicated region
    $region2: #{tpu_custom_call.1} parent=1 // pred_check
      _
    $region3: #{tpu_custom_call.1} parent=1 // pred_check_branch
      %29 = sbr.rel (0) target = $region5
    $region4: #{tpu_custom_call.1} parent=1 // pred_region
      _
    $region5: #{tpu_custom_call.1} parent=1 // pred_fallthru
      _
    // Predicated region
    $region6: #{tpu_custom_call.1} parent=1 // pred_check
      _
    $region7: #{tpu_custom_call.1} parent=1 // pred_check_branch
      %31 = sbr.rel (0) target = $region9
    $region8: #{tpu_custom_call.1} parent=1 // pred_region
      _
    $region9: #{tpu_custom_call.1} parent=1 // pred_fallthru
      _
    // Predicated region
    $region10: #{tpu_custom_call.1} parent=1 // pred_check
      _
    $region11: #{tpu_custom_call.1} parent=1 // pred_check_branch
      %33 = sbr.rel (0) target = $region13
    $region12: #{tpu_custom_call.1} parent=1 // pred_region
      _
    $region13: #{tpu_custom_call.1} parent=1 // pred_fallthru
      _
    // Predicated region
    $region14: #{tpu_custom_call.1} parent=1 // pred_check
      _
    $region15: #{tpu_custom_call.1} parent=1 // pred_check_branch
      %35 = sbr.rel (0) target = $region17
    $region16: #{tpu_custom_call.1} parent=1 // pred_region
      _
    $region17: #{tpu_custom_call.1} parent=1 // pred_fallthru
      _
    // Predicated region
    $region18: #{tpu_custom_call.1} parent=1 // pred_check
      _
    $region19: #{tpu_custom_call.1} parent=1 // pred_check_branch
      %37 = sbr.rel (0) target = $region21
    $region20: #{tpu_custom_call.1} parent=1 // pred_region
      _
    $region21: #{tpu_custom_call.1} parent=1 // pred_fallthru
      _
    // Predicated region
    $region22: #{tpu_custom_call.1} parent=1 // pred_check
      _
    $region23: #{tpu_custom_call.1} parent=1 // pred_check_branch
      %39 = sbr.rel (0) target = $region25
    $region24: #{tpu_custom_call.1} parent=1 // pred_region
      _
    $region25: #{tpu_custom_call.1} parent=1 // pred_fallthru
      _
    // Predicated region
    $region26: #{tpu_custom_call.1} parent=1 // pred_check
      _
    $region27: #{tpu_custom_call.1} parent=1 // pred_check_branch
      %41 = sbr.rel (0) target = $region29
    $region28: #{tpu_custom_call.1} parent=1 // pred_region
      _
    $region29: #{tpu_custom_call.1} parent=1 // pred_fallthru
      _
    // Predicated region
    $region30: #{tpu_custom_call.1} parent=1 // pred_check
      _
    $region31: #{tpu_custom_call.1} parent=1 // pred_check_branch
      %43 = sbr.rel (0) target = $region33
    $region32: #{tpu_custom_call.1} parent=1 // pred_region
      _
    $region33: #{tpu_custom_call.1} parent=1 // pred_fallthru
      _
    // Predicated region
    $region34: #{tpu_custom_call.1} parent=1 // pred_check
      _
    $region35: #{tpu_custom_call.1} parent=1 // pred_check_branch
      %45 = sbr.rel (0) target = $region37
    $region36: #{tpu_custom_call.1} parent=1 // pred_region
      _
    $region37: #{tpu_custom_call.1} parent=1 // pred_fallthru
      _
    // Predicated region
    $region38: #{tpu_custom_call.1} parent=1 // pred_check
      _
    $region39: #{tpu_custom_call.1} parent=1 // pred_check_branch
      %47 = sbr.rel (0) target = $region41
    $region40: #{tpu_custom_call.1} parent=1 // pred_region
      _
    $region41: #{tpu_custom_call.1} parent=1 // pred_fallthru
      _
    // Predicated region
    $region42: #{tpu_custom_call.1} parent=1 // pred_check
      _
    $region43: #{tpu_custom_call.1} parent=1 // pred_check_branch
      %49 = sbr.rel (0) target = $region45
    $region44: #{tpu_custom_call.1} parent=1 // pred_region
      _
    $region45: #{tpu_custom_call.1} parent=1 // pred_fallthru
      _
    // Predicated region
    $region46: #{tpu_custom_call.1} parent=1 // pred_check
      _
    $region47: #{tpu_custom_call.1} parent=1 // pred_check_branch
      %51 = sbr.rel (0) target = $region49
    $region48: #{tpu_custom_call.1} parent=1 // pred_region
      _
    $region49: #{tpu_custom_call.1} parent=1 // pred_fallthru
      _
    // Predicated region
    $region50: #{tpu_custom_call.1} parent=1 // pred_check
      _
    $region51: #{tpu_custom_call.1} parent=1 // pred_check_branch
      %53 = sbr.rel (0) target = $region53
    $region52: #{tpu_custom_call.1} parent=1 // pred_region
      _
    $region53: #{tpu_custom_call.1} parent=1 // pred_fallthru
      _
    // Predicated region
    $region54: #{tpu_custom_call.1} parent=1 // pred_check
      _
    $region55: #{tpu_custom_call.1} parent=1 // pred_check_branch
      %55 = sbr.rel (0) target = $region57
    $region56: #{tpu_custom_call.1} parent=1 // pred_region
      _
    $region57: #{tpu_custom_call.1} parent=1 // pred_fallthru
      _
    // Predicated region
    $region58: #{tpu_custom_call.1} parent=1 // pred_check
      _
    $region59: #{tpu_custom_call.1} parent=1 // pred_check_branch
      %57 = sbr.rel (0) target = $region61
    $region60: #{tpu_custom_call.1} parent=1 // pred_region
      _
    $region61: #{tpu_custom_call.1} parent=1 // pred_fallthru
      _
    // Predicated region
    $region62: #{tpu_custom_call.1} parent=1 // pred_check
      _
    $region63: #{tpu_custom_call.1} parent=1 // pred_check_branch
      %59 = sbr.rel (0) target = $region65
    $region64: #{tpu_custom_call.1} parent=1 // pred_region
      _
    $region65: #{tpu_custom_call.1} parent=1 // pred_fallthru
      _
    // Predicated region
    $region66: #{tpu_custom_call.1} parent=1 // pred_check
      _
    $region67: #{tpu_custom_call.1} parent=1 // pred_check_branch
      %61 = sbr.rel (0) target = $region69
    $region68: #{tpu_custom_call.1} parent=1 // pred_region
      _
    $region69: #{tpu_custom_call.1} parent=1 // pred_fallthru
      _
    // Predicated region
    $region70: #{tpu_custom_call.1} parent=1 // pred_check
      _
    $region71: #{tpu_custom_call.1} parent=1 // pred_check_branch
      %63 = sbr.rel (0) target = $region73
    $region72: #{tpu_custom_call.1} parent=1 // pred_region
      _
    $region73: #{tpu_custom_call.1} parent=1 // pred_fallthru
      _
    // Predicated region
    $region74: #{tpu_custom_call.1} parent=1 // pred_check
      _
    $region75: #{tpu_custom_call.1} parent=1 // pred_check_branch
      %65 = sbr.rel (0) target = $region77
    $region76: #{tpu_custom_call.1} parent=1 // pred_region
      _
    $region77: #{tpu_custom_call.1} parent=1 // pred_fallthru
      _
    // Predicated region
    $region78: #{tpu_custom_call.1} parent=1 // pred_check
      _
    $region79: #{tpu_custom_call.1} parent=1 // pred_check_branch
      %67 = sbr.rel (0) target = $region81
    $region80: #{tpu_custom_call.1} parent=1 // pred_region
      _
    $region81: #{tpu_custom_call.1} parent=1 // pred_fallthru
      _
    // Predicated region
    $region82: #{tpu_custom_call.1} parent=1 // pred_check
      _
    $region83: #{tpu_custom_call.1} parent=1 // pred_check_branch
      %69 = sbr.rel (0) target = $region85
    $region84: #{tpu_custom_call.1} parent=1 // pred_region
      _
    $region85: #{tpu_custom_call.1} parent=1 // pred_fallthru
      _
    %v71 = vld [vmem:[%s0] sm:$0xf]
    %v72 = vld [vmem:[%s0 + $0x4] sm:$0xf]
    %v73 = vld [vmem:[%s0 + $0x8] sm:$0xf]
    %v74 = vld [vmem:[%s0 + $0xc] sm:$0xf]
    %v75 = vld [vmem:[%s0 + $0x10] sm:$0xf]
    %v76 = vld [vmem:[%s0 + $0x14] sm:$0xf]
    %v77 = vld [vmem:[%s0 + $0x18] sm:$0xf]
    %v78 = vld [vmem:[%s0 + $0x1c] sm:$0xf]
    %v79 = vld [vmem:[%s0 + $0x20] sm:$0xf]
    %v80 = vld [vmem:[%s0 + $0x24] sm:$0xf]
    %v81 = vld [vmem:[%s0 + $0x28] sm:$0xf]
    %v82 = vld [vmem:[%s0 + $0x2c] sm:$0xf]
    %v83 = vld [vmem:[%s0 + $0x30] sm:$0xf]
    %v84 = vld [vmem:[%s0 + $0x34] sm:$0xf]
    %v85 = vld [vmem:[%s0 + $0x38] sm:$0xf]
    %v86 = vld [vmem:[%s0 + $0x3c] sm:$0xf]
    %v87 = vld [vmem:[%s3] sm:$0x3]
    %v88 = vld [vmem:[%s4] sm:$0x1]
    %v90 = vlaneseq
    %v91 = vshrl.u32 %v90, 7
    %v92 = vsub.s32 0, %v91
    %v93 = vrot.slane %v88, %v92
    %v111 = vunpack.c.l.b16 %v71
    %v112 = vunpack.c.l.b16 %v72
    %v113 = vunpack.c.l.b16 %v73
    %v114 = vunpack.c.l.b16 %v74
    %v115 = vunpack.c.l.b16 %v75
    %v116 = vunpack.c.l.b16 %v76
    %v117 = vunpack.c.l.b16 %v77
    %v118 = vunpack.c.l.b16 %v78
    %v119 = vunpack.c.l.b16 %v79
    %v120 = vunpack.c.l.b16 %v80
    %v121 = vunpack.c.l.b16 %v81
    %v122 = vunpack.c.l.b16 %v82
    %v123 = vunpack.c.l.b16 %v83
    %v124 = vunpack.c.l.b16 %v84
    %v125 = vunpack.c.l.b16 %v85
    %v126 = vunpack.c.l.b16 %v86
    %v127 = vpack.c.b16 %v112, %v111
    %v128 = vpack.c.b16 %v114, %v113
    %v129 = vpack.c.b16 %v116, %v115
    %v130 = vpack.c.b16 %v118, %v117
    %v131 = vpack.c.b16 %v120, %v119
    %v132 = vpack.c.b16 %v122, %v121
    %v133 = vpack.c.b16 %v124, %v123
    %v134 = vpack.c.b16 %v126, %v125
    %vm135 = vcmask 31744
    %v137 = vsel %vm135, %v127, 0
    %v140 = vsel %vm135, %v128, 0
    %v143 = vsel %vm135, %v129, 0
    %v146 = vsel %vm135, %v130, 0
    %v149 = vsel %vm135, %v131, 0
    %v152 = vsel %vm135, %v132, 0
    %v155 = vsel %vm135, %v133, 0
    %v158 = vsel %vm135, %v134, 0
    %vm160 = vcmask 1041408
    %v162 = vsel %vm160, %v87, 0
    %164 = vmatprep.subr.bf16.mxu0 0
    %165 = vmatpush1.bf16.msra.mxu0 %v162
    %166 = vmatprep.subr.bf16.mxu0 0
    %167 = vmatpush1.bf16.msra.mxu0 0
    %168 = vmatprep.subr.bf16.mxu0 0
    %169 = vmatpush1.bf16.msra.mxu0 0
    %170 = vmatprep.subr.bf16.mxu0 0
    %171 = vmatpush1.bf16.msra.mxu0 0
    %172 = vmatprep.subr.bf16.mxu0 0
    %173 = vmatpush1.bf16.msra.mxu0 0
    %174 = vmatprep.subr.bf16.mxu0 0
    %175 = vmatpush1.bf16.msra.mxu0 0
    %176 = vmatprep.subr.bf16.mxu0 0
    %177 = vmatpush1.bf16.msra.mxu0 0
    %178 = vmatprep.subr.bf16.mxu0 0
    %179 = vmatpush1.bf16.msra.mxu0 0
    %180 = vmatprep.subr.bf16.mxu0 0
    %181 = vmatpush1.bf16.msra.mxu0 0
    %182 = vmatprep.subr.bf16.mxu0 0
    %183 = vmatpush1.bf16.msra.mxu0 0
    %184 = vmatprep.subr.bf16.mxu0 0
    %185 = vmatpush1.bf16.msra.mxu0 0
    %186 = vmatprep.subr.bf16.mxu0 0
    %187 = vmatpush1.bf16.msra.mxu0 0
    %188 = vmatprep.subr.bf16.mxu0 0
    %189 = vmatpush1.bf16.msra.mxu0 0
    %190 = vmatprep.subr.bf16.mxu0 0
    %191 = vmatpush1.bf16.msra.mxu0 0
    %192 = vmatprep.subr.bf16.mxu0 0
    %193 = vmatpush1.bf16.msra.mxu0 0
    %194 = vmatprep.subr.bf16.mxu0 0
    %195 = vmatpush1.bf16.msra.mxu0 0
    %196 = vmatprep.mubr.bf16.mxu0 0
    %197 = vmatmul.mubr.bf16.gmra.mrb[0].mxu0 %v137
    %v198 = vpop.f32.mrb[0].mxu0
    %v199 = vadd.f32 %v93, %v198
    %v200 = vpop.f32.mrb[0].mxu0
    %v201 = vpop.f32.mrb[0].mxu0
    %v202 = vadd.f32 %v93, %v201
    %v203 = vpop.f32.mrb[0].mxu0
    %204 = vmatprep.mubr.bf16.mxu0 0
    %205 = vmatmul.mubr.bf16.gmra.mrb[0].mxu0 %v140
    %v206 = vpop.f32.mrb[0].mxu0
    %v207 = vadd.f32 %v93, %v206
    %v208 = vpop.f32.mrb[0].mxu0
    %v209 = vpop.f32.mrb[0].mxu0
    %v210 = vadd.f32 %v93, %v209
    %v211 = vpop.f32.mrb[0].mxu0
    %212 = vmatprep.mubr.bf16.mxu0 0
    %213 = vmatmul.mubr.bf16.gmra.mrb[0].mxu0 %v143
    %v214 = vpop.f32.mrb[0].mxu0
    %v215 = vadd.f32 %v93, %v214
    %v216 = vpop.f32.mrb[0].mxu0
    %v217 = vpop.f32.mrb[0].mxu0
    %v218 = vadd.f32 %v93, %v217
    %v219 = vpop.f32.mrb[0].mxu0
    %220 = vmatprep.mubr.bf16.mxu0 0
    %221 = vmatmul.mubr.bf16.gmra.mrb[0].mxu0 %v146
    %v222 = vpop.f32.mrb[0].mxu0
    %v223 = vadd.f32 %v93, %v222
    %v224 = vpop.f32.mrb[0].mxu0
    %v225 = vpop.f32.mrb[0].mxu0
    %v226 = vadd.f32 %v93, %v225
    %v227 = vpop.f32.mrb[0].mxu0
    %228 = vmatprep.mubr.bf16.mxu0 0
    %229 = vmatmul.mubr.bf16.gmra.mrb[0].mxu0 %v149
    %v230 = vpop.f32.mrb[0].mxu0
    %v231 = vadd.f32 %v93, %v230
    %v232 = vpop.f32.mrb[0].mxu0
    %v233 = vpop.f32.mrb[0].mxu0
    %v234 = vadd.f32 %v93, %v233
    %v235 = vpop.f32.mrb[0].mxu0
    %236 = vmatprep.mubr.bf16.mxu0 0
    %237 = vmatmul.mubr.bf16.gmra.mrb[0].mxu0 %v152
    %v238 = vpop.f32.mrb[0].mxu0
    %v239 = vadd.f32 %v93, %v238
    %v240 = vpop.f32.mrb[0].mxu0
    %v241 = vpop.f32.mrb[0].mxu0
    %v242 = vadd.f32 %v93, %v241
    %v243 = vpop.f32.mrb[0].mxu0
    %244 = vmatprep.mubr.bf16.mxu0 0
    %245 = vmatmul.mubr.bf16.gmra.mrb[0].mxu0 %v155
    %v246 = vpop.f32.mrb[0].mxu0
    %v247 = vadd.f32 %v93, %v246
    %v248 = vpop.f32.mrb[0].mxu0
    %v249 = vpop.f32.mrb[0].mxu0
    %v250 = vadd.f32 %v93, %v249
    %v251 = vpop.f32.mrb[0].mxu0
    %252 = vmatprep.mubr.bf16.mxu0 0
    %253 = vmatmul.mubr.bf16.gmra.mrb[0].mxu0 %v158
    %v254 = vpop.f32.mrb[0].mxu0
    %v255 = vadd.f32 %v93, %v254
    %v256 = vpop.f32.mrb[0].mxu0
    %v257 = vpop.f32.mrb[0].mxu0
    %v258 = vadd.f32 %v93, %v257
    %v259 = vpop.f32.mrb[0].mxu0
    %260 = vdwg.mxu0
    %v261 = vtanh.pop %v199
    %v262 = vtanh.pop %v202
    %v263 = vtanh.pop %v207
    %v264 = vtanh.pop %v210
    %v265 = vtanh.pop %v215
    %v266 = vtanh.pop %v218
    %v267 = vtanh.pop %v223
    %v268 = vtanh.pop %v226
    %v269 = vtanh.pop %v231
    %v270 = vtanh.pop %v234
    %v271 = vtanh.pop %v239
    %v272 = vtanh.pop %v242
    %v273 = vtanh.pop %v247
    %v274 = vtanh.pop %v250
    %v275 = vtanh.pop %v255
    %v276 = vtanh.pop %v258
    %v277 = vld [vmem:[%s1] sm:$0xf]
    %v278 = vld [vmem:[%s1 + $0x4] sm:$0xf]
    %v279 = vld [vmem:[%s1 + $0x8] sm:$0xf]
    %v280 = vld [vmem:[%s1 + $0xc] sm:$0xf]
    %v281 = vld [vmem:[%s1 + $0x10] sm:$0xf]
    %v282 = vld [vmem:[%s1 + $0x14] sm:$0xf]
    %v283 = vld [vmem:[%s1 + $0x18] sm:$0xf]
    %v284 = vld [vmem:[%s1 + $0x1c] sm:$0xf]
    %v285 = vld [vmem:[%s1 + $0x20] sm:$0xf]
    %v286 = vld [vmem:[%s1 + $0x24] sm:$0xf]
    %v287 = vld [vmem:[%s1 + $0x28] sm:$0xf]
    %v288 = vld [vmem:[%s1 + $0x2c] sm:$0xf]
    %v289 = vld [vmem:[%s1 + $0x30] sm:$0xf]
    %v290 = vld [vmem:[%s1 + $0x34] sm:$0xf]
    %v291 = vld [vmem:[%s1 + $0x38] sm:$0xf]
    %v292 = vld [vmem:[%s1 + $0x3c] sm:$0xf]
    %v293 = vpack.c.bf16 %v262, %v261
    %v294 = vpack.c.bf16 %v264, %v263
    %v295 = vpack.c.bf16 %v266, %v265
    %v296 = vpack.c.bf16 %v268, %v267
    %v297 = vpack.c.bf16 %v270, %v269
    %v298 = vpack.c.bf16 %v272, %v271
    %v299 = vpack.c.bf16 %v274, %v273
    %v300 = vpack.c.bf16 %v276, %v275
    %v301 = vld [vmem:[%s5] sm:$0xf]
    %v302 = vld [vmem:[%s6] sm:$0xf]
    %v319 = vunpack.c.l.b16 %v277
    %v320 = vunpack.c.l.b16 %v278
    %v321 = vunpack.c.l.b16 %v279
    %v322 = vunpack.c.l.b16 %v280
    %v323 = vunpack.c.l.b16 %v281
    %v324 = vunpack.c.l.b16 %v282
    %v325 = vunpack.c.l.b16 %v283
    %v326 = vunpack.c.l.b16 %v284
    %v327 = vunpack.c.l.b16 %v285
    %v328 = vunpack.c.l.b16 %v286
    %v329 = vunpack.c.l.b16 %v287
    %v330 = vunpack.c.l.b16 %v288
    %v331 = vunpack.c.l.b16 %v289
    %v332 = vunpack.c.l.b16 %v290
    %v333 = vunpack.c.l.b16 %v291
    %v334 = vunpack.c.l.b16 %v292
    %v335 = vpack.c.b16 %v320, %v319
    %v336 = vpack.c.b16 %v322, %v321
    %v337 = vpack.c.b16 %v324, %v323
    %v338 = vpack.c.b16 %v326, %v325
    %v339 = vpack.c.b16 %v328, %v327
    %v340 = vpack.c.b16 %v330, %v329
    %v341 = vpack.c.b16 %v332, %v331
    %v342 = vpack.c.b16 %v334, %v333
    %vm343 = vcmask 64512
    %v345 = vsel %vm343, %v335, 0
    %v348 = vsel %vm343, %v336, 0
    %v351 = vsel %vm343, %v337, 0
    %v354 = vsel %vm343, %v338, 0
    %v357 = vsel %vm343, %v339, 0
    %v360 = vsel %vm343, %v340, 0
    %v363 = vsel %vm343, %v341, 0
    %v366 = vsel %vm343, %v342, 0
    %vm368 = vcmask 1043456
    %v370 = vsel %vm368, %v302, 0
    %372 = vmatprep.subr.bf16.mxu0 0
    %373 = vmatpush1.bf16.msra.mxu0 %v370
    %374 = vmatprep.subr.bf16.mxu0 0
    %375 = vmatpush1.bf16.msra.mxu0 0
    %376 = vmatprep.subr.bf16.mxu0 0
    %377 = vmatpush1.bf16.msra.mxu0 0
    %378 = vmatprep.subr.bf16.mxu0 0
    %379 = vmatpush1.bf16.msra.mxu0 0
    %380 = vmatprep.subr.bf16.mxu0 0
    %381 = vmatpush1.bf16.msra.mxu0 0
    %382 = vmatprep.subr.bf16.mxu0 0
    %383 = vmatpush1.bf16.msra.mxu0 0
    %384 = vmatprep.subr.bf16.mxu0 0
    %385 = vmatpush1.bf16.msra.mxu0 0
    %386 = vmatprep.subr.bf16.mxu0 0
    %387 = vmatpush1.bf16.msra.mxu0 0
    %388 = vmatprep.subr.bf16.mxu0 0
    %389 = vmatpush1.bf16.msra.mxu0 0
    %390 = vmatprep.subr.bf16.mxu0 0
    %391 = vmatpush1.bf16.msra.mxu0 0
    %392 = vmatprep.subr.bf16.mxu0 0
    %393 = vmatpush1.bf16.msra.mxu0 0
    %394 = vmatprep.subr.bf16.mxu0 0
    %395 = vmatpush1.bf16.msra.mxu0 0
    %396 = vmatprep.subr.bf16.mxu0 0
    %397 = vmatpush1.bf16.msra.mxu0 0
    %398 = vmatprep.subr.bf16.mxu0 0
    %399 = vmatpush1.bf16.msra.mxu0 0
    %400 = vmatprep.subr.bf16.mxu0 0
    %401 = vmatpush1.bf16.msra.mxu0 0
    %402 = vmatprep.subr.bf16.mxu0 0
    %403 = vmatpush1.bf16.msra.mxu0 0
    %404 = vmatprep.mubr.bf16.mxu0 0
    %405 = vmatmul.mubr.bf16.gmra.mrb[0].mxu0 %v345
    %v406 = vpop.f32.mrb[0].mxu0
    %v407 = vadd.f32 0.0, %v406
    %v408 = vpop.f32.mrb[0].mxu0
    %v409 = vpop.f32.mrb[0].mxu0
    %v410 = vadd.f32 0.0, %v409
    %v411 = vpop.f32.mrb[0].mxu0
    %412 = vmatprep.mubr.bf16.mxu0 0
    %413 = vmatmul.mubr.bf16.gmra.mrb[0].mxu0 %v348
    %v414 = vpop.f32.mrb[0].mxu0
    %v415 = vadd.f32 0.0, %v414
    %v416 = vpop.f32.mrb[0].mxu0
    %v417 = vpop.f32.mrb[0].mxu0
    %v418 = vadd.f32 0.0, %v417
    %v419 = vpop.f32.mrb[0].mxu0
    %420 = vmatprep.mubr.bf16.mxu0 0
    %421 = vmatmul.mubr.bf16.gmra.mrb[0].mxu0 %v351
    %v422 = vpop.f32.mrb[0].mxu0
    %v423 = vadd.f32 0.0, %v422
    %v424 = vpop.f32.mrb[0].mxu0
    %v425 = vpop.f32.mrb[0].mxu0
    %v426 = vadd.f32 0.0, %v425
    %v427 = vpop.f32.mrb[0].mxu0
    %428 = vmatprep.mubr.bf16.mxu0 0
    %429 = vmatmul.mubr.bf16.gmra.mrb[0].mxu0 %v354
    %v430 = vpop.f32.mrb[0].mxu0
    %v431 = vadd.f32 0.0, %v430
    %v432 = vpop.f32.mrb[0].mxu0
    %v433 = vpop.f32.mrb[0].mxu0
    %v434 = vadd.f32 0.0, %v433
    %v435 = vpop.f32.mrb[0].mxu0
    %436 = vmatprep.mubr.bf16.mxu0 0
    %437 = vmatmul.mubr.bf16.gmra.mrb[0].mxu0 %v357
    %v438 = vpop.f32.mrb[0].mxu0
    %v439 = vadd.f32 0.0, %v438
    %v440 = vpop.f32.mrb[0].mxu0
    %v441 = vpop.f32.mrb[0].mxu0
    %v442 = vadd.f32 0.0, %v441
    %v443 = vpop.f32.mrb[0].mxu0
    %444 = vmatprep.mubr.bf16.mxu0 0
    %445 = vmatmul.mubr.bf16.gmra.mrb[0].mxu0 %v360
    %v446 = vpop.f32.mrb[0].mxu0
    %v447 = vadd.f32 0.0, %v446
    %v448 = vpop.f32.mrb[0].mxu0
    %v449 = vpop.f32.mrb[0].mxu0
    %v450 = vadd.f32 0.0, %v449
    %v451 = vpop.f32.mrb[0].mxu0
    %452 = vmatprep.mubr.bf16.mxu0 0
    %453 = vmatmul.mubr.bf16.gmra.mrb[0].mxu0 %v363
    %v454 = vpop.f32.mrb[0].mxu0
    %v455 = vadd.f32 0.0, %v454
    %v456 = vpop.f32.mrb[0].mxu0
    %v457 = vpop.f32.mrb[0].mxu0
    %v458 = vadd.f32 0.0, %v457
    %v459 = vpop.f32.mrb[0].mxu0
    %460 = vmatprep.mubr.bf16.mxu0 0
    %461 = vmatmul.mubr.bf16.gmra.mrb[0].mxu0 %v366
    %v462 = vpop.f32.mrb[0].mxu0
    %v463 = vadd.f32 0.0, %v462
    %v464 = vpop.f32.mrb[0].mxu0
    %v465 = vpop.f32.mrb[0].mxu0
    %v466 = vadd.f32 0.0, %v465
    %v467 = vpop.f32.mrb[0].mxu0
    %468 = vdwg.mxu0
    %v470 = vsel %vm343, %v293, 0
    %v473 = vsel %vm343, %v294, 0
    %v476 = vsel %vm343, %v295, 0
    %v479 = vsel %vm343, %v296, 0
    %v482 = vsel %vm343, %v297, 0
    %v485 = vsel %vm343, %v298, 0
    %v488 = vsel %vm343, %v299, 0
    %v491 = vsel %vm343, %v300, 0
    %v494 = vsel %vm368, %v301, 0
    %496 = vmatprep.subr.bf16.mxu0 0
    %497 = vmatpush1.bf16.msra.mxu0 %v494
    %498 = vmatprep.subr.bf16.mxu0 0
    %499 = vmatpush1.bf16.msra.mxu0 0
    %500 = vmatprep.subr.bf16.mxu0 0
    %501 = vmatpush1.bf16.msra.mxu0 0
    %502 = vmatprep.subr.bf16.mxu0 0
    %503 = vmatpush1.bf16.msra.mxu0 0
    %504 = vmatprep.subr.bf16.mxu0 0
    %505 = vmatpush1.bf16.msra.mxu0 0
    %506 = vmatprep.subr.bf16.mxu0 0
    %507 = vmatpush1.bf16.msra.mxu0 0
    %508 = vmatprep.subr.bf16.mxu0 0
    %509 = vmatpush1.bf16.msra.mxu0 0
    %510 = vmatprep.subr.bf16.mxu0 0
    %511 = vmatpush1.bf16.msra.mxu0 0
    %512 = vmatprep.subr.bf16.mxu0 0
    %513 = vmatpush1.bf16.msra.mxu0 0
    %514 = vmatprep.subr.bf16.mxu0 0
    %515 = vmatpush1.bf16.msra.mxu0 0
    %516 = vmatprep.subr.bf16.mxu0 0
    %517 = vmatpush1.bf16.msra.mxu0 0
    %518 = vmatprep.subr.bf16.mxu0 0
    %519 = vmatpush1.bf16.msra.mxu0 0
    %520 = vmatprep.subr.bf16.mxu0 0
    %521 = vmatpush1.bf16.msra.mxu0 0
    %522 = vmatprep.subr.bf16.mxu0 0
    %523 = vmatpush1.bf16.msra.mxu0 0
    %524 = vmatprep.subr.bf16.mxu0 0
    %525 = vmatpush1.bf16.msra.mxu0 0
    %526 = vmatprep.subr.bf16.mxu0 0
    %527 = vmatpush1.bf16.msra.mxu0 0
    %528 = vmatprep.mubr.bf16.mxu0 0
    %529 = vmatmul.mubr.bf16.gmra.mrb[0].mxu0 %v470
    %v530 = vpop.f32.mrb[0].mxu0
    %v531 = vadd.f32 %v407, %v530
    %v532 = vpop.f32.mrb[0].mxu0
    %v533 = vpop.f32.mrb[0].mxu0
    %v534 = vadd.f32 %v410, %v533
    %v535 = vpop.f32.mrb[0].mxu0
    %536 = vmatprep.mubr.bf16.mxu0 0
    %537 = vmatmul.mubr.bf16.gmra.mrb[0].mxu0 %v473
    %v538 = vpop.f32.mrb[0].mxu0
    %v539 = vadd.f32 %v415, %v538
    %v540 = vpop.f32.mrb[0].mxu0
    %v541 = vpop.f32.mrb[0].mxu0
    %v542 = vadd.f32 %v418, %v541
    %v543 = vpop.f32.mrb[0].mxu0
    %544 = vmatprep.mubr.bf16.mxu0 0
    %545 = vmatmul.mubr.bf16.gmra.mrb[0].mxu0 %v476
    %v546 = vpop.f32.mrb[0].mxu0
    %v547 = vadd.f32 %v423, %v546
    %v548 = vpop.f32.mrb[0].mxu0
    %v549 = vpop.f32.mrb[0].mxu0
    %v550 = vadd.f32 %v426, %v549
    %v551 = vpop.f32.mrb[0].mxu0
    %552 = vmatprep.mubr.bf16.mxu0 0
    %553 = vmatmul.mubr.bf16.gmra.mrb[0].mxu0 %v479
    %v554 = vpop.f32.mrb[0].mxu0
    %v555 = vadd.f32 %v431, %v554
    %v556 = vpop.f32.mrb[0].mxu0
    %v557 = vpop.f32.mrb[0].mxu0
    %v558 = vadd.f32 %v434, %v557
    %v559 = vpop.f32.mrb[0].mxu0
    %560 = vmatprep.mubr.bf16.mxu0 0
    %561 = vmatmul.mubr.bf16.gmra.mrb[0].mxu0 %v482
    %v562 = vpop.f32.mrb[0].mxu0
    %v563 = vadd.f32 %v439, %v562
    %v564 = vpop.f32.mrb[0].mxu0
    %v565 = vpop.f32.mrb[0].mxu0
    %v566 = vadd.f32 %v442, %v565
    %v567 = vpop.f32.mrb[0].mxu0
    %568 = vmatprep.mubr.bf16.mxu0 0
    %569 = vmatmul.mubr.bf16.gmra.mrb[0].mxu0 %v485
    %v570 = vpop.f32.mrb[0].mxu0
    %v571 = vadd.f32 %v447, %v570
    %v572 = vpop.f32.mrb[0].mxu0
    %v573 = vpop.f32.mrb[0].mxu0
    %v574 = vadd.f32 %v450, %v573
    %v575 = vpop.f32.mrb[0].mxu0
    %576 = vmatprep.mubr.bf16.mxu0 0
    %577 = vmatmul.mubr.bf16.gmra.mrb[0].mxu0 %v488
    %v578 = vpop.f32.mrb[0].mxu0
    %v579 = vadd.f32 %v455, %v578
    %v580 = vpop.f32.mrb[0].mxu0
    %v581 = vpop.f32.mrb[0].mxu0
    %v582 = vadd.f32 %v458, %v581
    %v583 = vpop.f32.mrb[0].mxu0
    %584 = vmatprep.mubr.bf16.mxu0 0
    %585 = vmatmul.mubr.bf16.gmra.mrb[0].mxu0 %v491
    %v586 = vpop.f32.mrb[0].mxu0
    %v587 = vadd.f32 %v463, %v586
    %v588 = vpop.f32.mrb[0].mxu0
    %v589 = vpop.f32.mrb[0].mxu0
    %v590 = vadd.f32 %v466, %v589
    %v591 = vpop.f32.mrb[0].mxu0
    %592 = vdwg.mxu0
    %v593 = vld [vmem:[%s7] sm:$0x1]
    %v595 = vlaneseq
    %v596 = vshrl.u32 %v595, 7
    %v597 = vsub.s32 0, %v596
    %v598 = vrot.slane %v593, %v597
    %v600 = vadd.f32 %v531, %v598
    %v601 = vadd.f32 %v534, %v598
    %v602 = vadd.f32 %v539, %v598
    %v603 = vadd.f32 %v542, %v598
    %v604 = vadd.f32 %v547, %v598
    %v605 = vadd.f32 %v550, %v598
    %v606 = vadd.f32 %v555, %v598
    %v607 = vadd.f32 %v558, %v598
    %v608 = vadd.f32 %v563, %v598
    %v609 = vadd.f32 %v566, %v598
    %v610 = vadd.f32 %v571, %v598
    %v611 = vadd.f32 %v574, %v598
    %v612 = vadd.f32 %v579, %v598
    %v613 = vadd.f32 %v582, %v598
    %v614 = vadd.f32 %v587, %v598
    %v615 = vadd.f32 %v590, %v598
    %v616 = vmax.f32 %v600, 0.0
    %v617 = vmax.f32 %v601, 0.0
    %v618 = vmax.f32 %v602, 0.0
    %v619 = vmax.f32 %v603, 0.0
    %v620 = vmax.f32 %v604, 0.0
    %v621 = vmax.f32 %v605, 0.0
    %v622 = vmax.f32 %v606, 0.0
    %v623 = vmax.f32 %v607, 0.0
    %v624 = vmax.f32 %v608, 0.0
    %v625 = vmax.f32 %v609, 0.0
    %v626 = vmax.f32 %v610, 0.0
    %v627 = vmax.f32 %v611, 0.0
    %v628 = vmax.f32 %v612, 0.0
    %v629 = vmax.f32 %v613, 0.0
    %v630 = vmax.f32 %v614, 0.0
    %v631 = vmax.f32 %v615, 0.0
    %v632 = vpack.c.bf16 %v617, %v616
    %v633 = vpack.c.bf16 %v619, %v618
    %v634 = vpack.c.bf16 %v621, %v620
    %v635 = vpack.c.bf16 %v623, %v622
    %v636 = vpack.c.bf16 %v625, %v624
    %v637 = vpack.c.bf16 %v627, %v626
    %v638 = vpack.c.bf16 %v629, %v628
    %v639 = vpack.c.bf16 %v631, %v630
    %v640 = vld [vmem:[%s8] sm:$0xf]
    %v641 = vld [vmem:[%s8 + $0x4] sm:$0xf]
    %v642 = vld [vmem:[%s8 + $0x8] sm:$0xf]
    %v643 = vld [vmem:[%s8 + $0xc] sm:$0xf]
    %v644 = vld [vmem:[%s9] sm:$0x1]
    %v646 = vlaneseq
    %v647 = vshrl.u32 %v646, 7
    %v648 = vsub.s32 0, %v647
    %v649 = vrot.slane %v644, %v648
    %v655 = vunpack.c.l.b16 %v640
    %v656 = vunpack.c.l.b16 %v641
    %v657 = vunpack.c.l.b16 %v642
    %v658 = vunpack.c.l.b16 %v643
    %v659 = vpack.c.b16 %v656, %v655
    %v660 = vpack.c.b16 %v658, %v657
    %vm663 = vcmask 261120
    %v665 = vsel %vm663, %v632, 0
    %v668 = vsel %vm663, %v633, 0
    %v671 = vsel %vm663, %v634, 0
    %v674 = vsel %vm663, %v635, 0
    %v677 = vsel %vm663, %v636, 0
    %v680 = vsel %vm663, %v637, 0
    %v683 = vsel %vm663, %v638, 0
    %v686 = vsel %vm663, %v639, 0
    %688 = vmatprep.subr.bf16.mxu0 0
    %689 = vmatpush1.bf16.msra.mxu0 %v659
    %690 = vmatprep.subr.bf16.mxu0 0
    %691 = vmatpush1.bf16.msra.mxu0 %v660
    %692 = vmatprep.subr.bf16.mxu0 0
    %693 = vmatpush1.bf16.msra.mxu0 0
    %694 = vmatprep.subr.bf16.mxu0 0
    %695 = vmatpush1.bf16.msra.mxu0 0
    %696 = vmatprep.subr.bf16.mxu0 0
    %697 = vmatpush1.bf16.msra.mxu0 0
    %698 = vmatprep.subr.bf16.mxu0 0
    %699 = vmatpush1.bf16.msra.mxu0 0
    %700 = vmatprep.subr.bf16.mxu0 0
    %701 = vmatpush1.bf16.msra.mxu0 0
    %702 = vmatprep.subr.bf16.mxu0 0
    %703 = vmatpush1.bf16.msra.mxu0 0
    %704 = vmatprep.subr.bf16.mxu0 0
    %705 = vmatpush1.bf16.msra.mxu0 0
    %706 = vmatprep.subr.bf16.mxu0 0
    %707 = vmatpush1.bf16.msra.mxu0 0
    %708 = vmatprep.subr.bf16.mxu0 0
    %709 = vmatpush1.bf16.msra.mxu0 0
    %710 = vmatprep.subr.bf16.mxu0 0
    %711 = vmatpush1.bf16.msra.mxu0 0
    %712 = vmatprep.subr.bf16.mxu0 0
    %713 = vmatpush1.bf16.msra.mxu0 0
    %714 = vmatprep.subr.bf16.mxu0 0
    %715 = vmatpush1.bf16.msra.mxu0 0
    %716 = vmatprep.subr.bf16.mxu0 0
    %717 = vmatpush1.bf16.msra.mxu0 0
    %718 = vmatprep.subr.bf16.mxu0 0
    %719 = vmatpush1.bf16.msra.mxu0 0
    %720 = vmatprep.mubr.bf16.mxu0 0
    %721 = vmatmul.mubr.bf16.gmra.mrb[0].mxu0 %v665
    %v722 = vpop.f32.mrb[0].mxu0
    %v723 = vadd.f32 %v649, %v722
    %v724 = vpop.f32.mrb[0].mxu0
    %v725 = vpop.f32.mrb[0].mxu0
    %v726 = vadd.f32 %v649, %v725
    %v727 = vpop.f32.mrb[0].mxu0
    %728 = vmatprep.mubr.bf16.mxu0 0
    %729 = vmatmul.mubr.bf16.gmra.mrb[0].mxu0 %v668
    %v730 = vpop.f32.mrb[0].mxu0
    %v731 = vadd.f32 %v649, %v730
    %v732 = vpop.f32.mrb[0].mxu0
    %v733 = vpop.f32.mrb[0].mxu0
    %v734 = vadd.f32 %v649, %v733
    %v735 = vpop.f32.mrb[0].mxu0
    %736 = vmatprep.mubr.bf16.mxu0 0
    %737 = vmatmul.mubr.bf16.gmra.mrb[0].mxu0 %v671
    %v738 = vpop.f32.mrb[0].mxu0
    %v739 = vadd.f32 %v649, %v738
    %v740 = vpop.f32.mrb[0].mxu0
    %v741 = vpop.f32.mrb[0].mxu0
    %v742 = vadd.f32 %v649, %v741
    %v743 = vpop.f32.mrb[0].mxu0
    %744 = vmatprep.mubr.bf16.mxu0 0
    %745 = vmatmul.mubr.bf16.gmra.mrb[0].mxu0 %v674
    %v746 = vpop.f32.mrb[0].mxu0
    %v747 = vadd.f32 %v649, %v746
    %v748 = vpop.f32.mrb[0].mxu0
    %v749 = vpop.f32.mrb[0].mxu0
    %v750 = vadd.f32 %v649, %v749
    %v751 = vpop.f32.mrb[0].mxu0
    %752 = vmatprep.mubr.bf16.mxu0 0
    %753 = vmatmul.mubr.bf16.gmra.mrb[0].mxu0 %v677
    %v754 = vpop.f32.mrb[0].mxu0
    %v755 = vadd.f32 %v649, %v754
    %v756 = vpop.f32.mrb[0].mxu0
    %v757 = vpop.f32.mrb[0].mxu0
    %v758 = vadd.f32 %v649, %v757
    %v759 = vpop.f32.mrb[0].mxu0
    %760 = vmatprep.mubr.bf16.mxu0 0
    %761 = vmatmul.mubr.bf16.gmra.mrb[0].mxu0 %v680
    %v762 = vpop.f32.mrb[0].mxu0
    %v763 = vadd.f32 %v649, %v762
    %v764 = vpop.f32.mrb[0].mxu0
    %v765 = vpop.f32.mrb[0].mxu0
    %v766 = vadd.f32 %v649, %v765
    %v767 = vpop.f32.mrb[0].mxu0
    %768 = vmatprep.mubr.bf16.mxu0 0
    %769 = vmatmul.mubr.bf16.gmra.mrb[0].mxu0 %v683
    %v770 = vpop.f32.mrb[0].mxu0
    %v771 = vadd.f32 %v649, %v770
    %v772 = vpop.f32.mrb[0].mxu0
    %v773 = vpop.f32.mrb[0].mxu0
    %v774 = vadd.f32 %v649, %v773
    %v775 = vpop.f32.mrb[0].mxu0
    %776 = vmatprep.mubr.bf16.mxu0 0
    %777 = vmatmul.mubr.bf16.gmra.mrb[0].mxu0 %v686
    %v778 = vpop.f32.mrb[0].mxu0
    %v779 = vadd.f32 %v649, %v778
    %v780 = vpop.f32.mrb[0].mxu0
    %v781 = vpop.f32.mrb[0].mxu0
    %v782 = vadd.f32 %v649, %v781
    %v783 = vpop.f32.mrb[0].mxu0
    %784 = vdwg.mxu0
    %v785 = vmul.f32 %v723, 0.1
    %v786 = vmul.f32 %v726, 0.1
    %v787 = vmul.f32 %v731, 0.1
    %v788 = vmul.f32 %v734, 0.1
    %v789 = vmul.f32 %v739, 0.1
    %v790 = vmul.f32 %v742, 0.1
    %v791 = vmul.f32 %v747, 0.1
    %v792 = vmul.f32 %v750, 0.1
    %v793 = vmul.f32 %v755, 0.1
    %v794 = vmul.f32 %v758, 0.1
    %v795 = vmul.f32 %v763, 0.1
    %v796 = vmul.f32 %v766, 0.1
    %v797 = vmul.f32 %v771, 0.1
    %v798 = vmul.f32 %v774, 0.1
    %v799 = vmul.f32 %v779, 0.1
    %v800 = vmul.f32 %v782, 0.1
    %v801 = vtanh.pop %v785
    %v802 = vtanh.pop %v786
    %v803 = vtanh.pop %v787
    %v804 = vtanh.pop %v788
    %v805 = vtanh.pop %v789
    %v806 = vtanh.pop %v790
    %v807 = vtanh.pop %v791
    %v808 = vtanh.pop %v792
    %v809 = vtanh.pop %v793
    %v810 = vtanh.pop %v794
    %v811 = vtanh.pop %v795
    %v812 = vtanh.pop %v796
    %v813 = vtanh.pop %v797
    %v814 = vtanh.pop %v798
    %v815 = vtanh.pop %v799
    %v816 = vtanh.pop %v800
    %v817 = vmul.f32 %v801, 1.9
    %v818 = vmul.f32 %v802, 1.9
    %v819 = vmul.f32 %v803, 1.9
    %v820 = vmul.f32 %v804, 1.9
    %v821 = vmul.f32 %v805, 1.9
    %v822 = vmul.f32 %v806, 1.9
    %v823 = vmul.f32 %v807, 1.9
    %v824 = vmul.f32 %v808, 1.9
    %v825 = vmul.f32 %v809, 1.9
    %v826 = vmul.f32 %v810, 1.9
    %v827 = vmul.f32 %v811, 1.9
    %v828 = vmul.f32 %v812, 1.9
    %v829 = vmul.f32 %v813, 1.9
    %v830 = vmul.f32 %v814, 1.9
    %v831 = vmul.f32 %v815, 1.9
    %v832 = vmul.f32 %v816, 1.9
    %v833 = vmul.f32 %v817, 1.442695
    %v834 = vpow.pop %v833
    %v835 = vmul.f32 %v818, 1.442695
    %v836 = vpow.pop %v835
    %v837 = vmul.f32 %v819, 1.442695
    %v838 = vpow.pop %v837
    %v839 = vmul.f32 %v820, 1.442695
    %v840 = vpow.pop %v839
    %v841 = vmul.f32 %v821, 1.442695
    %v842 = vpow.pop %v841
    %v843 = vmul.f32 %v822, 1.442695
    %v844 = vpow.pop %v843
    %v845 = vmul.f32 %v823, 1.442695
    %v846 = vpow.pop %v845
    %v847 = vmul.f32 %v824, 1.442695
    %v848 = vpow.pop %v847
    %v849 = vmul.f32 %v825, 1.442695
    %v850 = vpow.pop %v849
    %v851 = vmul.f32 %v826, 1.442695
    %v852 = vpow.pop %v851
    %v853 = vmul.f32 %v827, 1.442695
    %v854 = vpow.pop %v853
    %v855 = vmul.f32 %v828, 1.442695
    %v856 = vpow.pop %v855
    %v857 = vmul.f32 %v829, 1.442695
    %v858 = vpow.pop %v857
    %v859 = vmul.f32 %v830, 1.442695
    %v860 = vpow.pop %v859
    %v861 = vmul.f32 %v831, 1.442695
    %v862 = vpow.pop %v861
    %v863 = vmul.f32 %v832, 1.442695
    %v864 = vpow.pop %v863
    %881 = vrot.lane.b32.xlu0 %v834, 8
    %v882 = vpop.permute.xlu0 %881
    %883 = vrot.lane.b32.xlu0 %v836, 8
    %v884 = vpop.permute.xlu0 %883
    %885 = vrot.lane.b32.xlu0 %v838, 8
    %v886 = vpop.permute.xlu0 %885
    %887 = vrot.lane.b32.xlu0 %v840, 8
    %v888 = vpop.permute.xlu0 %887
    %889 = vrot.lane.b32.xlu0 %v842, 8
    %v890 = vpop.permute.xlu0 %889
    %891 = vrot.lane.b32.xlu0 %v844, 8
    %v892 = vpop.permute.xlu0 %891
    %893 = vrot.lane.b32.xlu0 %v846, 8
    %v894 = vpop.permute.xlu0 %893
    %895 = vrot.lane.b32.xlu0 %v848, 8
    %v896 = vpop.permute.xlu0 %895
    %897 = vrot.lane.b32.xlu0 %v850, 8
    %v898 = vpop.permute.xlu0 %897
    %899 = vrot.lane.b32.xlu0 %v852, 8
    %v900 = vpop.permute.xlu0 %899
    %901 = vrot.lane.b32.xlu0 %v854, 8
    %v902 = vpop.permute.xlu0 %901
    %903 = vrot.lane.b32.xlu0 %v856, 8
    %v904 = vpop.permute.xlu0 %903
    %905 = vrot.lane.b32.xlu0 %v858, 8
    %v906 = vpop.permute.xlu0 %905
    %907 = vrot.lane.b32.xlu0 %v860, 8
    %v908 = vpop.permute.xlu0 %907
    %909 = vrot.lane.b32.xlu0 %v862, 8
    %v910 = vpop.permute.xlu0 %909
    %911 = vrot.lane.b32.xlu0 %v864, 8
    %v912 = vpop.permute.xlu0 %911
    %v929 = vmul.f32 %v261, %v882
    %v930 = vmul.f32 %v262, %v884
    %v931 = vmul.f32 %v263, %v886
    %v932 = vmul.f32 %v264, %v888
    %v933 = vmul.f32 %v265, %v890
    %v934 = vmul.f32 %v266, %v892
    %v935 = vmul.f32 %v267, %v894
    %v936 = vmul.f32 %v268, %v896
    %v937 = vmul.f32 %v269, %v898
    %v938 = vmul.f32 %v270, %v900
    %v939 = vmul.f32 %v271, %v902
    %v940 = vmul.f32 %v272, %v904
    %v941 = vmul.f32 %v273, %v906
    %v942 = vmul.f32 %v274, %v908
    %v943 = vmul.f32 %v275, %v910
    %v944 = vmul.f32 %v276, %v912
    %v945 = vadd.f32 %v929, %v785
    %v946 = vadd.f32 %v930, %v786
    %v947 = vadd.f32 %v931, %v787
    %v948 = vadd.f32 %v932, %v788
    %v949 = vadd.f32 %v933, %v789
    %v950 = vadd.f32 %v934, %v790
    %v951 = vadd.f32 %v935, %v791
    %v952 = vadd.f32 %v936, %v792
    %v953 = vadd.f32 %v937, %v793
    %v954 = vadd.f32 %v938, %v794
    %v955 = vadd.f32 %v939, %v795
    %v956 = vadd.f32 %v940, %v796
    %v957 = vadd.f32 %v941, %v797
    %v958 = vadd.f32 %v942, %v798
    %v959 = vadd.f32 %v943, %v799
    %v960 = vadd.f32 %v944, %v800
    %v961 = vsel %vm343, %v817, 0.0
    %962 = vadd.xlane.f32.xlu0 %v961
    %v963 = vpop.xlane.xlu0 %962
    %v964 = vsel %vm343, %v818, 0.0
    %965 = vadd.xlane.f32.xlu0 %v964
    %v966 = vpop.xlane.xlu0 %965
    %v967 = vsel %vm343, %v819, 0.0
    %968 = vadd.xlane.f32.xlu0 %v967
    %v969 = vpop.xlane.xlu0 %968
    %v970 = vsel %vm343, %v820, 0.0
    %971 = vadd.xlane.f32.xlu0 %v970
    %v972 = vpop.xlane.xlu0 %971
    %v973 = vsel %vm343, %v821, 0.0
    %974 = vadd.xlane.f32.xlu0 %v973
    %v975 = vpop.xlane.xlu0 %974
    %v976 = vsel %vm343, %v822, 0.0
    %977 = vadd.xlane.f32.xlu0 %v976
    %v978 = vpop.xlane.xlu0 %977
    %v979 = vsel %vm343, %v823, 0.0
    %980 = vadd.xlane.f32.xlu0 %v979
    %v981 = vpop.xlane.xlu0 %980
    %v982 = vsel %vm343, %v824, 0.0
    %983 = vadd.xlane.f32.xlu0 %v982
    %v984 = vpop.xlane.xlu0 %983
    %v985 = vsel %vm343, %v825, 0.0
    %986 = vadd.xlane.f32.xlu0 %v985
    %v987 = vpop.xlane.xlu0 %986
    %v988 = vsel %vm343, %v826, 0.0
    %989 = vadd.xlane.f32.xlu0 %v988
    %v990 = vpop.xlane.xlu0 %989
    %v991 = vsel %vm343, %v827, 0.0
    %992 = vadd.xlane.f32.xlu0 %v991
    %v993 = vpop.xlane.xlu0 %992
    %v994 = vsel %vm343, %v828, 0.0
    %995 = vadd.xlane.f32.xlu0 %v994
    %v996 = vpop.xlane.xlu0 %995
    %v997 = vsel %vm343, %v829, 0.0
    %998 = vadd.xlane.f32.xlu0 %v997
    %v999 = vpop.xlane.xlu0 %998
    %v1000 = vsel %vm343, %v830, 0.0
    %1001 = vadd.xlane.f32.xlu0 %v1000
    %v1002 = vpop.xlane.xlu0 %1001
    %v1003 = vsel %vm343, %v831, 0.0
    %1004 = vadd.xlane.f32.xlu0 %v1003
    %v1005 = vpop.xlane.xlu0 %1004
    %v1006 = vsel %vm343, %v832, 0.0
    %1007 = vadd.xlane.f32.xlu0 %v1006
    %v1008 = vpop.xlane.xlu0 %1007
    %v1009 = vadd.f32 %v963, 0.0
    %v1010 = vadd.f32 %v966, 0.0
    %v1011 = vadd.f32 %v969, 0.0
    %v1012 = vadd.f32 %v972, 0.0
    %v1013 = vadd.f32 %v975, 0.0
    %v1014 = vadd.f32 %v978, 0.0
    %v1015 = vadd.f32 %v981, 0.0
    %v1016 = vadd.f32 %v984, 0.0
    %v1017 = vadd.f32 %v987, 0.0
    %v1018 = vadd.f32 %v990, 0.0
    %v1019 = vadd.f32 %v993, 0.0
    %v1020 = vadd.f32 %v996, 0.0
    %v1021 = vadd.f32 %v999, 0.0
    %v1022 = vadd.f32 %v1002, 0.0
    %v1023 = vadd.f32 %v1005, 0.0
    %v1024 = vadd.f32 %v1008, 0.0
    %v1025 = vld [vmem:[%s10] sm:$0xf]
    %v1026 = vpack.c.bf16 %v946, %v945
    %v1027 = vpack.c.bf16 %v948, %v947
    %v1028 = vpack.c.bf16 %v950, %v949
    %v1029 = vpack.c.bf16 %v952, %v951
    %v1030 = vpack.c.bf16 %v954, %v953
    %v1031 = vpack.c.bf16 %v956, %v955
    %v1032 = vpack.c.bf16 %v958, %v957
    %v1033 = vpack.c.bf16 %v960, %v959
    %v1034 = vld [vmem:[%s11] sm:$0xf]
    %1043 = vrot.lane.b32.xlu0 %v1026, 120
    %v1044 = vpop.permute.xlu0 %1043
    %1045 = vrot.lane.b32.xlu0 %v1027, 120
    %v1046 = vpop.permute.xlu0 %1045
    %1047 = vrot.lane.b32.xlu0 %v1028, 120
    %v1048 = vpop.permute.xlu0 %1047
    %1049 = vrot.lane.b32.xlu0 %v1029, 120
    %v1050 = vpop.permute.xlu0 %1049
    %1051 = vrot.lane.b32.xlu0 %v1030, 120
    %v1052 = vpop.permute.xlu0 %1051
    %1053 = vrot.lane.b32.xlu0 %v1031, 120
    %v1054 = vpop.permute.xlu0 %1053
    %1055 = vrot.lane.b32.xlu0 %v1032, 120
    %v1056 = vpop.permute.xlu0 %1055
    %1057 = vrot.lane.b32.xlu0 %v1033, 120
    %v1058 = vpop.permute.xlu0 %1057
    %v1060 = vsel %vm343, %v1044, 0
    %v1063 = vsel %vm343, %v1046, 0
    %v1066 = vsel %vm343, %v1048, 0
    %v1069 = vsel %vm343, %v1050, 0
    %v1072 = vsel %vm343, %v1052, 0
    %v1075 = vsel %vm343, %v1054, 0
    %v1078 = vsel %vm343, %v1056, 0
    %v1081 = vsel %vm343, %v1058, 0
    %v1084 = vsel %vm368, %v1034, 0
    %1086 = vmatprep.subr.bf16.mxu0 0
    %1087 = vmatpush1.bf16.msra.mxu0 %v1084
    %1088 = vmatprep.subr.bf16.mxu0 0
    %1089 = vmatpush1.bf16.msra.mxu0 0
    %1090 = vmatprep.subr.bf16.mxu0 0
    %1091 = vmatpush1.bf16.msra.mxu0 0
    %1092 = vmatprep.subr.bf16.mxu0 0
    %1093 = vmatpush1.bf16.msra.mxu0 0
    %1094 = vmatprep.subr.bf16.mxu0 0
    %1095 = vmatpush1.bf16.msra.mxu0 0
    %1096 = vmatprep.subr.bf16.mxu0 0
    %1097 = vmatpush1.bf16.msra.mxu0 0
    %1098 = vmatprep.subr.bf16.mxu0 0
    %1099 = vmatpush1.bf16.msra.mxu0 0
    %1100 = vmatprep.subr.bf16.mxu0 0
    %1101 = vmatpush1.bf16.msra.mxu0 0
    %1102 = vmatprep.subr.bf16.mxu0 0
    %1103 = vmatpush1.bf16.msra.mxu0 0
    %1104 = vmatprep.subr.bf16.mxu0 0
    %1105 = vmatpush1.bf16.msra.mxu0 0
    %1106 = vmatprep.subr.bf16.mxu0 0
    %1107 = vmatpush1.bf16.msra.mxu0 0
    %1108 = vmatprep.subr.bf16.mxu0 0
    %1109 = vmatpush1.bf16.msra.mxu0 0
    %1110 = vmatprep.subr.bf16.mxu0 0
    %1111 = vmatpush1.bf16.msra.mxu0 0
    %1112 = vmatprep.subr.bf16.mxu0 0
    %1113 = vmatpush1.bf16.msra.mxu0 0
    %1114 = vmatprep.subr.bf16.mxu0 0
    %1115 = vmatpush1.bf16.msra.mxu0 0
    %1116 = vmatprep.subr.bf16.mxu0 0
    %1117 = vmatpush1.bf16.msra.mxu0 0
    %1118 = vmatprep.mubr.bf16.mxu0 0
    %1119 = vmatmul.mubr.bf16.gmra.mrb[0].mxu0 %v1060
    %v1120 = vpop.f32.mrb[0].mxu0
    %v1121 = vadd.f32 0.0, %v1120
    %v1122 = vpop.f32.mrb[0].mxu0
    %v1123 = vpop.f32.mrb[0].mxu0
    %v1124 = vadd.f32 0.0, %v1123
    %v1125 = vpop.f32.mrb[0].mxu0
    %1126 = vmatprep.mubr.bf16.mxu0 0
    %1127 = vmatmul.mubr.bf16.gmra.mrb[0].mxu0 %v1063
    %v1128 = vpop.f32.mrb[0].mxu0
    %v1129 = vadd.f32 0.0, %v1128
    %v1130 = vpop.f32.mrb[0].mxu0
    %v1131 = vpop.f32.mrb[0].mxu0
    %v1132 = vadd.f32 0.0, %v1131
    %v1133 = vpop.f32.mrb[0].mxu0
    %1134 = vmatprep.mubr.bf16.mxu0 0
    %1135 = vmatmul.mubr.bf16.gmra.mrb[0].mxu0 %v1066
    %v1136 = vpop.f32.mrb[0].mxu0
    %v1137 = vadd.f32 0.0, %v1136
    %v1138 = vpop.f32.mrb[0].mxu0
    %v1139 = vpop.f32.mrb[0].mxu0
    %v1140 = vadd.f32 0.0, %v1139
    %v1141 = vpop.f32.mrb[0].mxu0
    %1142 = vmatprep.mubr.bf16.mxu0 0
    %1143 = vmatmul.mubr.bf16.gmra.mrb[0].mxu0 %v1069
    %v1144 = vpop.f32.mrb[0].mxu0
    %v1145 = vadd.f32 0.0, %v1144
    %v1146 = vpop.f32.mrb[0].mxu0
    %v1147 = vpop.f32.mrb[0].mxu0
    %v1148 = vadd.f32 0.0, %v1147
    %v1149 = vpop.f32.mrb[0].mxu0
    %1150 = vmatprep.mubr.bf16.mxu0 0
    %1151 = vmatmul.mubr.bf16.gmra.mrb[0].mxu0 %v1072
    %v1152 = vpop.f32.mrb[0].mxu0
    %v1153 = vadd.f32 0.0, %v1152
    %v1154 = vpop.f32.mrb[0].mxu0
    %v1155 = vpop.f32.mrb[0].mxu0
    %v1156 = vadd.f32 0.0, %v1155
    %v1157 = vpop.f32.mrb[0].mxu0
    %1158 = vmatprep.mubr.bf16.mxu0 0
    %1159 = vmatmul.mubr.bf16.gmra.mrb[0].mxu0 %v1075
    %v1160 = vpop.f32.mrb[0].mxu0
    %v1161 = vadd.f32 0.0, %v1160
    %v1162 = vpop.f32.mrb[0].mxu0
    %v1163 = vpop.f32.mrb[0].mxu0
    %v1164 = vadd.f32 0.0, %v1163
    %v1165 = vpop.f32.mrb[0].mxu0
    %1166 = vmatprep.mubr.bf16.mxu0 0
    %1167 = vmatmul.mubr.bf16.gmra.mrb[0].mxu0 %v1078
    %v1168 = vpop.f32.mrb[0].mxu0
    %v1169 = vadd.f32 0.0, %v1168
    %v1170 = vpop.f32.mrb[0].mxu0
    %v1171 = vpop.f32.mrb[0].mxu0
    %v1172 = vadd.f32 0.0, %v1171
    %v1173 = vpop.f32.mrb[0].mxu0
    %1174 = vmatprep.mubr.bf16.mxu0 0
    %1175 = vmatmul.mubr.bf16.gmra.mrb[0].mxu0 %v1081
    %v1176 = vpop.f32.mrb[0].mxu0
    %v1177 = vadd.f32 0.0, %v1176
    %v1178 = vpop.f32.mrb[0].mxu0
    %v1179 = vpop.f32.mrb[0].mxu0
    %v1180 = vadd.f32 0.0, %v1179
    %v1181 = vpop.f32.mrb[0].mxu0
    %1182 = vdwg.mxu0
    %v1184 = vsel %vm368, %v1025, 0
    %1186 = vmatprep.subr.bf16.mxu0 0
    %1187 = vmatpush1.bf16.msra.mxu0 %v1184
    %1188 = vmatprep.subr.bf16.mxu0 0
    %1189 = vmatpush1.bf16.msra.mxu0 0
    %1190 = vmatprep.subr.bf16.mxu0 0
    %1191 = vmatpush1.bf16.msra.mxu0 0
    %1192 = vmatprep.subr.bf16.mxu0 0
    %1193 = vmatpush1.bf16.msra.mxu0 0
    %1194 = vmatprep.subr.bf16.mxu0 0
    %1195 = vmatpush1.bf16.msra.mxu0 0
    %1196 = vmatprep.subr.bf16.mxu0 0
    %1197 = vmatpush1.bf16.msra.mxu0 0
    %1198 = vmatprep.subr.bf16.mxu0 0
    %1199 = vmatpush1.bf16.msra.mxu0 0
    %1200 = vmatprep.subr.bf16.mxu0 0
    %1201 = vmatpush1.bf16.msra.mxu0 0
    %1202 = vmatprep.subr.bf16.mxu0 0
    %1203 = vmatpush1.bf16.msra.mxu0 0
    %1204 = vmatprep.subr.bf16.mxu0 0
    %1205 = vmatpush1.bf16.msra.mxu0 0
    %1206 = vmatprep.subr.bf16.mxu0 0
    %1207 = vmatpush1.bf16.msra.mxu0 0
    %1208 = vmatprep.subr.bf16.mxu0 0
    %1209 = vmatpush1.bf16.msra.mxu0 0
    %1210 = vmatprep.subr.bf16.mxu0 0
    %1211 = vmatpush1.bf16.msra.mxu0 0
    %1212 = vmatprep.subr.bf16.mxu0 0
    %1213 = vmatpush1.bf16.msra.mxu0 0
    %1214 = vmatprep.subr.bf16.mxu0 0
    %1215 = vmatpush1.bf16.msra.mxu0 0
    %1216 = vmatprep.subr.bf16.mxu0 0
    %1217 = vmatpush1.bf16.msra.mxu0 0
    %1218 = vmatprep.mubr.bf16.mxu0 0
    %1219 = vmatmul.mubr.bf16.gmra.mrb[0].mxu0 %v470
    %v1220 = vpop.f32.mrb[0].mxu0
    %v1221 = vadd.f32 %v1121, %v1220
    %v1222 = vpop.f32.mrb[0].mxu0
    %v1223 = vpop.f32.mrb[0].mxu0
    %v1224 = vadd.f32 %v1124, %v1223
    %v1225 = vpop.f32.mrb[0].mxu0
    %1226 = vmatprep.mubr.bf16.mxu0 0
    %1227 = vmatmul.mubr.bf16.gmra.mrb[0].mxu0 %v473
    %v1228 = vpop.f32.mrb[0].mxu0
    %v1229 = vadd.f32 %v1129, %v1228
    %v1230 = vpop.f32.mrb[0].mxu0
    %v1231 = vpop.f32.mrb[0].mxu0
    %v1232 = vadd.f32 %v1132, %v1231
    %v1233 = vpop.f32.mrb[0].mxu0
    %1234 = vmatprep.mubr.bf16.mxu0 0
    %1235 = vmatmul.mubr.bf16.gmra.mrb[0].mxu0 %v476
    %v1236 = vpop.f32.mrb[0].mxu0
    %v1237 = vadd.f32 %v1137, %v1236
    %v1238 = vpop.f32.mrb[0].mxu0
    %v1239 = vpop.f32.mrb[0].mxu0
    %v1240 = vadd.f32 %v1140, %v1239
    %v1241 = vpop.f32.mrb[0].mxu0
    %1242 = vmatprep.mubr.bf16.mxu0 0
    %1243 = vmatmul.mubr.bf16.gmra.mrb[0].mxu0 %v479
    %v1244 = vpop.f32.mrb[0].mxu0
    %v1245 = vadd.f32 %v1145, %v1244
    %v1246 = vpop.f32.mrb[0].mxu0
    %v1247 = vpop.f32.mrb[0].mxu0
    %v1248 = vadd.f32 %v1148, %v1247
    %v1249 = vpop.f32.mrb[0].mxu0
    %1250 = vmatprep.mubr.bf16.mxu0 0
    %1251 = vmatmul.mubr.bf16.gmra.mrb[0].mxu0 %v482
    %v1252 = vpop.f32.mrb[0].mxu0
    %v1253 = vadd.f32 %v1153, %v1252
    %v1254 = vpop.f32.mrb[0].mxu0
    %v1255 = vpop.f32.mrb[0].mxu0
    %v1256 = vadd.f32 %v1156, %v1255
    %v1257 = vpop.f32.mrb[0].mxu0
    %1258 = vmatprep.mubr.bf16.mxu0 0
    %1259 = vmatmul.mubr.bf16.gmra.mrb[0].mxu0 %v485
    %v1260 = vpop.f32.mrb[0].mxu0
    %v1261 = vadd.f32 %v1161, %v1260
    %v1262 = vpop.f32.mrb[0].mxu0
    %v1263 = vpop.f32.mrb[0].mxu0
    %v1264 = vadd.f32 %v1164, %v1263
    %v1265 = vpop.f32.mrb[0].mxu0
    %1266 = vmatprep.mubr.bf16.mxu0 0
    %1267 = vmatmul.mubr.bf16.gmra.mrb[0].mxu0 %v488
    %v1268 = vpop.f32.mrb[0].mxu0
    %v1269 = vadd.f32 %v1169, %v1268
    %v1270 = vpop.f32.mrb[0].mxu0
    %v1271 = vpop.f32.mrb[0].mxu0
    %v1272 = vadd.f32 %v1172, %v1271
    %v1273 = vpop.f32.mrb[0].mxu0
    %1274 = vmatprep.mubr.bf16.mxu0 0
    %1275 = vmatmul.mubr.bf16.gmra.mrb[0].mxu0 %v491
    %v1276 = vpop.f32.mrb[0].mxu0
    %v1277 = vadd.f32 %v1177, %v1276
    %v1278 = vpop.f32.mrb[0].mxu0
    %v1279 = vpop.f32.mrb[0].mxu0
    %v1280 = vadd.f32 %v1180, %v1279
    %v1281 = vpop.f32.mrb[0].mxu0
    %1282 = vdwg.mxu0
    %v1283 = vld [vmem:[%s12] sm:$0x1]
    %v1285 = vlaneseq
    %v1286 = vshrl.u32 %v1285, 7
    %v1287 = vsub.s32 0, %v1286
    %v1288 = vrot.slane %v1283, %v1287
    %v1290 = vadd.f32 %v1221, %v1288
    %v1291 = vadd.f32 %v1224, %v1288
    %v1292 = vadd.f32 %v1229, %v1288
    %v1293 = vadd.f32 %v1232, %v1288
    %v1294 = vadd.f32 %v1237, %v1288
    %v1295 = vadd.f32 %v1240, %v1288
    %v1296 = vadd.f32 %v1245, %v1288
    %v1297 = vadd.f32 %v1248, %v1288
    %v1298 = vadd.f32 %v1253, %v1288
    %v1299 = vadd.f32 %v1256, %v1288
    %v1300 = vadd.f32 %v1261, %v1288
    %v1301 = vadd.f32 %v1264, %v1288
    %v1302 = vadd.f32 %v1269, %v1288
    %v1303 = vadd.f32 %v1272, %v1288
    %v1304 = vadd.f32 %v1277, %v1288
    %v1305 = vadd.f32 %v1280, %v1288
    %v1306 = vpack.c.bf16 %v1291, %v1290
    %v1307 = vpack.c.bf16 %v1293, %v1292
    %v1308 = vpack.c.bf16 %v1295, %v1294
    %v1309 = vpack.c.bf16 %v1297, %v1296
    %v1310 = vpack.c.bf16 %v1299, %v1298
    %v1311 = vpack.c.bf16 %v1301, %v1300
    %v1312 = vpack.c.bf16 %v1303, %v1302
    %v1313 = vpack.c.bf16 %v1305, %v1304
    %v1314 = vld [vmem:[%s13] sm:$0xf]
    %v1315 = vld [vmem:[%s14] sm:$0xf]
    %v1317 = vsel %vm368, %v1315, 0
    %1319 = vmatprep.subr.bf16.mxu0 0
    %1320 = vmatpush1.bf16.msra.mxu0 %v1317
    %1321 = vmatprep.subr.bf16.mxu0 0
    %1322 = vmatpush1.bf16.msra.mxu0 0
    %1323 = vmatprep.subr.bf16.mxu0 0
    %1324 = vmatpush1.bf16.msra.mxu0 0
    %1325 = vmatprep.subr.bf16.mxu0 0
    %1326 = vmatpush1.bf16.msra.mxu0 0
    %1327 = vmatprep.subr.bf16.mxu0 0
    %1328 = vmatpush1.bf16.msra.mxu0 0
    %1329 = vmatprep.subr.bf16.mxu0 0
    %1330 = vmatpush1.bf16.msra.mxu0 0
    %1331 = vmatprep.subr.bf16.mxu0 0
    %1332 = vmatpush1.bf16.msra.mxu0 0
    %1333 = vmatprep.subr.bf16.mxu0 0
    %1334 = vmatpush1.bf16.msra.mxu0 0
    %1335 = vmatprep.subr.bf16.mxu0 0
    %1336 = vmatpush1.bf16.msra.mxu0 0
    %1337 = vmatprep.subr.bf16.mxu0 0
    %1338 = vmatpush1.bf16.msra.mxu0 0
    %1339 = vmatprep.subr.bf16.mxu0 0
    %1340 = vmatpush1.bf16.msra.mxu0 0
    %1341 = vmatprep.subr.bf16.mxu0 0
    %1342 = vmatpush1.bf16.msra.mxu0 0
    %1343 = vmatprep.subr.bf16.mxu0 0
    %1344 = vmatpush1.bf16.msra.mxu0 0
    %1345 = vmatprep.subr.bf16.mxu0 0
    %1346 = vmatpush1.bf16.msra.mxu0 0
    %1347 = vmatprep.subr.bf16.mxu0 0
    %1348 = vmatpush1.bf16.msra.mxu0 0
    %1349 = vmatprep.subr.bf16.mxu0 0
    %1350 = vmatpush1.bf16.msra.mxu0 0
    %1351 = vmatprep.mubr.bf16.mxu0 0
    %1352 = vmatmul.mubr.bf16.gmra.mrb[0].mxu0 %v345
    %v1353 = vpop.f32.mrb[0].mxu0
    %v1354 = vadd.f32 0.0, %v1353
    %v1355 = vpop.f32.mrb[0].mxu0
    %v1356 = vpop.f32.mrb[0].mxu0
    %v1357 = vadd.f32 0.0, %v1356
    %v1358 = vpop.f32.mrb[0].mxu0
    %1359 = vmatprep.mubr.bf16.mxu0 0
    %1360 = vmatmul.mubr.bf16.gmra.mrb[0].mxu0 %v348
    %v1361 = vpop.f32.mrb[0].mxu0
    %v1362 = vadd.f32 0.0, %v1361
    %v1363 = vpop.f32.mrb[0].mxu0
    %v1364 = vpop.f32.mrb[0].mxu0
    %v1365 = vadd.f32 0.0, %v1364
    %v1366 = vpop.f32.mrb[0].mxu0
    %1367 = vmatprep.mubr.bf16.mxu0 0
    %1368 = vmatmul.mubr.bf16.gmra.mrb[0].mxu0 %v351
    %v1369 = vpop.f32.mrb[0].mxu0
    %v1370 = vadd.f32 0.0, %v1369
    %v1371 = vpop.f32.mrb[0].mxu0
    %v1372 = vpop.f32.mrb[0].mxu0
    %v1373 = vadd.f32 0.0, %v1372
    %v1374 = vpop.f32.mrb[0].mxu0
    %1375 = vmatprep.mubr.bf16.mxu0 0
    %1376 = vmatmul.mubr.bf16.gmra.mrb[0].mxu0 %v354
    %v1377 = vpop.f32.mrb[0].mxu0
    %v1378 = vadd.f32 0.0, %v1377
    %v1379 = vpop.f32.mrb[0].mxu0
    %v1380 = vpop.f32.mrb[0].mxu0
    %v1381 = vadd.f32 0.0, %v1380
    %v1382 = vpop.f32.mrb[0].mxu0
    %1383 = vmatprep.mubr.bf16.mxu0 0
    %1384 = vmatmul.mubr.bf16.gmra.mrb[0].mxu0 %v357
    %v1385 = vpop.f32.mrb[0].mxu0
    %v1386 = vadd.f32 0.0, %v1385
    %v1387 = vpop.f32.mrb[0].mxu0
    %v1388 = vpop.f32.mrb[0].mxu0
    %v1389 = vadd.f32 0.0, %v1388
    %v1390 = vpop.f32.mrb[0].mxu0
    %1391 = vmatprep.mubr.bf16.mxu0 0
    %1392 = vmatmul.mubr.bf16.gmra.mrb[0].mxu0 %v360
    %v1393 = vpop.f32.mrb[0].mxu0
    %v1394 = vadd.f32 0.0, %v1393
    %v1395 = vpop.f32.mrb[0].mxu0
    %v1396 = vpop.f32.mrb[0].mxu0
    %v1397 = vadd.f32 0.0, %v1396
    %v1398 = vpop.f32.mrb[0].mxu0
    %1399 = vmatprep.mubr.bf16.mxu0 0
    %1400 = vmatmul.mubr.bf16.gmra.mrb[0].mxu0 %v363
    %v1401 = vpop.f32.mrb[0].mxu0
    %v1402 = vadd.f32 0.0, %v1401
    %v1403 = vpop.f32.mrb[0].mxu0
    %v1404 = vpop.f32.mrb[0].mxu0
    %v1405 = vadd.f32 0.0, %v1404
    %v1406 = vpop.f32.mrb[0].mxu0
    %1407 = vmatprep.mubr.bf16.mxu0 0
    %1408 = vmatmul.mubr.bf16.gmra.mrb[0].mxu0 %v366
    %v1409 = vpop.f32.mrb[0].mxu0
    %v1410 = vadd.f32 0.0, %v1409
    %v1411 = vpop.f32.mrb[0].mxu0
    %v1412 = vpop.f32.mrb[0].mxu0
    %v1413 = vadd.f32 0.0, %v1412
    %v1414 = vpop.f32.mrb[0].mxu0
    %1415 = vdwg.mxu0
    %v1417 = vsel %vm343, %v1306, 0
    %v1420 = vsel %vm343, %v1307, 0
    %v1423 = vsel %vm343, %v1308, 0
    %v1426 = vsel %vm343, %v1309, 0
    %v1429 = vsel %vm343, %v1310, 0
    %v1432 = vsel %vm343, %v1311, 0
    %v1435 = vsel %vm343, %v1312, 0
    %v1438 = vsel %vm343, %v1313, 0
    %v1441 = vsel %vm368, %v1314, 0
    %1443 = vmatprep.subr.bf16.mxu0 0
    %1444 = vmatpush1.bf16.msra.mxu0 %v1441
    %1445 = vmatprep.subr.bf16.mxu0 0
    %1446 = vmatpush1.bf16.msra.mxu0 0
    %1447 = vmatprep.subr.bf16.mxu0 0
    %1448 = vmatpush1.bf16.msra.mxu0 0
    %1449 = vmatprep.subr.bf16.mxu0 0
    %1450 = vmatpush1.bf16.msra.mxu0 0
    %1451 = vmatprep.subr.bf16.mxu0 0
    %1452 = vmatpush1.bf16.msra.mxu0 0
    %1453 = vmatprep.subr.bf16.mxu0 0
    %1454 = vmatpush1.bf16.msra.mxu0 0
    %1455 = vmatprep.subr.bf16.mxu0 0
    %1456 = vmatpush1.bf16.msra.mxu0 0
    %1457 = vmatprep.subr.bf16.mxu0 0
    %1458 = vmatpush1.bf16.msra.mxu0 0
    %1459 = vmatprep.subr.bf16.mxu0 0
    %1460 = vmatpush1.bf16.msra.mxu0 0
    %1461 = vmatprep.subr.bf16.mxu0 0
    %1462 = vmatpush1.bf16.msra.mxu0 0
    %1463 = vmatprep.subr.bf16.mxu0 0
    %1464 = vmatpush1.bf16.msra.mxu0 0
    %1465 = vmatprep.subr.bf16.mxu0 0
    %1466 = vmatpush1.bf16.msra.mxu0 0
    %1467 = vmatprep.subr.bf16.mxu0 0
    %1468 = vmatpush1.bf16.msra.mxu0 0
    %1469 = vmatprep.subr.bf16.mxu0 0
    %1470 = vmatpush1.bf16.msra.mxu0 0
    %1471 = vmatprep.subr.bf16.mxu0 0
    %1472 = vmatpush1.bf16.msra.mxu0 0
    %1473 = vmatprep.subr.bf16.mxu0 0
    %1474 = vmatpush1.bf16.msra.mxu0 0
    %1475 = vmatprep.mubr.bf16.mxu0 0
    %1476 = vmatmul.mubr.bf16.gmra.mrb[0].mxu0 %v1417
    %v1477 = vpop.f32.mrb[0].mxu0
    %v1478 = vadd.f32 %v1354, %v1477
    %v1479 = vpop.f32.mrb[0].mxu0
    %v1480 = vpop.f32.mrb[0].mxu0
    %v1481 = vadd.f32 %v1357, %v1480
    %v1482 = vpop.f32.mrb[0].mxu0
    %1483 = vmatprep.mubr.bf16.mxu0 0
    %1484 = vmatmul.mubr.bf16.gmra.mrb[0].mxu0 %v1420
    %v1485 = vpop.f32.mrb[0].mxu0
    %v1486 = vadd.f32 %v1362, %v1485
    %v1487 = vpop.f32.mrb[0].mxu0
    %v1488 = vpop.f32.mrb[0].mxu0
    %v1489 = vadd.f32 %v1365, %v1488
    %v1490 = vpop.f32.mrb[0].mxu0
    %1491 = vmatprep.mubr.bf16.mxu0 0
    %1492 = vmatmul.mubr.bf16.gmra.mrb[0].mxu0 %v1423
    %v1493 = vpop.f32.mrb[0].mxu0
    %v1494 = vadd.f32 %v1370, %v1493
    %v1495 = vpop.f32.mrb[0].mxu0
    %v1496 = vpop.f32.mrb[0].mxu0
    %v1497 = vadd.f32 %v1373, %v1496
    %v1498 = vpop.f32.mrb[0].mxu0
    %1499 = vmatprep.mubr.bf16.mxu0 0
    %1500 = vmatmul.mubr.bf16.gmra.mrb[0].mxu0 %v1426
    %v1501 = vpop.f32.mrb[0].mxu0
    %v1502 = vadd.f32 %v1378, %v1501
    %v1503 = vpop.f32.mrb[0].mxu0
    %v1504 = vpop.f32.mrb[0].mxu0
    %v1505 = vadd.f32 %v1381, %v1504
    %v1506 = vpop.f32.mrb[0].mxu0
    %1507 = vmatprep.mubr.bf16.mxu0 0
    %1508 = vmatmul.mubr.bf16.gmra.mrb[0].mxu0 %v1429
    %v1509 = vpop.f32.mrb[0].mxu0
    %v1510 = vadd.f32 %v1386, %v1509
    %v1511 = vpop.f32.mrb[0].mxu0
    %v1512 = vpop.f32.mrb[0].mxu0
    %v1513 = vadd.f32 %v1389, %v1512
    %v1514 = vpop.f32.mrb[0].mxu0
    %1515 = vmatprep.mubr.bf16.mxu0 0
    %1516 = vmatmul.mubr.bf16.gmra.mrb[0].mxu0 %v1432
    %v1517 = vpop.f32.mrb[0].mxu0
    %v1518 = vadd.f32 %v1394, %v1517
    %v1519 = vpop.f32.mrb[0].mxu0
    %v1520 = vpop.f32.mrb[0].mxu0
    %v1521 = vadd.f32 %v1397, %v1520
    %v1522 = vpop.f32.mrb[0].mxu0
    %1523 = vmatprep.mubr.bf16.mxu0 0
    %1524 = vmatmul.mubr.bf16.gmra.mrb[0].mxu0 %v1435
    %v1525 = vpop.f32.mrb[0].mxu0
    %v1526 = vadd.f32 %v1402, %v1525
    %v1527 = vpop.f32.mrb[0].mxu0
    %v1528 = vpop.f32.mrb[0].mxu0
    %v1529 = vadd.f32 %v1405, %v1528
    %v1530 = vpop.f32.mrb[0].mxu0
    %1531 = vmatprep.mubr.bf16.mxu0 0
    %1532 = vmatmul.mubr.bf16.gmra.mrb[0].mxu0 %v1438
    %v1533 = vpop.f32.mrb[0].mxu0
    %v1534 = vadd.f32 %v1410, %v1533
    %v1535 = vpop.f32.mrb[0].mxu0
    %v1536 = vpop.f32.mrb[0].mxu0
    %v1537 = vadd.f32 %v1413, %v1536
    %v1538 = vpop.f32.mrb[0].mxu0
    %1539 = vdwg.mxu0
    %v1540 = vld [vmem:[%s15] sm:$0x1]
    %v1542 = vlaneseq
    %v1543 = vshrl.u32 %v1542, 7
    %v1544 = vsub.s32 0, %v1543
    %v1545 = vrot.slane %v1540, %v1544
    %v1547 = vadd.f32 %v1478, %v1545
    %v1548 = vadd.f32 %v1481, %v1545
    %v1549 = vadd.f32 %v1486, %v1545
    %v1550 = vadd.f32 %v1489, %v1545
    %v1551 = vadd.f32 %v1494, %v1545
    %v1552 = vadd.f32 %v1497, %v1545
    %v1553 = vadd.f32 %v1502, %v1545
    %v1554 = vadd.f32 %v1505, %v1545
    %v1555 = vadd.f32 %v1510, %v1545
    %v1556 = vadd.f32 %v1513, %v1545
    %v1557 = vadd.f32 %v1518, %v1545
    %v1558 = vadd.f32 %v1521, %v1545
    %v1559 = vadd.f32 %v1526, %v1545
    %v1560 = vadd.f32 %v1529, %v1545
    %v1561 = vadd.f32 %v1534, %v1545
    %v1562 = vadd.f32 %v1537, %v1545
    %v1563 = vmax.f32 %v1547, 0.0
    %v1564 = vmax.f32 %v1548, 0.0
    %v1565 = vmax.f32 %v1549, 0.0
    %v1566 = vmax.f32 %v1550, 0.0
    %v1567 = vmax.f32 %v1551, 0.0
    %v1568 = vmax.f32 %v1552, 0.0
    %v1569 = vmax.f32 %v1553, 0.0
    %v1570 = vmax.f32 %v1554, 0.0
    %v1571 = vmax.f32 %v1555, 0.0
    %v1572 = vmax.f32 %v1556, 0.0
    %v1573 = vmax.f32 %v1557, 0.0
    %v1574 = vmax.f32 %v1558, 0.0
    %v1575 = vmax.f32 %v1559, 0.0
    %v1576 = vmax.f32 %v1560, 0.0
    %v1577 = vmax.f32 %v1561, 0.0
    %v1578 = vmax.f32 %v1562, 0.0
    %v1579 = vpack.c.bf16 %v1564, %v1563
    %v1580 = vpack.c.bf16 %v1566, %v1565
    %v1581 = vpack.c.bf16 %v1568, %v1567
    %v1582 = vpack.c.bf16 %v1570, %v1569
    %v1583 = vpack.c.bf16 %v1572, %v1571
    %v1584 = vpack.c.bf16 %v1574, %v1573
    %v1585 = vpack.c.bf16 %v1576, %v1575
    %v1586 = vpack.c.bf16 %v1578, %v1577
    %v1587 = vld [vmem:[%s16] sm:$0xf]
    %v1588 = vld [vmem:[%s16 + $0x4] sm:$0xf]
    %v1589 = vld [vmem:[%s16 + $0x8] sm:$0xf]
    %v1590 = vld [vmem:[%s16 + $0xc] sm:$0xf]
    %v1591 = vld [vmem:[%s17] sm:$0x1]
    %v1593 = vlaneseq
    %v1594 = vshrl.u32 %v1593, 7
    %v1595 = vsub.s32 0, %v1594
    %v1596 = vrot.slane %v1591, %v1595
    %v1602 = vunpack.c.l.b16 %v1587
    %v1603 = vunpack.c.l.b16 %v1588
    %v1604 = vunpack.c.l.b16 %v1589
    %v1605 = vunpack.c.l.b16 %v1590
    %v1606 = vpack.c.b16 %v1603, %v1602
    %v1607 = vpack.c.b16 %v1605, %v1604
    %v1611 = vsel %vm663, %v1579, 0
    %v1614 = vsel %vm663, %v1580, 0
    %v1617 = vsel %vm663, %v1581, 0
    %v1620 = vsel %vm663, %v1582, 0
    %v1623 = vsel %vm663, %v1583, 0
    %v1626 = vsel %vm663, %v1584, 0
    %v1629 = vsel %vm663, %v1585, 0
    %v1632 = vsel %vm663, %v1586, 0
    %1634 = vmatprep.subr.bf16.mxu0 0
    %1635 = vmatpush1.bf16.msra.mxu0 %v1606
    %1636 = vmatprep.subr.bf16.mxu0 0
    %1637 = vmatpush1.bf16.msra.mxu0 %v1607
    %1638 = vmatprep.subr.bf16.mxu0 0
    %1639 = vmatpush1.bf16.msra.mxu0 0
    %1640 = vmatprep.subr.bf16.mxu0 0
    %1641 = vmatpush1.bf16.msra.mxu0 0
    %1642 = vmatprep.subr.bf16.mxu0 0
    %1643 = vmatpush1.bf16.msra.mxu0 0
    %1644 = vmatprep.subr.bf16.mxu0 0
    %1645 = vmatpush1.bf16.msra.mxu0 0
    %1646 = vmatprep.subr.bf16.mxu0 0
    %1647 = vmatpush1.bf16.msra.mxu0 0
    %1648 = vmatprep.subr.bf16.mxu0 0
    %1649 = vmatpush1.bf16.msra.mxu0 0
    %1650 = vmatprep.subr.bf16.mxu0 0
    %1651 = vmatpush1.bf16.msra.mxu0 0
    %1652 = vmatprep.subr.bf16.mxu0 0
    %1653 = vmatpush1.bf16.msra.mxu0 0
    %1654 = vmatprep.subr.bf16.mxu0 0
    %1655 = vmatpush1.bf16.msra.mxu0 0
    %1656 = vmatprep.subr.bf16.mxu0 0
    %1657 = vmatpush1.bf16.msra.mxu0 0
    %1658 = vmatprep.subr.bf16.mxu0 0
    %1659 = vmatpush1.bf16.msra.mxu0 0
    %1660 = vmatprep.subr.bf16.mxu0 0
    %1661 = vmatpush1.bf16.msra.mxu0 0
    %1662 = vmatprep.subr.bf16.mxu0 0
    %1663 = vmatpush1.bf16.msra.mxu0 0
    %1664 = vmatprep.subr.bf16.mxu0 0
    %1665 = vmatpush1.bf16.msra.mxu0 0
    %1666 = vmatprep.mubr.bf16.mxu0 0
    %1667 = vmatmul.mubr.bf16.gmra.mrb[0].mxu0 %v1611
    %v1668 = vpop.f32.mrb[0].mxu0
    %v1669 = vadd.f32 %v1596, %v1668
    %v1670 = vpop.f32.mrb[0].mxu0
    %v1671 = vpop.f32.mrb[0].mxu0
    %v1672 = vadd.f32 %v1596, %v1671
    %v1673 = vpop.f32.mrb[0].mxu0
    %1674 = vmatprep.mubr.bf16.mxu0 0
    %1675 = vmatmul.mubr.bf16.gmra.mrb[0].mxu0 %v1614
    %v1676 = vpop.f32.mrb[0].mxu0
    %v1677 = vadd.f32 %v1596, %v1676
    %v1678 = vpop.f32.mrb[0].mxu0
    %v1679 = vpop.f32.mrb[0].mxu0
    %v1680 = vadd.f32 %v1596, %v1679
    %v1681 = vpop.f32.mrb[0].mxu0
    %1682 = vmatprep.mubr.bf16.mxu0 0
    %1683 = vmatmul.mubr.bf16.gmra.mrb[0].mxu0 %v1617
    %v1684 = vpop.f32.mrb[0].mxu0
    %v1685 = vadd.f32 %v1596, %v1684
    %v1686 = vpop.f32.mrb[0].mxu0
    %v1687 = vpop.f32.mrb[0].mxu0
    %v1688 = vadd.f32 %v1596, %v1687
    %v1689 = vpop.f32.mrb[0].mxu0
    %1690 = vmatprep.mubr.bf16.mxu0 0
    %1691 = vmatmul.mubr.bf16.gmra.mrb[0].mxu0 %v1620
    %v1692 = vpop.f32.mrb[0].mxu0
    %v1693 = vadd.f32 %v1596, %v1692
    %v1694 = vpop.f32.mrb[0].mxu0
    %v1695 = vpop.f32.mrb[0].mxu0
    %v1696 = vadd.f32 %v1596, %v1695
    %v1697 = vpop.f32.mrb[0].mxu0
    %1698 = vmatprep.mubr.bf16.mxu0 0
    %1699 = vmatmul.mubr.bf16.gmra.mrb[0].mxu0 %v1623
    %v1700 = vpop.f32.mrb[0].mxu0
    %v1701 = vadd.f32 %v1596, %v1700
    %v1702 = vpop.f32.mrb[0].mxu0
    %v1703 = vpop.f32.mrb[0].mxu0
    %v1704 = vadd.f32 %v1596, %v1703
    %v1705 = vpop.f32.mrb[0].mxu0
    %1706 = vmatprep.mubr.bf16.mxu0 0
    %1707 = vmatmul.mubr.bf16.gmra.mrb[0].mxu0 %v1626
    %v1708 = vpop.f32.mrb[0].mxu0
    %v1709 = vadd.f32 %v1596, %v1708
    %v1710 = vpop.f32.mrb[0].mxu0
    %v1711 = vpop.f32.mrb[0].mxu0
    %v1712 = vadd.f32 %v1596, %v1711
    %v1713 = vpop.f32.mrb[0].mxu0
    %1714 = vmatprep.mubr.bf16.mxu0 0
    %1715 = vmatmul.mubr.bf16.gmra.mrb[0].mxu0 %v1629
    %v1716 = vpop.f32.mrb[0].mxu0
    %v1717 = vadd.f32 %v1596, %v1716
    %v1718 = vpop.f32.mrb[0].mxu0
    %v1719 = vpop.f32.mrb[0].mxu0
    %v1720 = vadd.f32 %v1596, %v1719
    %v1721 = vpop.f32.mrb[0].mxu0
    %1722 = vmatprep.mubr.bf16.mxu0 0
    %1723 = vmatmul.mubr.bf16.gmra.mrb[0].mxu0 %v1632
    %v1724 = vpop.f32.mrb[0].mxu0
    %v1725 = vadd.f32 %v1596, %v1724
    %v1726 = vpop.f32.mrb[0].mxu0
    %v1727 = vpop.f32.mrb[0].mxu0
    %v1728 = vadd.f32 %v1596, %v1727
    %v1729 = vpop.f32.mrb[0].mxu0
    %1730 = vdwg.mxu0
    %v1731 = vmul.f32 %v1669, 0.1
    %v1732 = vmul.f32 %v1672, 0.1
    %v1733 = vmul.f32 %v1677, 0.1
    %v1734 = vmul.f32 %v1680, 0.1
    %v1735 = vmul.f32 %v1685, 0.1
    %v1736 = vmul.f32 %v1688, 0.1
    %v1737 = vmul.f32 %v1693, 0.1
    %v1738 = vmul.f32 %v1696, 0.1
    %v1739 = vmul.f32 %v1701, 0.1
    %v1740 = vmul.f32 %v1704, 0.1
    %v1741 = vmul.f32 %v1709, 0.1
    %v1742 = vmul.f32 %v1712, 0.1
    %v1743 = vmul.f32 %v1717, 0.1
    %v1744 = vmul.f32 %v1720, 0.1
    %v1745 = vmul.f32 %v1725, 0.1
    %v1746 = vmul.f32 %v1728, 0.1
    %v1747 = vtanh.pop %v1731
    %v1748 = vtanh.pop %v1732
    %v1749 = vtanh.pop %v1733
    %v1750 = vtanh.pop %v1734
    %v1751 = vtanh.pop %v1735
    %v1752 = vtanh.pop %v1736
    %v1753 = vtanh.pop %v1737
    %v1754 = vtanh.pop %v1738
    %v1755 = vtanh.pop %v1739
    %v1756 = vtanh.pop %v1740
    %v1757 = vtanh.pop %v1741
    %v1758 = vtanh.pop %v1742
    %v1759 = vtanh.pop %v1743
    %v1760 = vtanh.pop %v1744
    %v1761 = vtanh.pop %v1745
    %v1762 = vtanh.pop %v1746
    %v1763 = vmul.f32 %v1747, 1.9
    %v1764 = vmul.f32 %v1748, 1.9
    %v1765 = vmul.f32 %v1749, 1.9
    %v1766 = vmul.f32 %v1750, 1.9
    %v1767 = vmul.f32 %v1751, 1.9
    %v1768 = vmul.f32 %v1752, 1.9
    %v1769 = vmul.f32 %v1753, 1.9
    %v1770 = vmul.f32 %v1754, 1.9
    %v1771 = vmul.f32 %v1755, 1.9
    %v1772 = vmul.f32 %v1756, 1.9
    %v1773 = vmul.f32 %v1757, 1.9
    %v1774 = vmul.f32 %v1758, 1.9
    %v1775 = vmul.f32 %v1759, 1.9
    %v1776 = vmul.f32 %v1760, 1.9
    %v1777 = vmul.f32 %v1761, 1.9
    %v1778 = vmul.f32 %v1762, 1.9
    %v1779 = vmul.f32 %v1763, 1.442695
    %v1780 = vpow.pop %v1779
    %v1781 = vmul.f32 %v1764, 1.442695
    %v1782 = vpow.pop %v1781
    %v1783 = vmul.f32 %v1765, 1.442695
    %v1784 = vpow.pop %v1783
    %v1785 = vmul.f32 %v1766, 1.442695
    %v1786 = vpow.pop %v1785
    %v1787 = vmul.f32 %v1767, 1.442695
    %v1788 = vpow.pop %v1787
    %v1789 = vmul.f32 %v1768, 1.442695
    %v1790 = vpow.pop %v1789
    %v1791 = vmul.f32 %v1769, 1.442695
    %v1792 = vpow.pop %v1791
    %v1793 = vmul.f32 %v1770, 1.442695
    %v1794 = vpow.pop %v1793
    %v1795 = vmul.f32 %v1771, 1.442695
    %v1796 = vpow.pop %v1795
    %v1797 = vmul.f32 %v1772, 1.442695
    %v1798 = vpow.pop %v1797
    %v1799 = vmul.f32 %v1773, 1.442695
    %v1800 = vpow.pop %v1799
    %v1801 = vmul.f32 %v1774, 1.442695
    %v1802 = vpow.pop %v1801
    %v1803 = vmul.f32 %v1775, 1.442695
    %v1804 = vpow.pop %v1803
    %v1805 = vmul.f32 %v1776, 1.442695
    %v1806 = vpow.pop %v1805
    %v1807 = vmul.f32 %v1777, 1.442695
    %v1808 = vpow.pop %v1807
    %v1809 = vmul.f32 %v1778, 1.442695
    %v1810 = vpow.pop %v1809
    %1827 = vrot.lane.b32.xlu0 %v1780, 8
    %v1828 = vpop.permute.xlu0 %1827
    %1829 = vrot.lane.b32.xlu0 %v1782, 8
    %v1830 = vpop.permute.xlu0 %1829
    %1831 = vrot.lane.b32.xlu0 %v1784, 8
    %v1832 = vpop.permute.xlu0 %1831
    %1833 = vrot.lane.b32.xlu0 %v1786, 8
    %v1834 = vpop.permute.xlu0 %1833
    %1835 = vrot.lane.b32.xlu0 %v1788, 8
    %v1836 = vpop.permute.xlu0 %1835
    %1837 = vrot.lane.b32.xlu0 %v1790, 8
    %v1838 = vpop.permute.xlu0 %1837
    %1839 = vrot.lane.b32.xlu0 %v1792, 8
    %v1840 = vpop.permute.xlu0 %1839
    %1841 = vrot.lane.b32.xlu0 %v1794, 8
    %v1842 = vpop.permute.xlu0 %1841
    %1843 = vrot.lane.b32.xlu0 %v1796, 8
    %v1844 = vpop.permute.xlu0 %1843
    %1845 = vrot.lane.b32.xlu0 %v1798, 8
    %v1846 = vpop.permute.xlu0 %1845
    %1847 = vrot.lane.b32.xlu0 %v1800, 8
    %v1848 = vpop.permute.xlu0 %1847
    %1849 = vrot.lane.b32.xlu0 %v1802, 8
    %v1850 = vpop.permute.xlu0 %1849
    %1851 = vrot.lane.b32.xlu0 %v1804, 8
    %v1852 = vpop.permute.xlu0 %1851
    %1853 = vrot.lane.b32.xlu0 %v1806, 8
    %v1854 = vpop.permute.xlu0 %1853
    %1855 = vrot.lane.b32.xlu0 %v1808, 8
    %v1856 = vpop.permute.xlu0 %1855
    %1857 = vrot.lane.b32.xlu0 %v1810, 8
    %v1858 = vpop.permute.xlu0 %1857
    %v1875 = vmul.f32 %v1290, %v1828
    %v1876 = vmul.f32 %v1291, %v1830
    %v1877 = vmul.f32 %v1292, %v1832
    %v1878 = vmul.f32 %v1293, %v1834
    %v1879 = vmul.f32 %v1294, %v1836
    %v1880 = vmul.f32 %v1295, %v1838
    %v1881 = vmul.f32 %v1296, %v1840
    %v1882 = vmul.f32 %v1297, %v1842
    %v1883 = vmul.f32 %v1298, %v1844
    %v1884 = vmul.f32 %v1299, %v1846
    %v1885 = vmul.f32 %v1300, %v1848
    %v1886 = vmul.f32 %v1301, %v1850
    %v1887 = vmul.f32 %v1302, %v1852
    %v1888 = vmul.f32 %v1303, %v1854
    %v1889 = vmul.f32 %v1304, %v1856
    %v1890 = vmul.f32 %v1305, %v1858
    %v1891 = vadd.f32 %v1875, %v1731
    %v1892 = vadd.f32 %v1876, %v1732
    %v1893 = vadd.f32 %v1877, %v1733
    %v1894 = vadd.f32 %v1878, %v1734
    %v1895 = vadd.f32 %v1879, %v1735
    %v1896 = vadd.f32 %v1880, %v1736
    %v1897 = vadd.f32 %v1881, %v1737
    %v1898 = vadd.f32 %v1882, %v1738
    %v1899 = vadd.f32 %v1883, %v1739
    %v1900 = vadd.f32 %v1884, %v1740
    %v1901 = vadd.f32 %v1885, %v1741
    %v1902 = vadd.f32 %v1886, %v1742
    %v1903 = vadd.f32 %v1887, %v1743
    %v1904 = vadd.f32 %v1888, %v1744
    %v1905 = vadd.f32 %v1889, %v1745
    %v1906 = vadd.f32 %v1890, %v1746
    %v1907 = vsel %vm343, %v1763, 0.0
    %1908 = vadd.xlane.f32.xlu0 %v1907
    %v1909 = vpop.xlane.xlu0 %1908
    %v1910 = vsel %vm343, %v1764, 0.0
    %1911 = vadd.xlane.f32.xlu0 %v1910
    %v1912 = vpop.xlane.xlu0 %1911
    %v1913 = vsel %vm343, %v1765, 0.0
    %1914 = vadd.xlane.f32.xlu0 %v1913
    %v1915 = vpop.xlane.xlu0 %1914
    %v1916 = vsel %vm343, %v1766, 0.0
    %1917 = vadd.xlane.f32.xlu0 %v1916
    %v1918 = vpop.xlane.xlu0 %1917
    %v1919 = vsel %vm343, %v1767, 0.0
    %1920 = vadd.xlane.f32.xlu0 %v1919
    %v1921 = vpop.xlane.xlu0 %1920
    %v1922 = vsel %vm343, %v1768, 0.0
    %1923 = vadd.xlane.f32.xlu0 %v1922
    %v1924 = vpop.xlane.xlu0 %1923
    %v1925 = vsel %vm343, %v1769, 0.0
    %1926 = vadd.xlane.f32.xlu0 %v1925
    %v1927 = vpop.xlane.xlu0 %1926
    %v1928 = vsel %vm343, %v1770, 0.0
    %1929 = vadd.xlane.f32.xlu0 %v1928
    %v1930 = vpop.xlane.xlu0 %1929
    %v1931 = vsel %vm343, %v1771, 0.0
    %1932 = vadd.xlane.f32.xlu0 %v1931
    %v1933 = vpop.xlane.xlu0 %1932
    %v1934 = vsel %vm343, %v1772, 0.0
    %1935 = vadd.xlane.f32.xlu0 %v1934
    %v1936 = vpop.xlane.xlu0 %1935
    %v1937 = vsel %vm343, %v1773, 0.0
    %1938 = vadd.xlane.f32.xlu0 %v1937
    %v1939 = vpop.xlane.xlu0 %1938
    %v1940 = vsel %vm343, %v1774, 0.0
    %1941 = vadd.xlane.f32.xlu0 %v1940
    %v1942 = vpop.xlane.xlu0 %1941
    %v1943 = vsel %vm343, %v1775, 0.0
    %1944 = vadd.xlane.f32.xlu0 %v1943
    %v1945 = vpop.xlane.xlu0 %1944
    %v1946 = vsel %vm343, %v1776, 0.0
    %1947 = vadd.xlane.f32.xlu0 %v1946
    %v1948 = vpop.xlane.xlu0 %1947
    %v1949 = vsel %vm343, %v1777, 0.0
    %1950 = vadd.xlane.f32.xlu0 %v1949
    %v1951 = vpop.xlane.xlu0 %1950
    %v1952 = vsel %vm343, %v1778, 0.0
    %1953 = vadd.xlane.f32.xlu0 %v1952
    %v1954 = vpop.xlane.xlu0 %1953
    %v1955 = vadd.f32 %v1009, %v1909
    %v1956 = vadd.f32 %v1010, %v1912
    %v1957 = vadd.f32 %v1011, %v1915
    %v1958 = vadd.f32 %v1012, %v1918
    %v1959 = vadd.f32 %v1013, %v1921
    %v1960 = vadd.f32 %v1014, %v1924
    %v1961 = vadd.f32 %v1015, %v1927
    %v1962 = vadd.f32 %v1016, %v1930
    %v1963 = vadd.f32 %v1017, %v1933
    %v1964 = vadd.f32 %v1018, %v1936
    %v1965 = vadd.f32 %v1019, %v1939
    %v1966 = vadd.f32 %v1020, %v1942
    %v1967 = vadd.f32 %v1021, %v1945
    %v1968 = vadd.f32 %v1022, %v1948
    %v1969 = vadd.f32 %v1023, %v1951
    %v1970 = vadd.f32 %v1024, %v1954
    %v1971 = vld [vmem:[%s20] sm:$0x1]
    %v1972 = vld [vmem:[%s18] sm:$0x1]
    %v1974 = vlaneseq
    %v1975 = vshrl.u32 %v1974, 7
    %v1976 = vsub.s32 0, %v1975
    %v1977 = vrot.slane %v1972, %v1976
    %v1979 = vmul.f32 %v1290, %v1977
    %v1980 = vmul.f32 %v1291, %v1977
    %v1981 = vmul.f32 %v1292, %v1977
    %v1982 = vmul.f32 %v1293, %v1977
    %v1983 = vmul.f32 %v1294, %v1977
    %v1984 = vmul.f32 %v1295, %v1977
    %v1985 = vmul.f32 %v1296, %v1977
    %v1986 = vmul.f32 %v1297, %v1977
    %v1987 = vmul.f32 %v1298, %v1977
    %v1988 = vmul.f32 %v1299, %v1977
    %v1989 = vmul.f32 %v1300, %v1977
    %v1990 = vmul.f32 %v1301, %v1977
    %v1991 = vmul.f32 %v1302, %v1977
    %v1992 = vmul.f32 %v1303, %v1977
    %v1993 = vmul.f32 %v1304, %v1977
    %v1994 = vmul.f32 %v1305, %v1977
    %v1996 = vlaneseq
    %v1997 = vshrl.u32 %v1996, 7
    %v1998 = vsub.s32 0, %v1997
    %v1999 = vrot.slane %v1971, %v1998
    %v2001 = vadd.f32 %v1979, %v1999
    %v2002 = vadd.f32 %v1980, %v1999
    %v2003 = vadd.f32 %v1981, %v1999
    %v2004 = vadd.f32 %v1982, %v1999
    %v2005 = vadd.f32 %v1983, %v1999
    %v2006 = vadd.f32 %v1984, %v1999
    %v2007 = vadd.f32 %v1985, %v1999
    %v2008 = vadd.f32 %v1986, %v1999
    %v2009 = vadd.f32 %v1987, %v1999
    %v2010 = vadd.f32 %v1988, %v1999
    %v2011 = vadd.f32 %v1989, %v1999
    %v2012 = vadd.f32 %v1990, %v1999
    %v2013 = vadd.f32 %v1991, %v1999
    %v2014 = vadd.f32 %v1992, %v1999
    %v2015 = vadd.f32 %v1993, %v1999
    %v2016 = vadd.f32 %v1994, %v1999
    %v2017 = vld [vmem:[%s19] sm:$0x1]
    %v2019 = vlaneseq
    %v2020 = vshrl.u32 %v2019, 7
    %v2021 = vsub.s32 0, %v2020
    %v2022 = vrot.slane %v2017, %v2021
    %2023 = vrot.lane.b32.xlu0 %v2022, 8
    %v2024 = vpop.permute.xlu0 %2023
    %v2026 = vmul.f32 %v1891, %v2024
    %v2027 = vmul.f32 %v1892, %v2024
    %v2028 = vmul.f32 %v1893, %v2024
    %v2029 = vmul.f32 %v1894, %v2024
    %v2030 = vmul.f32 %v1895, %v2024
    %v2031 = vmul.f32 %v1896, %v2024
    %v2032 = vmul.f32 %v1897, %v2024
    %v2033 = vmul.f32 %v1898, %v2024
    %v2034 = vmul.f32 %v1899, %v2024
    %v2035 = vmul.f32 %v1900, %v2024
    %v2036 = vmul.f32 %v1901, %v2024
    %v2037 = vmul.f32 %v1902, %v2024
    %v2038 = vmul.f32 %v1903, %v2024
    %v2039 = vmul.f32 %v1904, %v2024
    %v2040 = vmul.f32 %v1905, %v2024
    %v2041 = vmul.f32 %v1906, %v2024
    %v2042 = vadd.f32 %v2026, %v1999
    %v2043 = vadd.f32 %v2027, %v1999
    %v2044 = vadd.f32 %v2028, %v1999
    %v2045 = vadd.f32 %v2029, %v1999
    %v2046 = vadd.f32 %v2030, %v1999
    %v2047 = vadd.f32 %v2031, %v1999
    %v2048 = vadd.f32 %v2032, %v1999
    %v2049 = vadd.f32 %v2033, %v1999
    %v2050 = vadd.f32 %v2034, %v1999
    %v2051 = vadd.f32 %v2035, %v1999
    %v2052 = vadd.f32 %v2036, %v1999
    %v2053 = vadd.f32 %v2037, %v1999
    %v2054 = vadd.f32 %v2038, %v1999
    %v2055 = vadd.f32 %v2039, %v1999
    %v2056 = vadd.f32 %v2040, %v1999
    %v2057 = vadd.f32 %v2041, %v1999
    %v2058 = vmul.f32 %v2001, %v2001
    %v2059 = vmul.f32 %v2002, %v2002
    %v2060 = vmul.f32 %v2003, %v2003
    %v2061 = vmul.f32 %v2004, %v2004
    %v2062 = vmul.f32 %v2005, %v2005
    %v2063 = vmul.f32 %v2006, %v2006
    %v2064 = vmul.f32 %v2007, %v2007
    %v2065 = vmul.f32 %v2008, %v2008
    %v2066 = vmul.f32 %v2009, %v2009
    %v2067 = vmul.f32 %v2010, %v2010
    %v2068 = vmul.f32 %v2011, %v2011
    %v2069 = vmul.f32 %v2012, %v2012
    %v2070 = vmul.f32 %v2013, %v2013
    %v2071 = vmul.f32 %v2014, %v2014
    %v2072 = vmul.f32 %v2015, %v2015
    %v2073 = vmul.f32 %v2016, %v2016
    %v2074 = vsel %vm343, %v2058, 0.0
    %2075 = vadd.xlane.f32.xlu0 %v2074
    %v2076 = vpop.xlane.xlu0 %2075
    %v2077 = vsel %vm343, %v2059, 0.0
    %2078 = vadd.xlane.f32.xlu0 %v2077
    %v2079 = vpop.xlane.xlu0 %2078
    %v2080 = vsel %vm343, %v2060, 0.0
    %2081 = vadd.xlane.f32.xlu0 %v2080
    %v2082 = vpop.xlane.xlu0 %2081
    %v2083 = vsel %vm343, %v2061, 0.0
    %2084 = vadd.xlane.f32.xlu0 %v2083
    %v2085 = vpop.xlane.xlu0 %2084
    %v2086 = vsel %vm343, %v2062, 0.0
    %2087 = vadd.xlane.f32.xlu0 %v2086
    %v2088 = vpop.xlane.xlu0 %2087
    %v2089 = vsel %vm343, %v2063, 0.0
    %2090 = vadd.xlane.f32.xlu0 %v2089
    %v2091 = vpop.xlane.xlu0 %2090
    %v2092 = vsel %vm343, %v2064, 0.0
    %2093 = vadd.xlane.f32.xlu0 %v2092
    %v2094 = vpop.xlane.xlu0 %2093
    %v2095 = vsel %vm343, %v2065, 0.0
    %2096 = vadd.xlane.f32.xlu0 %v2095
    %v2097 = vpop.xlane.xlu0 %2096
    %v2098 = vsel %vm343, %v2066, 0.0
    %2099 = vadd.xlane.f32.xlu0 %v2098
    %v2100 = vpop.xlane.xlu0 %2099
    %v2101 = vsel %vm343, %v2067, 0.0
    %2102 = vadd.xlane.f32.xlu0 %v2101
    %v2103 = vpop.xlane.xlu0 %2102
    %v2104 = vsel %vm343, %v2068, 0.0
    %2105 = vadd.xlane.f32.xlu0 %v2104
    %v2106 = vpop.xlane.xlu0 %2105
    %v2107 = vsel %vm343, %v2069, 0.0
    %2108 = vadd.xlane.f32.xlu0 %v2107
    %v2109 = vpop.xlane.xlu0 %2108
    %v2110 = vsel %vm343, %v2070, 0.0
    %2111 = vadd.xlane.f32.xlu0 %v2110
    %v2112 = vpop.xlane.xlu0 %2111
    %v2113 = vsel %vm343, %v2071, 0.0
    %2114 = vadd.xlane.f32.xlu0 %v2113
    %v2115 = vpop.xlane.xlu0 %2114
    %v2116 = vsel %vm343, %v2072, 0.0
    %2117 = vadd.xlane.f32.xlu0 %v2116
    %v2118 = vpop.xlane.xlu0 %2117
    %v2119 = vsel %vm343, %v2073, 0.0
    %2120 = vadd.xlane.f32.xlu0 %v2119
    %v2121 = vpop.xlane.xlu0 %2120
    %v2122 = vmul.f32 %v2042, %v2042
    %v2123 = vmul.f32 %v2043, %v2043
    %v2124 = vmul.f32 %v2044, %v2044
    %v2125 = vmul.f32 %v2045, %v2045
    %v2126 = vmul.f32 %v2046, %v2046
    %v2127 = vmul.f32 %v2047, %v2047
    %v2128 = vmul.f32 %v2048, %v2048
    %v2129 = vmul.f32 %v2049, %v2049
    %v2130 = vmul.f32 %v2050, %v2050
    %v2131 = vmul.f32 %v2051, %v2051
    %v2132 = vmul.f32 %v2052, %v2052
    %v2133 = vmul.f32 %v2053, %v2053
    %v2134 = vmul.f32 %v2054, %v2054
    %v2135 = vmul.f32 %v2055, %v2055
    %v2136 = vmul.f32 %v2056, %v2056
    %v2137 = vmul.f32 %v2057, %v2057
    %2154 = vrot.lane.b32.xlu0 %v2122, 120
    %v2155 = vpop.permute.xlu0 %2154
    %2156 = vrot.lane.b32.xlu0 %v2123, 120
    %v2157 = vpop.permute.xlu0 %2156
    %2158 = vrot.lane.b32.xlu0 %v2124, 120
    %v2159 = vpop.permute.xlu0 %2158
    %2160 = vrot.lane.b32.xlu0 %v2125, 120
    %v2161 = vpop.permute.xlu0 %2160
    %2162 = vrot.lane.b32.xlu0 %v2126, 120
    %v2163 = vpop.permute.xlu0 %2162
    %2164 = vrot.lane.b32.xlu0 %v2127, 120
    %v2165 = vpop.permute.xlu0 %2164
    %2166 = vrot.lane.b32.xlu0 %v2128, 120
    %v2167 = vpop.permute.xlu0 %2166
    %2168 = vrot.lane.b32.xlu0 %v2129, 120
    %v2169 = vpop.permute.xlu0 %2168
    %2170 = vrot.lane.b32.xlu0 %v2130, 120
    %v2171 = vpop.permute.xlu0 %2170
    %2172 = vrot.lane.b32.xlu0 %v2131, 120
    %v2173 = vpop.permute.xlu0 %2172
    %2174 = vrot.lane.b32.xlu0 %v2132, 120
    %v2175 = vpop.permute.xlu0 %2174
    %2176 = vrot.lane.b32.xlu0 %v2133, 120
    %v2177 = vpop.permute.xlu0 %2176
    %2178 = vrot.lane.b32.xlu0 %v2134, 120
    %v2179 = vpop.permute.xlu0 %2178
    %2180 = vrot.lane.b32.xlu0 %v2135, 120
    %v2181 = vpop.permute.xlu0 %2180
    %2182 = vrot.lane.b32.xlu0 %v2136, 120
    %v2183 = vpop.permute.xlu0 %2182
    %2184 = vrot.lane.b32.xlu0 %v2137, 120
    %v2185 = vpop.permute.xlu0 %2184
    %v2202 = vsel %vm343, %v2155, 0.0
    %2203 = vadd.xlane.f32.xlu0 %v2202
    %v2204 = vpop.xlane.xlu0 %2203
    %v2205 = vsel %vm343, %v2157, 0.0
    %2206 = vadd.xlane.f32.xlu0 %v2205
    %v2207 = vpop.xlane.xlu0 %2206
    %v2208 = vsel %vm343, %v2159, 0.0
    %2209 = vadd.xlane.f32.xlu0 %v2208
    %v2210 = vpop.xlane.xlu0 %2209
    %v2211 = vsel %vm343, %v2161, 0.0
    %2212 = vadd.xlane.f32.xlu0 %v2211
    %v2213 = vpop.xlane.xlu0 %2212
    %v2214 = vsel %vm343, %v2163, 0.0
    %2215 = vadd.xlane.f32.xlu0 %v2214
    %v2216 = vpop.xlane.xlu0 %2215
    %v2217 = vsel %vm343, %v2165, 0.0
    %2218 = vadd.xlane.f32.xlu0 %v2217
    %v2219 = vpop.xlane.xlu0 %2218
    %v2220 = vsel %vm343, %v2167, 0.0
    %2221 = vadd.xlane.f32.xlu0 %v2220
    %v2222 = vpop.xlane.xlu0 %2221
    %v2223 = vsel %vm343, %v2169, 0.0
    %2224 = vadd.xlane.f32.xlu0 %v2223
    %v2225 = vpop.xlane.xlu0 %2224
    %v2226 = vsel %vm343, %v2171, 0.0
    %2227 = vadd.xlane.f32.xlu0 %v2226
    %v2228 = vpop.xlane.xlu0 %2227
    %v2229 = vsel %vm343, %v2173, 0.0
    %2230 = vadd.xlane.f32.xlu0 %v2229
    %v2231 = vpop.xlane.xlu0 %2230
    %v2232 = vsel %vm343, %v2175, 0.0
    %2233 = vadd.xlane.f32.xlu0 %v2232
    %v2234 = vpop.xlane.xlu0 %2233
    %v2235 = vsel %vm343, %v2177, 0.0
    %2236 = vadd.xlane.f32.xlu0 %v2235
    %v2237 = vpop.xlane.xlu0 %2236
    %v2238 = vsel %vm343, %v2179, 0.0
    %2239 = vadd.xlane.f32.xlu0 %v2238
    %v2240 = vpop.xlane.xlu0 %2239
    %v2241 = vsel %vm343, %v2181, 0.0
    %2242 = vadd.xlane.f32.xlu0 %v2241
    %v2243 = vpop.xlane.xlu0 %2242
    %v2244 = vsel %vm343, %v2183, 0.0
    %2245 = vadd.xlane.f32.xlu0 %v2244
    %v2246 = vpop.xlane.xlu0 %2245
    %v2247 = vsel %vm343, %v2185, 0.0
    %2248 = vadd.xlane.f32.xlu0 %v2247
    %v2249 = vpop.xlane.xlu0 %2248
    %v2250 = vadd.f32 %v2076, %v2204
    %v2251 = vadd.f32 %v2079, %v2207
    %v2252 = vadd.f32 %v2082, %v2210
    %v2253 = vadd.f32 %v2085, %v2213
    %v2254 = vadd.f32 %v2088, %v2216
    %v2255 = vadd.f32 %v2091, %v2219
    %v2256 = vadd.f32 %v2094, %v2222
    %v2257 = vadd.f32 %v2097, %v2225
    %v2258 = vadd.f32 %v2100, %v2228
    %v2259 = vadd.f32 %v2103, %v2231
    %v2260 = vadd.f32 %v2106, %v2234
    %v2261 = vadd.f32 %v2109, %v2237
    %v2262 = vadd.f32 %v2112, %v2240
    %v2263 = vadd.f32 %v2115, %v2243
    %v2264 = vadd.f32 %v2118, %v2246
    %v2265 = vadd.f32 %v2121, %v2249
    %s2266 = sld [smem:[#allocation2]]
    %s2267 = sadd.f32 %s2266, -14.703016
    %v2268 = vmul.f32 %v2250, 0.5
    %v2269 = vmul.f32 %v2251, 0.5
    %v2270 = vmul.f32 %v2252, 0.5
    %v2271 = vmul.f32 %v2253, 0.5
    %v2272 = vmul.f32 %v2254, 0.5
    %v2273 = vmul.f32 %v2255, 0.5
    %v2274 = vmul.f32 %v2256, 0.5
    %v2275 = vmul.f32 %v2257, 0.5
    %v2276 = vmul.f32 %v2258, 0.5
    %v2277 = vmul.f32 %v2259, 0.5
    %v2278 = vmul.f32 %v2260, 0.5
    %v2279 = vmul.f32 %v2261, 0.5
    %v2280 = vmul.f32 %v2262, 0.5
    %v2281 = vmul.f32 %v2263, 0.5
    %v2282 = vmul.f32 %v2264, 0.5
    %v2283 = vmul.f32 %v2265, 0.5
    %v2284 = vstv %s2267
    %v2285 = vsub.f32 %v2284, %v2268
    %v2286 = vsub.f32 %v2284, %v2269
    %v2287 = vsub.f32 %v2284, %v2270
    %v2288 = vsub.f32 %v2284, %v2271
    %v2289 = vsub.f32 %v2284, %v2272
    %v2290 = vsub.f32 %v2284, %v2273
    %v2291 = vsub.f32 %v2284, %v2274
    %v2292 = vsub.f32 %v2284, %v2275
    %v2293 = vsub.f32 %v2284, %v2276
    %v2294 = vsub.f32 %v2284, %v2277
    %v2295 = vsub.f32 %v2284, %v2278
    %v2296 = vsub.f32 %v2284, %v2279
    %v2297 = vsub.f32 %v2284, %v2280
    %v2298 = vsub.f32 %v2284, %v2281
    %v2299 = vsub.f32 %v2284, %v2282
    %v2300 = vsub.f32 %v2284, %v2283
    %v2301 = vadd.f32 %v2285, %v1955
    %v2302 = vadd.f32 %v2286, %v1956
    %v2303 = vadd.f32 %v2287, %v1957
    %v2304 = vadd.f32 %v2288, %v1958
    %v2305 = vadd.f32 %v2289, %v1959
    %v2306 = vadd.f32 %v2290, %v1960
    %v2307 = vadd.f32 %v2291, %v1961
    %v2308 = vadd.f32 %v2292, %v1962
    %v2309 = vadd.f32 %v2293, %v1963
    %v2310 = vadd.f32 %v2294, %v1964
    %v2311 = vadd.f32 %v2295, %v1965
    %v2312 = vadd.f32 %v2296, %v1966
    %v2313 = vadd.f32 %v2297, %v1967
    %v2314 = vadd.f32 %v2298, %v1968
    %v2315 = vadd.f32 %v2299, %v1969
    %v2316 = vadd.f32 %v2300, %v1970
    %v2317 = vlaneseq
    %v2318 = vshrl.u32 %v2317, 7
    %v2319 = vadd.s32 %v2318, 8
    %v2320 = vadd.s32 %v2318, 16
    %v2321 = vadd.s32 %v2318, 24
    %v2322 = vadd.s32 %v2318, 32
    %v2323 = vadd.s32 %v2318, 40
    %v2324 = vadd.s32 %v2318, 48
    %v2325 = vadd.s32 %v2318, 56
    %v2326 = vadd.s32 %v2318, 64
    %v2327 = vadd.s32 %v2318, 72
    %v2328 = vadd.s32 %v2318, 80
    %v2329 = vadd.s32 %v2318, 88
    %v2330 = vadd.s32 %v2318, 96
    %v2331 = vadd.s32 %v2318, 104
    %v2332 = vadd.s32 %v2318, 112
    %v2333 = vadd.s32 %v2318, 120
    %v2334 = vlaneseq
    %v2335 = vand.u32 %v2334, 127
    %vm2336 = vcmp.eq.s32.totalorder %v2318, %v2335
    %vm2337 = vcmp.eq.s32.totalorder %v2319, %v2335
    %vm2338 = vcmp.eq.s32.totalorder %v2320, %v2335
    %vm2339 = vcmp.eq.s32.totalorder %v2321, %v2335
    %vm2340 = vcmp.eq.s32.totalorder %v2322, %v2335
    %vm2341 = vcmp.eq.s32.totalorder %v2323, %v2335
    %vm2342 = vcmp.eq.s32.totalorder %v2324, %v2335
    %vm2343 = vcmp.eq.s32.totalorder %v2325, %v2335
    %vm2344 = vcmp.eq.s32.totalorder %v2326, %v2335
    %vm2345 = vcmp.eq.s32.totalorder %v2327, %v2335
    %vm2346 = vcmp.eq.s32.totalorder %v2328, %v2335
    %vm2347 = vcmp.eq.s32.totalorder %v2329, %v2335
    %vm2348 = vcmp.eq.s32.totalorder %v2330, %v2335
    %vm2349 = vcmp.eq.s32.totalorder %v2331, %v2335
    %vm2350 = vcmp.eq.s32.totalorder %v2332, %v2335
    %vm2351 = vcmp.eq.s32.totalorder %v2333, %v2335
    %v2352 = vsel %vm2336, %v2301, 0.0
    %v2353 = vsel %vm2337, %v2302, 0.0
    %v2354 = vsel %vm2338, %v2303, 0.0
    %v2355 = vsel %vm2339, %v2304, 0.0
    %v2356 = vsel %vm2340, %v2305, 0.0
    %v2357 = vsel %vm2341, %v2306, 0.0
    %v2358 = vsel %vm2342, %v2307, 0.0
    %v2359 = vsel %vm2343, %v2308, 0.0
    %v2360 = vsel %vm2344, %v2309, 0.0
    %v2361 = vsel %vm2345, %v2310, 0.0
    %v2362 = vsel %vm2346, %v2311, 0.0
    %v2363 = vsel %vm2347, %v2312, 0.0
    %v2364 = vsel %vm2348, %v2313, 0.0
    %v2365 = vsel %vm2349, %v2314, 0.0
    %v2366 = vsel %vm2350, %v2315, 0.0
    %v2367 = vsel %vm2351, %v2316, 0.0
    %v2368 = vadd.f32 %v2352, %v2353
    %v2369 = vadd.f32 %v2368, %v2354
    %v2370 = vadd.f32 %v2369, %v2355
    %v2371 = vadd.f32 %v2370, %v2356
    %v2372 = vadd.f32 %v2371, %v2357
    %v2373 = vadd.f32 %v2372, %v2358
    %v2374 = vadd.f32 %v2373, %v2359
    %v2375 = vadd.f32 %v2374, %v2360
    %v2376 = vadd.f32 %v2375, %v2361
    %v2377 = vadd.f32 %v2376, %v2362
    %v2378 = vadd.f32 %v2377, %v2363
    %v2379 = vadd.f32 %v2378, %v2364
    %v2380 = vadd.f32 %v2379, %v2365
    %v2381 = vadd.f32 %v2380, %v2366
    %v2382 = vadd.f32 %v2381, %v2367
    %v2383 = vrot.slane %v2382, 4
    %v2384 = vadd.f32 %v2382, %v2383
    %v2385 = vrot.slane %v2384, 2
    %v2386 = vadd.f32 %v2384, %v2385
    %v2387 = vrot.slane %v2386, 1
    %v2388 = vadd.f32 %v2386, %v2387
    %v2389 = vmul.f32 %v2388, 0.0625
    %2390 = vst [vmem:[#allocation3] sm:$0x1] %v2389
    // Predicated region
    $region86: #{tpu_custom_call.1} parent=1 // pred_check
      _
    $region87: #{tpu_custom_call.1} parent=1 // pred_check_branch
      %2392 = sbr.rel (0) target = $region89
    $region88: #{tpu_custom_call.1} parent=1 // pred_region
      %s2394 = ssub.s32 16, 16
      %2395 = vsyncadd [#allocation4], %s2394
      %s2397 = sshll.u32 [#allocation3], 4
      %s2398 = int_to_ptr.vmem [resolvable:$true] %s2397
      %2400 = dma.vmem_to_hbm [thread:$0]  %s2398, 16, %s21, [#allocation4]
    $region89: #{tpu_custom_call.1} parent=1 // pred_fallthru
      _
    // Predicated region
    $region90: #{tpu_custom_call.1} parent=1 // pred_check
      _
    $region91: #{tpu_custom_call.1} parent=1 // pred_check_branch
      %2402 = sbr.rel (0) target = $region93
    $region92: #{tpu_custom_call.1} parent=1 // pred_region
      %2403 = dma.done [#allocation4], 16
    $region93: #{tpu_custom_call.1} parent=1 // pred_fallthru
      _
    %2404 = vsyncpa [#allocation4], 1

// kernel: tpu_custom_call.1
$region0: #{tpu_custom_call.1}
  #allocation0 [shape = 'u32[]', space=smem, size = 0x4, offset = 0x4, fixed_abs, tag = 'smem constant byte address 0x4 - core index']
  #allocation1 [shape = 'u32[144,128]{1,0:T(1,128)}', space=vmem, size = 0x12000, scoped, tag = 'internal scratch']
  #allocation2 [shape = 'f32[1]{0:T(128)S(6)}', space=smem, size = 0x200, scoped, tag = 'scoped memory for tpu_custom_call.1']
  %s0 = inlined_call_operand.vmem [shape: bf16[128,4], index: 0, kind: input, shape index: {}]
  %s1 = inlined_call_operand.vmem [shape: bf16[128,8], index: 1, kind: input, shape index: {}]
  %s2 = inlined_call_operand.<no memory space> [shape: f32[1], index: 2, kind: input, shape index: {}]
  %s3 = inlined_call_operand.vmem [shape: bf16[4,16], index: 3, kind: input, shape index: {}]
  %s4 = inlined_call_operand.vmem [shape: f32[1,16], index: 4, kind: input, shape index: {}]
  %s5 = inlined_call_operand.vmem [shape: bf16[8,32], index: 5, kind: input, shape index: {}]
  %s6 = inlined_call_operand.vmem [shape: bf16[8,32], index: 6, kind: input, shape index: {}]
  %s7 = inlined_call_operand.vmem [shape: f32[1,32], index: 7, kind: input, shape index: {}]
  %s8 = inlined_call_operand.vmem [shape: bf16[32,16], index: 8, kind: input, shape index: {}]
  %s9 = inlined_call_operand.vmem [shape: f32[1,16], index: 9, kind: input, shape index: {}]
  %s10 = inlined_call_operand.vmem [shape: bf16[8,16], index: 10, kind: input, shape index: {}]
  %s11 = inlined_call_operand.vmem [shape: bf16[8,16], index: 11, kind: input, shape index: {}]
  %s12 = inlined_call_operand.vmem [shape: f32[1,16], index: 12, kind: input, shape index: {}]
  %s13 = inlined_call_operand.vmem [shape: bf16[8,32], index: 13, kind: input, shape index: {}]
  %s14 = inlined_call_operand.vmem [shape: bf16[8,32], index: 14, kind: input, shape index: {}]
  %s15 = inlined_call_operand.vmem [shape: f32[1,32], index: 15, kind: input, shape index: {}]
  %s16 = inlined_call_operand.vmem [shape: bf16[32,16], index: 16, kind: input, shape index: {}]
  %s17 = inlined_call_operand.vmem [shape: f32[1,16], index: 17, kind: input, shape index: {}]
  %s18 = inlined_call_operand.vmem [shape: f32[1,8], index: 18, kind: input, shape index: {}]
  %s19 = inlined_call_operand.vmem [shape: f32[1,8], index: 19, kind: input, shape index: {}]
  %s20 = inlined_call_operand.vmem [shape: f32[1,16], index: 20, kind: input, shape index: {}]
  %s21 = inlined_call_operand.hbm [shape: f32[1,128], index: 21, kind: output, shape index: {}]
  %s22 = sld [smem:[#allocation0]]
  $region94: #{tpu_custom_call.1} parent=0
    _
  %s24 = ssub.s32 1, %s22
  %s25 = scalar_select 0, %s24, %s22
  %26 = sst [smem:[#allocation2]] %s2
  $region1: #{tpu_custom_call.1} parent=0
    #allocation3 [shape = 'u8[512]{0}', space=vmem, size = 0x400, scoped, tag = 'output window, operand 0, single buffered']
    #allocation4 [shape = 's32[1]{0}', space=sflag, size = 0x4, scoped, tag = 'scoped memory for tpu_custom_call.1']
    %27 = vsyncpa [#allocation4], 0
    // Predicated region
    $region2: #{tpu_custom_call.1} parent=1 // pred_check
      _
    $region3: #{tpu_custom_call.1} parent=1 // pred_check_branch
      %29 = sbr.rel (0) target = $region5
    $region4: #{tpu_custom_call.1} parent=1 // pred_region
      _
    $region5: #{tpu_custom_call.1} parent=1 // pred_fallthru
      _
    // Predicated region
    $region6: #{tpu_custom_call.1} parent=1 // pred_check
      _
    $region7: #{tpu_custom_call.1} parent=1 // pred_check_branch
      %31 = sbr.rel (0) target = $region9
    $region8: #{tpu_custom_call.1} parent=1 // pred_region
      _
    $region9: #{tpu_custom_call.1} parent=1 // pred_fallthru
      _
    // Predicated region
    $region10: #{tpu_custom_call.1} parent=1 // pred_check
      _
    $region11: #{tpu_custom_call.1} parent=1 // pred_check_branch
      %33 = sbr.rel (0) target = $region13
    $region12: #{tpu_custom_call.1} parent=1 // pred_region
      _
    $region13: #{tpu_custom_call.1} parent=1 // pred_fallthru
      _
    // Predicated region
    $region14: #{tpu_custom_call.1} parent=1 // pred_check
      _
    $region15: #{tpu_custom_call.1} parent=1 // pred_check_branch
      %35 = sbr.rel (0) target = $region17
    $region16: #{tpu_custom_call.1} parent=1 // pred_region
      _
    $region17: #{tpu_custom_call.1} parent=1 // pred_fallthru
      _
    // Predicated region
    $region18: #{tpu_custom_call.1} parent=1 // pred_check
      _
    $region19: #{tpu_custom_call.1} parent=1 // pred_check_branch
      %37 = sbr.rel (0) target = $region21
    $region20: #{tpu_custom_call.1} parent=1 // pred_region
      _
    $region21: #{tpu_custom_call.1} parent=1 // pred_fallthru
      _
    // Predicated region
    $region22: #{tpu_custom_call.1} parent=1 // pred_check
      _
    $region23: #{tpu_custom_call.1} parent=1 // pred_check_branch
      %39 = sbr.rel (0) target = $region25
    $region24: #{tpu_custom_call.1} parent=1 // pred_region
      _
    $region25: #{tpu_custom_call.1} parent=1 // pred_fallthru
      _
    // Predicated region
    $region26: #{tpu_custom_call.1} parent=1 // pred_check
      _
    $region27: #{tpu_custom_call.1} parent=1 // pred_check_branch
      %41 = sbr.rel (0) target = $region29
    $region28: #{tpu_custom_call.1} parent=1 // pred_region
      _
    $region29: #{tpu_custom_call.1} parent=1 // pred_fallthru
      _
    // Predicated region
    $region30: #{tpu_custom_call.1} parent=1 // pred_check
      _
    $region31: #{tpu_custom_call.1} parent=1 // pred_check_branch
      %43 = sbr.rel (0) target = $region33
    $region32: #{tpu_custom_call.1} parent=1 // pred_region
      _
    $region33: #{tpu_custom_call.1} parent=1 // pred_fallthru
      _
    // Predicated region
    $region34: #{tpu_custom_call.1} parent=1 // pred_check
      _
    $region35: #{tpu_custom_call.1} parent=1 // pred_check_branch
      %45 = sbr.rel (0) target = $region37
    $region36: #{tpu_custom_call.1} parent=1 // pred_region
      _
    $region37: #{tpu_custom_call.1} parent=1 // pred_fallthru
      _
    // Predicated region
    $region38: #{tpu_custom_call.1} parent=1 // pred_check
      _
    $region39: #{tpu_custom_call.1} parent=1 // pred_check_branch
      %47 = sbr.rel (0) target = $region41
    $region40: #{tpu_custom_call.1} parent=1 // pred_region
      _
    $region41: #{tpu_custom_call.1} parent=1 // pred_fallthru
      _
    // Predicated region
    $region42: #{tpu_custom_call.1} parent=1 // pred_check
      _
    $region43: #{tpu_custom_call.1} parent=1 // pred_check_branch
      %49 = sbr.rel (0) target = $region45
    $region44: #{tpu_custom_call.1} parent=1 // pred_region
      _
    $region45: #{tpu_custom_call.1} parent=1 // pred_fallthru
      _
    // Predicated region
    $region46: #{tpu_custom_call.1} parent=1 // pred_check
      _
    $region47: #{tpu_custom_call.1} parent=1 // pred_check_branch
      %51 = sbr.rel (0) target = $region49
    $region48: #{tpu_custom_call.1} parent=1 // pred_region
      _
    $region49: #{tpu_custom_call.1} parent=1 // pred_fallthru
      _
    // Predicated region
    $region50: #{tpu_custom_call.1} parent=1 // pred_check
      _
    $region51: #{tpu_custom_call.1} parent=1 // pred_check_branch
      %53 = sbr.rel (0) target = $region53
    $region52: #{tpu_custom_call.1} parent=1 // pred_region
      _
    $region53: #{tpu_custom_call.1} parent=1 // pred_fallthru
      _
    // Predicated region
    $region54: #{tpu_custom_call.1} parent=1 // pred_check
      _
    $region55: #{tpu_custom_call.1} parent=1 // pred_check_branch
      %55 = sbr.rel (0) target = $region57
    $region56: #{tpu_custom_call.1} parent=1 // pred_region
      _
    $region57: #{tpu_custom_call.1} parent=1 // pred_fallthru
      _
    // Predicated region
    $region58: #{tpu_custom_call.1} parent=1 // pred_check
      _
    $region59: #{tpu_custom_call.1} parent=1 // pred_check_branch
      %57 = sbr.rel (0) target = $region61
    $region60: #{tpu_custom_call.1} parent=1 // pred_region
      _
    $region61: #{tpu_custom_call.1} parent=1 // pred_fallthru
      _
    // Predicated region
    $region62: #{tpu_custom_call.1} parent=1 // pred_check
      _
    $region63: #{tpu_custom_call.1} parent=1 // pred_check_branch
      %59 = sbr.rel (0) target = $region65
    $region64: #{tpu_custom_call.1} parent=1 // pred_region
      _
    $region65: #{tpu_custom_call.1} parent=1 // pred_fallthru
      _
    // Predicated region
    $region66: #{tpu_custom_call.1} parent=1 // pred_check
      _
    $region67: #{tpu_custom_call.1} parent=1 // pred_check_branch
      %61 = sbr.rel (0) target = $region69
    $region68: #{tpu_custom_call.1} parent=1 // pred_region
      _
    $region69: #{tpu_custom_call.1} parent=1 // pred_fallthru
      _
    // Predicated region
    $region70: #{tpu_custom_call.1} parent=1 // pred_check
      _
    $region71: #{tpu_custom_call.1} parent=1 // pred_check_branch
      %63 = sbr.rel (0) target = $region73
    $region72: #{tpu_custom_call.1} parent=1 // pred_region
      _
    $region73: #{tpu_custom_call.1} parent=1 // pred_fallthru
      _
    // Predicated region
    $region74: #{tpu_custom_call.1} parent=1 // pred_check
      _
    $region75: #{tpu_custom_call.1} parent=1 // pred_check_branch
      %65 = sbr.rel (0) target = $region77
    $region76: #{tpu_custom_call.1} parent=1 // pred_region
      _
    $region77: #{tpu_custom_call.1} parent=1 // pred_fallthru
      _
    // Predicated region
    $region78: #{tpu_custom_call.1} parent=1 // pred_check
      _
    $region79: #{tpu_custom_call.1} parent=1 // pred_check_branch
      %67 = sbr.rel (0) target = $region81
    $region80: #{tpu_custom_call.1} parent=1 // pred_region
      _
    $region81: #{tpu_custom_call.1} parent=1 // pred_fallthru
      _
    // Predicated region
    $region82: #{tpu_custom_call.1} parent=1 // pred_check
      _
    $region83: #{tpu_custom_call.1} parent=1 // pred_check_branch
      %69 = sbr.rel (0) target = $region85
    $region84: #{tpu_custom_call.1} parent=1 // pred_region
      _
    $region85: #{tpu_custom_call.1} parent=1 // pred_fallthru
      _
    %v71 = vld [vmem:[%s0] sm:$0xf]
    %v72 = vld [vmem:[%s0 + $0x4] sm:$0xf]
    %v73 = vld [vmem:[%s0 + $0x8] sm:$0xf]
    %v74 = vld [vmem:[%s0 + $0xc] sm:$0xf]
    %v75 = vld [vmem:[%s0 + $0x10] sm:$0xf]
    %v76 = vld [vmem:[%s0 + $0x14] sm:$0xf]
    %v77 = vld [vmem:[%s0 + $0x18] sm:$0xf]
    %v78 = vld [vmem:[%s0 + $0x1c] sm:$0xf]
    %v79 = vld [vmem:[%s0 + $0x20] sm:$0xf]
    %v80 = vld [vmem:[%s0 + $0x24] sm:$0xf]
    %v81 = vld [vmem:[%s0 + $0x28] sm:$0xf]
    %v82 = vld [vmem:[%s0 + $0x2c] sm:$0xf]
    %v83 = vld [vmem:[%s0 + $0x30] sm:$0xf]
    %v84 = vld [vmem:[%s0 + $0x34] sm:$0xf]
    %v85 = vld [vmem:[%s0 + $0x38] sm:$0xf]
    %v86 = vld [vmem:[%s0 + $0x3c] sm:$0xf]
    %v87 = vld [vmem:[%s3] sm:$0x3]
    %v88 = vld [vmem:[%s4] sm:$0x1]
    %v90 = vlaneseq
    %v91 = vshrl.u32 %v90, 7
    %v92 = vsub.s32 0, %v91
    %v93 = vrot.slane %v88, %v92
    %v111 = vunpack.c.l.b16 %v71
    %v112 = vunpack.c.l.b16 %v72
    %v113 = vunpack.c.l.b16 %v73
    %v114 = vunpack.c.l.b16 %v74
    %v115 = vunpack.c.l.b16 %v75
    %v116 = vunpack.c.l.b16 %v76
    %v117 = vunpack.c.l.b16 %v77
    %v118 = vunpack.c.l.b16 %v78
    %v119 = vunpack.c.l.b16 %v79
    %v120 = vunpack.c.l.b16 %v80
    %v121 = vunpack.c.l.b16 %v81
    %v122 = vunpack.c.l.b16 %v82
    %v123 = vunpack.c.l.b16 %v83
    %v124 = vunpack.c.l.b16 %v84
    %v125 = vunpack.c.l.b16 %v85
    %v126 = vunpack.c.l.b16 %v86
    %v127 = vpack.c.b16 %v112, %v111
    %v128 = vpack.c.b16 %v114, %v113
    %v129 = vpack.c.b16 %v116, %v115
    %v130 = vpack.c.b16 %v118, %v117
    %v131 = vpack.c.b16 %v120, %v119
    %v132 = vpack.c.b16 %v122, %v121
    %v133 = vpack.c.b16 %v124, %v123
    %v134 = vpack.c.b16 %v126, %v125
    %vm135 = vcmask 31744
    %v137 = vsel %vm135, %v127, 0
    %v140 = vsel %vm135, %v128, 0
    %v143 = vsel %vm135, %v129, 0
    %v146 = vsel %vm135, %v130, 0
    %v149 = vsel %vm135, %v131, 0
    %v152 = vsel %vm135, %v132, 0
    %v155 = vsel %vm135, %v133, 0
    %v158 = vsel %vm135, %v134, 0
    %vm160 = vcmask 1041408
    %v162 = vsel %vm160, %v87, 0
    %164 = vmatprep.subr.bf16.mxu0 0
    %165 = vmatpush1.bf16.msra.mxu0 %v162
    %166 = vmatprep.subr.bf16.mxu0 0
    %167 = vmatpush1.bf16.msra.mxu0 0
    %168 = vmatprep.subr.bf16.mxu0 0
    %169 = vmatpush1.bf16.msra.mxu0 0
    %170 = vmatprep.subr.bf16.mxu0 0
    %171 = vmatpush1.bf16.msra.mxu0 0
    %172 = vmatprep.subr.bf16.mxu0 0
    %173 = vmatpush1.bf16.msra.mxu0 0
    %174 = vmatprep.subr.bf16.mxu0 0
    %175 = vmatpush1.bf16.msra.mxu0 0
    %176 = vmatprep.subr.bf16.mxu0 0
    %177 = vmatpush1.bf16.msra.mxu0 0
    %178 = vmatprep.subr.bf16.mxu0 0
    %179 = vmatpush1.bf16.msra.mxu0 0
    %180 = vmatprep.subr.bf16.mxu0 0
    %181 = vmatpush1.bf16.msra.mxu0 0
    %182 = vmatprep.subr.bf16.mxu0 0
    %183 = vmatpush1.bf16.msra.mxu0 0
    %184 = vmatprep.subr.bf16.mxu0 0
    %185 = vmatpush1.bf16.msra.mxu0 0
    %186 = vmatprep.subr.bf16.mxu0 0
    %187 = vmatpush1.bf16.msra.mxu0 0
    %188 = vmatprep.subr.bf16.mxu0 0
    %189 = vmatpush1.bf16.msra.mxu0 0
    %190 = vmatprep.subr.bf16.mxu0 0
    %191 = vmatpush1.bf16.msra.mxu0 0
    %192 = vmatprep.subr.bf16.mxu0 0
    %193 = vmatpush1.bf16.msra.mxu0 0
    %194 = vmatprep.subr.bf16.mxu0 0
    %195 = vmatpush1.bf16.msra.mxu0 0
    %196 = vmatprep.mubr.bf16.mxu0 0
    %197 = vmatmul.mubr.bf16.gmra.mrb[0].mxu0 %v137
    %v198 = vpop.f32.mrb[0].mxu0
    %v199 = vadd.f32 %v93, %v198
    %v200 = vpop.f32.mrb[0].mxu0
    %v201 = vpop.f32.mrb[0].mxu0
    %v202 = vadd.f32 %v93, %v201
    %v203 = vpop.f32.mrb[0].mxu0
    %204 = vmatprep.mubr.bf16.mxu0 0
    %205 = vmatmul.mubr.bf16.gmra.mrb[0].mxu0 %v140
    %v206 = vpop.f32.mrb[0].mxu0
    %v207 = vadd.f32 %v93, %v206
    %v208 = vpop.f32.mrb[0].mxu0
    %v209 = vpop.f32.mrb[0].mxu0
    %v210 = vadd.f32 %v93, %v209
    %v211 = vpop.f32.mrb[0].mxu0
    %212 = vmatprep.mubr.bf16.mxu0 0
    %213 = vmatmul.mubr.bf16.gmra.mrb[0].mxu0 %v143
    %v214 = vpop.f32.mrb[0].mxu0
    %v215 = vadd.f32 %v93, %v214
    %v216 = vpop.f32.mrb[0].mxu0
    %v217 = vpop.f32.mrb[0].mxu0
    %v218 = vadd.f32 %v93, %v217
    %v219 = vpop.f32.mrb[0].mxu0
    %220 = vmatprep.mubr.bf16.mxu0 0
    %221 = vmatmul.mubr.bf16.gmra.mrb[0].mxu0 %v146
    %v222 = vpop.f32.mrb[0].mxu0
    %v223 = vadd.f32 %v93, %v222
    %v224 = vpop.f32.mrb[0].mxu0
    %v225 = vpop.f32.mrb[0].mxu0
    %v226 = vadd.f32 %v93, %v225
    %v227 = vpop.f32.mrb[0].mxu0
    %228 = vmatprep.mubr.bf16.mxu0 0
    %229 = vmatmul.mubr.bf16.gmra.mrb[0].mxu0 %v149
    %v230 = vpop.f32.mrb[0].mxu0
    %v231 = vadd.f32 %v93, %v230
    %v232 = vpop.f32.mrb[0].mxu0
    %v233 = vpop.f32.mrb[0].mxu0
    %v234 = vadd.f32 %v93, %v233
    %v235 = vpop.f32.mrb[0].mxu0
    %236 = vmatprep.mubr.bf16.mxu0 0
    %237 = vmatmul.mubr.bf16.gmra.mrb[0].mxu0 %v152
    %v238 = vpop.f32.mrb[0].mxu0
    %v239 = vadd.f32 %v93, %v238
    %v240 = vpop.f32.mrb[0].mxu0
    %v241 = vpop.f32.mrb[0].mxu0
    %v242 = vadd.f32 %v93, %v241
    %v243 = vpop.f32.mrb[0].mxu0
    %244 = vmatprep.mubr.bf16.mxu0 0
    %245 = vmatmul.mubr.bf16.gmra.mrb[0].mxu0 %v155
    %v246 = vpop.f32.mrb[0].mxu0
    %v247 = vadd.f32 %v93, %v246
    %v248 = vpop.f32.mrb[0].mxu0
    %v249 = vpop.f32.mrb[0].mxu0
    %v250 = vadd.f32 %v93, %v249
    %v251 = vpop.f32.mrb[0].mxu0
    %252 = vmatprep.mubr.bf16.mxu0 0
    %253 = vmatmul.mubr.bf16.gmra.mrb[0].mxu0 %v158
    %v254 = vpop.f32.mrb[0].mxu0
    %v255 = vadd.f32 %v93, %v254
    %v256 = vpop.f32.mrb[0].mxu0
    %v257 = vpop.f32.mrb[0].mxu0
    %v258 = vadd.f32 %v93, %v257
    %v259 = vpop.f32.mrb[0].mxu0
    %260 = vdwg.mxu0
    %v261 = vtanh.pop %v199
    %v262 = vtanh.pop %v202
    %v263 = vtanh.pop %v207
    %v264 = vtanh.pop %v210
    %v265 = vtanh.pop %v215
    %v266 = vtanh.pop %v218
    %v267 = vtanh.pop %v223
    %v268 = vtanh.pop %v226
    %v269 = vtanh.pop %v231
    %v270 = vtanh.pop %v234
    %v271 = vtanh.pop %v239
    %v272 = vtanh.pop %v242
    %v273 = vtanh.pop %v247
    %v274 = vtanh.pop %v250
    %v275 = vtanh.pop %v255
    %v276 = vtanh.pop %v258
    %v277 = vld [vmem:[%s1] sm:$0xf]
    %v278 = vld [vmem:[%s1 + $0x4] sm:$0xf]
    %v279 = vld [vmem:[%s1 + $0x8] sm:$0xf]
    %v280 = vld [vmem:[%s1 + $0xc] sm:$0xf]
    %v281 = vld [vmem:[%s1 + $0x10] sm:$0xf]
    %v282 = vld [vmem:[%s1 + $0x14] sm:$0xf]
    %v283 = vld [vmem:[%s1 + $0x18] sm:$0xf]
    %v284 = vld [vmem:[%s1 + $0x1c] sm:$0xf]
    %v285 = vld [vmem:[%s1 + $0x20] sm:$0xf]
    %v286 = vld [vmem:[%s1 + $0x24] sm:$0xf]
    %v287 = vld [vmem:[%s1 + $0x28] sm:$0xf]
    %v288 = vld [vmem:[%s1 + $0x2c] sm:$0xf]
    %v289 = vld [vmem:[%s1 + $0x30] sm:$0xf]
    %v290 = vld [vmem:[%s1 + $0x34] sm:$0xf]
    %v291 = vld [vmem:[%s1 + $0x38] sm:$0xf]
    %v292 = vld [vmem:[%s1 + $0x3c] sm:$0xf]
    %v293 = vpack.c.bf16 %v262, %v261
    %v294 = vpack.c.bf16 %v264, %v263
    %v295 = vpack.c.bf16 %v266, %v265
    %v296 = vpack.c.bf16 %v268, %v267
    %v297 = vpack.c.bf16 %v270, %v269
    %v298 = vpack.c.bf16 %v272, %v271
    %v299 = vpack.c.bf16 %v274, %v273
    %v300 = vpack.c.bf16 %v276, %v275
    %v301 = vld [vmem:[%s5] sm:$0xf]
    %v302 = vld [vmem:[%s6] sm:$0xf]
    %v319 = vunpack.c.l.b16 %v277
    %v320 = vunpack.c.l.b16 %v278
    %v321 = vunpack.c.l.b16 %v279
    %v322 = vunpack.c.l.b16 %v280
    %v323 = vunpack.c.l.b16 %v281
    %v324 = vunpack.c.l.b16 %v282
    %v325 = vunpack.c.l.b16 %v283
    %v326 = vunpack.c.l.b16 %v284
    %v327 = vunpack.c.l.b16 %v285
    %v328 = vunpack.c.l.b16 %v286
    %v329 = vunpack.c.l.b16 %v287
    %v330 = vunpack.c.l.b16 %v288
    %v331 = vunpack.c.l.b16 %v289
    %v332 = vunpack.c.l.b16 %v290
    %v333 = vunpack.c.l.b16 %v291
    %v334 = vunpack.c.l.b16 %v292
    %v335 = vpack.c.b16 %v320, %v319
    %v336 = vpack.c.b16 %v322, %v321
    %v337 = vpack.c.b16 %v324, %v323
    %v338 = vpack.c.b16 %v326, %v325
    %v339 = vpack.c.b16 %v328, %v327
    %v340 = vpack.c.b16 %v330, %v329
    %v341 = vpack.c.b16 %v332, %v331
    %v342 = vpack.c.b16 %v334, %v333
    %vm343 = vcmask 64512
    %v345 = vsel %vm343, %v335, 0
    %v348 = vsel %vm343, %v336, 0
    %v351 = vsel %vm343, %v337, 0
    %v354 = vsel %vm343, %v338, 0
    %v357 = vsel %vm343, %v339, 0
    %v360 = vsel %vm343, %v340, 0
    %v363 = vsel %vm343, %v341, 0
    %v366 = vsel %vm343, %v342, 0
    %vm368 = vcmask 1043456
    %v370 = vsel %vm368, %v302, 0
    %372 = vmatprep.subr.bf16.mxu0 0
    %373 = vmatpush1.bf16.msra.mxu0 %v370
    %374 = vmatprep.subr.bf16.mxu0 0
    %375 = vmatpush1.bf16.msra.mxu0 0
    %376 = vmatprep.subr.bf16.mxu0 0
    %377 = vmatpush1.bf16.msra.mxu0 0
    %378 = vmatprep.subr.bf16.mxu0 0
    %379 = vmatpush1.bf16.msra.mxu0 0
    %380 = vmatprep.subr.bf16.mxu0 0
    %381 = vmatpush1.bf16.msra.mxu0 0
    %382 = vmatprep.subr.bf16.mxu0 0
    %383 = vmatpush1.bf16.msra.mxu0 0
    %384 = vmatprep.subr.bf16.mxu0 0
    %385 = vmatpush1.bf16.msra.mxu0 0
    %386 = vmatprep.subr.bf16.mxu0 0
    %387 = vmatpush1.bf16.msra.mxu0 0
    %388 = vmatprep.subr.bf16.mxu0 0
    %389 = vmatpush1.bf16.msra.mxu0 0
    %390 = vmatprep.subr.bf16.mxu0 0
    %391 = vmatpush1.bf16.msra.mxu0 0
    %392 = vmatprep.subr.bf16.mxu0 0
    %393 = vmatpush1.bf16.msra.mxu0 0
    %394 = vmatprep.subr.bf16.mxu0 0
    %395 = vmatpush1.bf16.msra.mxu0 0
    %396 = vmatprep.subr.bf16.mxu0 0
    %397 = vmatpush1.bf16.msra.mxu0 0
    %398 = vmatprep.subr.bf16.mxu0 0
    %399 = vmatpush1.bf16.msra.mxu0 0
    %400 = vmatprep.subr.bf16.mxu0 0
    %401 = vmatpush1.bf16.msra.mxu0 0
    %402 = vmatprep.subr.bf16.mxu0 0
    %403 = vmatpush1.bf16.msra.mxu0 0
    %404 = vmatprep.mubr.bf16.mxu0 0
    %405 = vmatmul.mubr.bf16.gmra.mrb[0].mxu0 %v345
    %v406 = vpop.f32.mrb[0].mxu0
    %v407 = vadd.f32 0.0, %v406
    %v408 = vpop.f32.mrb[0].mxu0
    %v409 = vpop.f32.mrb[0].mxu0
    %v410 = vadd.f32 0.0, %v409
    %v411 = vpop.f32.mrb[0].mxu0
    %412 = vmatprep.mubr.bf16.mxu0 0
    %413 = vmatmul.mubr.bf16.gmra.mrb[0].mxu0 %v348
    %v414 = vpop.f32.mrb[0].mxu0
    %v415 = vadd.f32 0.0, %v414
    %v416 = vpop.f32.mrb[0].mxu0
    %v417 = vpop.f32.mrb[0].mxu0
    %v418 = vadd.f32 0.0, %v417
    %v419 = vpop.f32.mrb[0].mxu0
    %420 = vmatprep.mubr.bf16.mxu0 0
    %421 = vmatmul.mubr.bf16.gmra.mrb[0].mxu0 %v351
    %v422 = vpop.f32.mrb[0].mxu0
    %v423 = vadd.f32 0.0, %v422
    %v424 = vpop.f32.mrb[0].mxu0
    %v425 = vpop.f32.mrb[0].mxu0
    %v426 = vadd.f32 0.0, %v425
    %v427 = vpop.f32.mrb[0].mxu0
    %428 = vmatprep.mubr.bf16.mxu0 0
    %429 = vmatmul.mubr.bf16.gmra.mrb[0].mxu0 %v354
    %v430 = vpop.f32.mrb[0].mxu0
    %v431 = vadd.f32 0.0, %v430
    %v432 = vpop.f32.mrb[0].mxu0
    %v433 = vpop.f32.mrb[0].mxu0
    %v434 = vadd.f32 0.0, %v433
    %v435 = vpop.f32.mrb[0].mxu0
    %436 = vmatprep.mubr.bf16.mxu0 0
    %437 = vmatmul.mubr.bf16.gmra.mrb[0].mxu0 %v357
    %v438 = vpop.f32.mrb[0].mxu0
    %v439 = vadd.f32 0.0, %v438
    %v440 = vpop.f32.mrb[0].mxu0
    %v441 = vpop.f32.mrb[0].mxu0
    %v442 = vadd.f32 0.0, %v441
    %v443 = vpop.f32.mrb[0].mxu0
    %444 = vmatprep.mubr.bf16.mxu0 0
    %445 = vmatmul.mubr.bf16.gmra.mrb[0].mxu0 %v360
    %v446 = vpop.f32.mrb[0].mxu0
    %v447 = vadd.f32 0.0, %v446
    %v448 = vpop.f32.mrb[0].mxu0
    %v449 = vpop.f32.mrb[0].mxu0
    %v450 = vadd.f32 0.0, %v449
    %v451 = vpop.f32.mrb[0].mxu0
    %452 = vmatprep.mubr.bf16.mxu0 0
    %453 = vmatmul.mubr.bf16.gmra.mrb[0].mxu0 %v363
    %v454 = vpop.f32.mrb[0].mxu0
    %v455 = vadd.f32 0.0, %v454
    %v456 = vpop.f32.mrb[0].mxu0
    %v457 = vpop.f32.mrb[0].mxu0
    %v458 = vadd.f32 0.0, %v457
    %v459 = vpop.f32.mrb[0].mxu0
    %460 = vmatprep.mubr.bf16.mxu0 0
    %461 = vmatmul.mubr.bf16.gmra.mrb[0].mxu0 %v366
    %v462 = vpop.f32.mrb[0].mxu0
    %v463 = vadd.f32 0.0, %v462
    %v464 = vpop.f32.mrb[0].mxu0
    %v465 = vpop.f32.mrb[0].mxu0
    %v466 = vadd.f32 0.0, %v465
    %v467 = vpop.f32.mrb[0].mxu0
    %468 = vdwg.mxu0
    %v470 = vsel %vm343, %v293, 0
    %v473 = vsel %vm343, %v294, 0
    %v476 = vsel %vm343, %v295, 0
    %v479 = vsel %vm343, %v296, 0
    %v482 = vsel %vm343, %v297, 0
    %v485 = vsel %vm343, %v298, 0
    %v488 = vsel %vm343, %v299, 0
    %v491 = vsel %vm343, %v300, 0
    %v494 = vsel %vm368, %v301, 0
    %496 = vmatprep.subr.bf16.mxu0 0
    %497 = vmatpush1.bf16.msra.mxu0 %v494
    %498 = vmatprep.subr.bf16.mxu0 0
    %499 = vmatpush1.bf16.msra.mxu0 0
    %500 = vmatprep.subr.bf16.mxu0 0
    %501 = vmatpush1.bf16.msra.mxu0 0
    %502 = vmatprep.subr.bf16.mxu0 0
    %503 = vmatpush1.bf16.msra.mxu0 0
    %504 = vmatprep.subr.bf16.mxu0 0
    %505 = vmatpush1.bf16.msra.mxu0 0
    %506 = vmatprep.subr.bf16.mxu0 0
    %507 = vmatpush1.bf16.msra.mxu0 0
    %508 = vmatprep.subr.bf16.mxu0 0
    %509 = vmatpush1.bf16.msra.mxu0 0
    %510 = vmatprep.subr.bf16.mxu0 0
    %511 = vmatpush1.bf16.msra.mxu0 0
    %512 = vmatprep.subr.bf16.mxu0 0
    %513 = vmatpush1.bf16.msra.mxu0 0
    %514 = vmatprep.subr.bf16.mxu0 0
    %515 = vmatpush1.bf16.msra.mxu0 0
    %516 = vmatprep.subr.bf16.mxu0 0
    %517 = vmatpush1.bf16.msra.mxu0 0
    %518 = vmatprep.subr.bf16.mxu0 0
    %519 = vmatpush1.bf16.msra.mxu0 0
    %520 = vmatprep.subr.bf16.mxu0 0
    %521 = vmatpush1.bf16.msra.mxu0 0
    %522 = vmatprep.subr.bf16.mxu0 0
    %523 = vmatpush1.bf16.msra.mxu0 0
    %524 = vmatprep.subr.bf16.mxu0 0
    %525 = vmatpush1.bf16.msra.mxu0 0
    %526 = vmatprep.subr.bf16.mxu0 0
    %527 = vmatpush1.bf16.msra.mxu0 0
    %528 = vmatprep.mubr.bf16.mxu0 0
    %529 = vmatmul.mubr.bf16.gmra.mrb[0].mxu0 %v470
    %v530 = vpop.f32.mrb[0].mxu0
    %v531 = vadd.f32 %v407, %v530
    %v532 = vpop.f32.mrb[0].mxu0
    %v533 = vpop.f32.mrb[0].mxu0
    %v534 = vadd.f32 %v410, %v533
    %v535 = vpop.f32.mrb[0].mxu0
    %536 = vmatprep.mubr.bf16.mxu0 0
    %537 = vmatmul.mubr.bf16.gmra.mrb[0].mxu0 %v473
    %v538 = vpop.f32.mrb[0].mxu0
    %v539 = vadd.f32 %v415, %v538
    %v540 = vpop.f32.mrb[0].mxu0
    %v541 = vpop.f32.mrb[0].mxu0
    %v542 = vadd.f32 %v418, %v541
    %v543 = vpop.f32.mrb[0].mxu0
    %544 = vmatprep.mubr.bf16.mxu0 0
    %545 = vmatmul.mubr.bf16.gmra.mrb[0].mxu0 %v476
    %v546 = vpop.f32.mrb[0].mxu0
    %v547 = vadd.f32 %v423, %v546
    %v548 = vpop.f32.mrb[0].mxu0
    %v549 = vpop.f32.mrb[0].mxu0
    %v550 = vadd.f32 %v426, %v549
    %v551 = vpop.f32.mrb[0].mxu0
    %552 = vmatprep.mubr.bf16.mxu0 0
    %553 = vmatmul.mubr.bf16.gmra.mrb[0].mxu0 %v479
    %v554 = vpop.f32.mrb[0].mxu0
    %v555 = vadd.f32 %v431, %v554
    %v556 = vpop.f32.mrb[0].mxu0
    %v557 = vpop.f32.mrb[0].mxu0
    %v558 = vadd.f32 %v434, %v557
    %v559 = vpop.f32.mrb[0].mxu0
    %560 = vmatprep.mubr.bf16.mxu0 0
    %561 = vmatmul.mubr.bf16.gmra.mrb[0].mxu0 %v482
    %v562 = vpop.f32.mrb[0].mxu0
    %v563 = vadd.f32 %v439, %v562
    %v564 = vpop.f32.mrb[0].mxu0
    %v565 = vpop.f32.mrb[0].mxu0
    %v566 = vadd.f32 %v442, %v565
    %v567 = vpop.f32.mrb[0].mxu0
    %568 = vmatprep.mubr.bf16.mxu0 0
    %569 = vmatmul.mubr.bf16.gmra.mrb[0].mxu0 %v485
    %v570 = vpop.f32.mrb[0].mxu0
    %v571 = vadd.f32 %v447, %v570
    %v572 = vpop.f32.mrb[0].mxu0
    %v573 = vpop.f32.mrb[0].mxu0
    %v574 = vadd.f32 %v450, %v573
    %v575 = vpop.f32.mrb[0].mxu0
    %576 = vmatprep.mubr.bf16.mxu0 0
    %577 = vmatmul.mubr.bf16.gmra.mrb[0].mxu0 %v488
    %v578 = vpop.f32.mrb[0].mxu0
    %v579 = vadd.f32 %v455, %v578
    %v580 = vpop.f32.mrb[0].mxu0
    %v581 = vpop.f32.mrb[0].mxu0
    %v582 = vadd.f32 %v458, %v581
    %v583 = vpop.f32.mrb[0].mxu0
    %584 = vmatprep.mubr.bf16.mxu0 0
    %585 = vmatmul.mubr.bf16.gmra.mrb[0].mxu0 %v491
    %v586 = vpop.f32.mrb[0].mxu0
    %v587 = vadd.f32 %v463, %v586
    %v588 = vpop.f32.mrb[0].mxu0
    %v589 = vpop.f32.mrb[0].mxu0
    %v590 = vadd.f32 %v466, %v589
    %v591 = vpop.f32.mrb[0].mxu0
    %592 = vdwg.mxu0
    %v593 = vld [vmem:[%s7] sm:$0x1]
    %v595 = vlaneseq
    %v596 = vshrl.u32 %v595, 7
    %v597 = vsub.s32 0, %v596
    %v598 = vrot.slane %v593, %v597
    %v600 = vadd.f32 %v531, %v598
    %v601 = vadd.f32 %v534, %v598
    %v602 = vadd.f32 %v539, %v598
    %v603 = vadd.f32 %v542, %v598
    %v604 = vadd.f32 %v547, %v598
    %v605 = vadd.f32 %v550, %v598
    %v606 = vadd.f32 %v555, %v598
    %v607 = vadd.f32 %v558, %v598
    %v608 = vadd.f32 %v563, %v598
    %v609 = vadd.f32 %v566, %v598
    %v610 = vadd.f32 %v571, %v598
    %v611 = vadd.f32 %v574, %v598
    %v612 = vadd.f32 %v579, %v598
    %v613 = vadd.f32 %v582, %v598
    %v614 = vadd.f32 %v587, %v598
    %v615 = vadd.f32 %v590, %v598
    %v616 = vmax.f32 %v600, 0.0
    %v617 = vmax.f32 %v601, 0.0
    %v618 = vmax.f32 %v602, 0.0
    %v619 = vmax.f32 %v603, 0.0
    %v620 = vmax.f32 %v604, 0.0
    %v621 = vmax.f32 %v605, 0.0
    %v622 = vmax.f32 %v606, 0.0
    %v623 = vmax.f32 %v607, 0.0
    %v624 = vmax.f32 %v608, 0.0
    %v625 = vmax.f32 %v609, 0.0
    %v626 = vmax.f32 %v610, 0.0
    %v627 = vmax.f32 %v611, 0.0
    %v628 = vmax.f32 %v612, 0.0
    %v629 = vmax.f32 %v613, 0.0
    %v630 = vmax.f32 %v614, 0.0
    %v631 = vmax.f32 %v615, 0.0
    %v632 = vpack.c.bf16 %v617, %v616
    %v633 = vpack.c.bf16 %v619, %v618
    %v634 = vpack.c.bf16 %v621, %v620
    %v635 = vpack.c.bf16 %v623, %v622
    %v636 = vpack.c.bf16 %v625, %v624
    %v637 = vpack.c.bf16 %v627, %v626
    %v638 = vpack.c.bf16 %v629, %v628
    %v639 = vpack.c.bf16 %v631, %v630
    %v640 = vld [vmem:[%s8] sm:$0xf]
    %v641 = vld [vmem:[%s8 + $0x4] sm:$0xf]
    %v642 = vld [vmem:[%s8 + $0x8] sm:$0xf]
    %v643 = vld [vmem:[%s8 + $0xc] sm:$0xf]
    %v644 = vld [vmem:[%s9] sm:$0x1]
    %v646 = vlaneseq
    %v647 = vshrl.u32 %v646, 7
    %v648 = vsub.s32 0, %v647
    %v649 = vrot.slane %v644, %v648
    %v655 = vunpack.c.l.b16 %v640
    %v656 = vunpack.c.l.b16 %v641
    %v657 = vunpack.c.l.b16 %v642
    %v658 = vunpack.c.l.b16 %v643
    %v659 = vpack.c.b16 %v656, %v655
    %v660 = vpack.c.b16 %v658, %v657
    %vm663 = vcmask 261120
    %v665 = vsel %vm663, %v632, 0
    %v668 = vsel %vm663, %v633, 0
    %v671 = vsel %vm663, %v634, 0
    %v674 = vsel %vm663, %v635, 0
    %v677 = vsel %vm663, %v636, 0
    %v680 = vsel %vm663, %v637, 0
    %v683 = vsel %vm663, %v638, 0
    %v686 = vsel %vm663, %v639, 0
    %688 = vmatprep.subr.bf16.mxu0 0
    %689 = vmatpush1.bf16.msra.mxu0 %v659
    %690 = vmatprep.subr.bf16.mxu0 0
    %691 = vmatpush1.bf16.msra.mxu0 %v660
    %692 = vmatprep.subr.bf16.mxu0 0
    %693 = vmatpush1.bf16.msra.mxu0 0
    %694 = vmatprep.subr.bf16.mxu0 0
    %695 = vmatpush1.bf16.msra.mxu0 0
    %696 = vmatprep.subr.bf16.mxu0 0
    %697 = vmatpush1.bf16.msra.mxu0 0
    %698 = vmatprep.subr.bf16.mxu0 0
    %699 = vmatpush1.bf16.msra.mxu0 0
    %700 = vmatprep.subr.bf16.mxu0 0
    %701 = vmatpush1.bf16.msra.mxu0 0
    %702 = vmatprep.subr.bf16.mxu0 0
    %703 = vmatpush1.bf16.msra.mxu0 0
    %704 = vmatprep.subr.bf16.mxu0 0
    %705 = vmatpush1.bf16.msra.mxu0 0
    %706 = vmatprep.subr.bf16.mxu0 0
    %707 = vmatpush1.bf16.msra.mxu0 0
    %708 = vmatprep.subr.bf16.mxu0 0
    %709 = vmatpush1.bf16.msra.mxu0 0
    %710 = vmatprep.subr.bf16.mxu0 0
    %711 = vmatpush1.bf16.msra.mxu0 0
    %712 = vmatprep.subr.bf16.mxu0 0
    %713 = vmatpush1.bf16.msra.mxu0 0
    %714 = vmatprep.subr.bf16.mxu0 0
    %715 = vmatpush1.bf16.msra.mxu0 0
    %716 = vmatprep.subr.bf16.mxu0 0
    %717 = vmatpush1.bf16.msra.mxu0 0
    %718 = vmatprep.subr.bf16.mxu0 0
    %719 = vmatpush1.bf16.msra.mxu0 0
    %720 = vmatprep.mubr.bf16.mxu0 0
    %721 = vmatmul.mubr.bf16.gmra.mrb[0].mxu0 %v665
    %v722 = vpop.f32.mrb[0].mxu0
    %v723 = vadd.f32 %v649, %v722
    %v724 = vpop.f32.mrb[0].mxu0
    %v725 = vpop.f32.mrb[0].mxu0
    %v726 = vadd.f32 %v649, %v725
    %v727 = vpop.f32.mrb[0].mxu0
    %728 = vmatprep.mubr.bf16.mxu0 0
    %729 = vmatmul.mubr.bf16.gmra.mrb[0].mxu0 %v668
    %v730 = vpop.f32.mrb[0].mxu0
    %v731 = vadd.f32 %v649, %v730
    %v732 = vpop.f32.mrb[0].mxu0
    %v733 = vpop.f32.mrb[0].mxu0
    %v734 = vadd.f32 %v649, %v733
    %v735 = vpop.f32.mrb[0].mxu0
    %736 = vmatprep.mubr.bf16.mxu0 0
    %737 = vmatmul.mubr.bf16.gmra.mrb[0].mxu0 %v671
    %v738 = vpop.f32.mrb[0].mxu0
    %v739 = vadd.f32 %v649, %v738
    %v740 = vpop.f32.mrb[0].mxu0
    %v741 = vpop.f32.mrb[0].mxu0
    %v742 = vadd.f32 %v649, %v741
    %v743 = vpop.f32.mrb[0].mxu0
    %744 = vmatprep.mubr.bf16.mxu0 0
    %745 = vmatmul.mubr.bf16.gmra.mrb[0].mxu0 %v674
    %v746 = vpop.f32.mrb[0].mxu0
    %v747 = vadd.f32 %v649, %v746
    %v748 = vpop.f32.mrb[0].mxu0
    %v749 = vpop.f32.mrb[0].mxu0
    %v750 = vadd.f32 %v649, %v749
    %v751 = vpop.f32.mrb[0].mxu0
    %752 = vmatprep.mubr.bf16.mxu0 0
    %753 = vmatmul.mubr.bf16.gmra.mrb[0].mxu0 %v677
    %v754 = vpop.f32.mrb[0].mxu0
    %v755 = vadd.f32 %v649, %v754
    %v756 = vpop.f32.mrb[0].mxu0
    %v757 = vpop.f32.mrb[0].mxu0
    %v758 = vadd.f32 %v649, %v757
    %v759 = vpop.f32.mrb[0].mxu0
    %760 = vmatprep.mubr.bf16.mxu0 0
    %761 = vmatmul.mubr.bf16.gmra.mrb[0].mxu0 %v680
    %v762 = vpop.f32.mrb[0].mxu0
    %v763 = vadd.f32 %v649, %v762
    %v764 = vpop.f32.mrb[0].mxu0
    %v765 = vpop.f32.mrb[0].mxu0
    %v766 = vadd.f32 %v649, %v765
    %v767 = vpop.f32.mrb[0].mxu0
    %768 = vmatprep.mubr.bf16.mxu0 0
    %769 = vmatmul.mubr.bf16.gmra.mrb[0].mxu0 %v683
    %v770 = vpop.f32.mrb[0].mxu0
    %v771 = vadd.f32 %v649, %v770
    %v772 = vpop.f32.mrb[0].mxu0
    %v773 = vpop.f32.mrb[0].mxu0
    %v774 = vadd.f32 %v649, %v773
    %v775 = vpop.f32.mrb[0].mxu0
    %776 = vmatprep.mubr.bf16.mxu0 0
    %777 = vmatmul.mubr.bf16.gmra.mrb[0].mxu0 %v686
    %v778 = vpop.f32.mrb[0].mxu0
    %v779 = vadd.f32 %v649, %v778
    %v780 = vpop.f32.mrb[0].mxu0
    %v781 = vpop.f32.mrb[0].mxu0
    %v782 = vadd.f32 %v649, %v781
    %v783 = vpop.f32.mrb[0].mxu0
    %784 = vdwg.mxu0
    %v785 = vmul.f32 %v723, 0.1
    %v786 = vmul.f32 %v726, 0.1
    %v787 = vmul.f32 %v731, 0.1
    %v788 = vmul.f32 %v734, 0.1
    %v789 = vmul.f32 %v739, 0.1
    %v790 = vmul.f32 %v742, 0.1
    %v791 = vmul.f32 %v747, 0.1
    %v792 = vmul.f32 %v750, 0.1
    %v793 = vmul.f32 %v755, 0.1
    %v794 = vmul.f32 %v758, 0.1
    %v795 = vmul.f32 %v763, 0.1
    %v796 = vmul.f32 %v766, 0.1
    %v797 = vmul.f32 %v771, 0.1
    %v798 = vmul.f32 %v774, 0.1
    %v799 = vmul.f32 %v779, 0.1
    %v800 = vmul.f32 %v782, 0.1
    %v801 = vtanh.pop %v785
    %v802 = vtanh.pop %v786
    %v803 = vtanh.pop %v787
    %v804 = vtanh.pop %v788
    %v805 = vtanh.pop %v789
    %v806 = vtanh.pop %v790
    %v807 = vtanh.pop %v791
    %v808 = vtanh.pop %v792
    %v809 = vtanh.pop %v793
    %v810 = vtanh.pop %v794
    %v811 = vtanh.pop %v795
    %v812 = vtanh.pop %v796
    %v813 = vtanh.pop %v797
    %v814 = vtanh.pop %v798
    %v815 = vtanh.pop %v799
    %v816 = vtanh.pop %v800
    %v817 = vmul.f32 %v801, 1.9
    %v818 = vmul.f32 %v802, 1.9
    %v819 = vmul.f32 %v803, 1.9
    %v820 = vmul.f32 %v804, 1.9
    %v821 = vmul.f32 %v805, 1.9
    %v822 = vmul.f32 %v806, 1.9
    %v823 = vmul.f32 %v807, 1.9
    %v824 = vmul.f32 %v808, 1.9
    %v825 = vmul.f32 %v809, 1.9
    %v826 = vmul.f32 %v810, 1.9
    %v827 = vmul.f32 %v811, 1.9
    %v828 = vmul.f32 %v812, 1.9
    %v829 = vmul.f32 %v813, 1.9
    %v830 = vmul.f32 %v814, 1.9
    %v831 = vmul.f32 %v815, 1.9
    %v832 = vmul.f32 %v816, 1.9
    %v833 = vmul.f32 %v817, 1.442695
    %v834 = vpow.pop %v833
    %v835 = vmul.f32 %v818, 1.442695
    %v836 = vpow.pop %v835
    %v837 = vmul.f32 %v819, 1.442695
    %v838 = vpow.pop %v837
    %v839 = vmul.f32 %v820, 1.442695
    %v840 = vpow.pop %v839
    %v841 = vmul.f32 %v821, 1.442695
    %v842 = vpow.pop %v841
    %v843 = vmul.f32 %v822, 1.442695
    %v844 = vpow.pop %v843
    %v845 = vmul.f32 %v823, 1.442695
    %v846 = vpow.pop %v845
    %v847 = vmul.f32 %v824, 1.442695
    %v848 = vpow.pop %v847
    %v849 = vmul.f32 %v825, 1.442695
    %v850 = vpow.pop %v849
    %v851 = vmul.f32 %v826, 1.442695
    %v852 = vpow.pop %v851
    %v853 = vmul.f32 %v827, 1.442695
    %v854 = vpow.pop %v853
    %v855 = vmul.f32 %v828, 1.442695
    %v856 = vpow.pop %v855
    %v857 = vmul.f32 %v829, 1.442695
    %v858 = vpow.pop %v857
    %v859 = vmul.f32 %v830, 1.442695
    %v860 = vpow.pop %v859
    %v861 = vmul.f32 %v831, 1.442695
    %v862 = vpow.pop %v861
    %v863 = vmul.f32 %v832, 1.442695
    %v864 = vpow.pop %v863
    %881 = vrot.lane.b32.xlu0 %v834, 8
    %v882 = vpop.permute.xlu0 %881
    %883 = vrot.lane.b32.xlu0 %v836, 8
    %v884 = vpop.permute.xlu0 %883
    %885 = vrot.lane.b32.xlu0 %v838, 8
    %v886 = vpop.permute.xlu0 %885
    %887 = vrot.lane.b32.xlu0 %v840, 8
    %v888 = vpop.permute.xlu0 %887
    %889 = vrot.lane.b32.xlu0 %v842, 8
    %v890 = vpop.permute.xlu0 %889
    %891 = vrot.lane.b32.xlu0 %v844, 8
    %v892 = vpop.permute.xlu0 %891
    %893 = vrot.lane.b32.xlu0 %v846, 8
    %v894 = vpop.permute.xlu0 %893
    %895 = vrot.lane.b32.xlu0 %v848, 8
    %v896 = vpop.permute.xlu0 %895
    %897 = vrot.lane.b32.xlu0 %v850, 8
    %v898 = vpop.permute.xlu0 %897
    %899 = vrot.lane.b32.xlu0 %v852, 8
    %v900 = vpop.permute.xlu0 %899
    %901 = vrot.lane.b32.xlu0 %v854, 8
    %v902 = vpop.permute.xlu0 %901
    %903 = vrot.lane.b32.xlu0 %v856, 8
    %v904 = vpop.permute.xlu0 %903
    %905 = vrot.lane.b32.xlu0 %v858, 8
    %v906 = vpop.permute.xlu0 %905
    %907 = vrot.lane.b32.xlu0 %v860, 8
    %v908 = vpop.permute.xlu0 %907
    %909 = vrot.lane.b32.xlu0 %v862, 8
    %v910 = vpop.permute.xlu0 %909
    %911 = vrot.lane.b32.xlu0 %v864, 8
    %v912 = vpop.permute.xlu0 %911
    %v929 = vmul.f32 %v261, %v882
    %v930 = vmul.f32 %v262, %v884
    %v931 = vmul.f32 %v263, %v886
    %v932 = vmul.f32 %v264, %v888
    %v933 = vmul.f32 %v265, %v890
    %v934 = vmul.f32 %v266, %v892
    %v935 = vmul.f32 %v267, %v894
    %v936 = vmul.f32 %v268, %v896
    %v937 = vmul.f32 %v269, %v898
    %v938 = vmul.f32 %v270, %v900
    %v939 = vmul.f32 %v271, %v902
    %v940 = vmul.f32 %v272, %v904
    %v941 = vmul.f32 %v273, %v906
    %v942 = vmul.f32 %v274, %v908
    %v943 = vmul.f32 %v275, %v910
    %v944 = vmul.f32 %v276, %v912
    %v945 = vadd.f32 %v929, %v785
    %v946 = vadd.f32 %v930, %v786
    %v947 = vadd.f32 %v931, %v787
    %v948 = vadd.f32 %v932, %v788
    %v949 = vadd.f32 %v933, %v789
    %v950 = vadd.f32 %v934, %v790
    %v951 = vadd.f32 %v935, %v791
    %v952 = vadd.f32 %v936, %v792
    %v953 = vadd.f32 %v937, %v793
    %v954 = vadd.f32 %v938, %v794
    %v955 = vadd.f32 %v939, %v795
    %v956 = vadd.f32 %v940, %v796
    %v957 = vadd.f32 %v941, %v797
    %v958 = vadd.f32 %v942, %v798
    %v959 = vadd.f32 %v943, %v799
    %v960 = vadd.f32 %v944, %v800
    %v961 = vsel %vm343, %v817, 0.0
    %962 = vadd.xlane.f32.xlu0 %v961
    %v963 = vpop.xlane.xlu0 %962
    %v964 = vsel %vm343, %v818, 0.0
    %965 = vadd.xlane.f32.xlu0 %v964
    %v966 = vpop.xlane.xlu0 %965
    %v967 = vsel %vm343, %v819, 0.0
    %968 = vadd.xlane.f32.xlu0 %v967
    %v969 = vpop.xlane.xlu0 %968
    %v970 = vsel %vm343, %v820, 0.0
    %971 = vadd.xlane.f32.xlu0 %v970
    %v972 = vpop.xlane.xlu0 %971
    %v973 = vsel %vm343, %v821, 0.0
    %974 = vadd.xlane.f32.xlu0 %v973
    %v975 = vpop.xlane.xlu0 %974
    %v976 = vsel %vm343, %v822, 0.0
    %977 = vadd.xlane.f32.xlu0 %v976
    %v978 = vpop.xlane.xlu0 %977
    %v979 = vsel %vm343, %v823, 0.0
    %980 = vadd.xlane.f32.xlu0 %v979
    %v981 = vpop.xlane.xlu0 %980
    %v982 = vsel %vm343, %v824, 0.0
    %983 = vadd.xlane.f32.xlu0 %v982
    %v984 = vpop.xlane.xlu0 %983
    %v985 = vsel %vm343, %v825, 0.0
    %986 = vadd.xlane.f32.xlu0 %v985
    %v987 = vpop.xlane.xlu0 %986
    %v988 = vsel %vm343, %v826, 0.0
    %989 = vadd.xlane.f32.xlu0 %v988
    %v990 = vpop.xlane.xlu0 %989
    %v991 = vsel %vm343, %v827, 0.0
    %992 = vadd.xlane.f32.xlu0 %v991
    %v993 = vpop.xlane.xlu0 %992
    %v994 = vsel %vm343, %v828, 0.0
    %995 = vadd.xlane.f32.xlu0 %v994
    %v996 = vpop.xlane.xlu0 %995
    %v997 = vsel %vm343, %v829, 0.0
    %998 = vadd.xlane.f32.xlu0 %v997
    %v999 = vpop.xlane.xlu0 %998
    %v1000 = vsel %vm343, %v830, 0.0
    %1001 = vadd.xlane.f32.xlu0 %v1000
    %v1002 = vpop.xlane.xlu0 %1001
    %v1003 = vsel %vm343, %v831, 0.0
    %1004 = vadd.xlane.f32.xlu0 %v1003
    %v1005 = vpop.xlane.xlu0 %1004
    %v1006 = vsel %vm343, %v832, 0.0
    %1007 = vadd.xlane.f32.xlu0 %v1006
    %v1008 = vpop.xlane.xlu0 %1007
    %v1009 = vadd.f32 %v963, 0.0
    %v1010 = vadd.f32 %v966, 0.0
    %v1011 = vadd.f32 %v969, 0.0
    %v1012 = vadd.f32 %v972, 0.0
    %v1013 = vadd.f32 %v975, 0.0
    %v1014 = vadd.f32 %v978, 0.0
    %v1015 = vadd.f32 %v981, 0.0
    %v1016 = vadd.f32 %v984, 0.0
    %v1017 = vadd.f32 %v987, 0.0
    %v1018 = vadd.f32 %v990, 0.0
    %v1019 = vadd.f32 %v993, 0.0
    %v1020 = vadd.f32 %v996, 0.0
    %v1021 = vadd.f32 %v999, 0.0
    %v1022 = vadd.f32 %v1002, 0.0
    %v1023 = vadd.f32 %v1005, 0.0
    %v1024 = vadd.f32 %v1008, 0.0
    %v1025 = vld [vmem:[%s10] sm:$0xf]
    %v1026 = vpack.c.bf16 %v946, %v945
    %v1027 = vpack.c.bf16 %v948, %v947
    %v1028 = vpack.c.bf16 %v950, %v949
    %v1029 = vpack.c.bf16 %v952, %v951
    %v1030 = vpack.c.bf16 %v954, %v953
    %v1031 = vpack.c.bf16 %v956, %v955
    %v1032 = vpack.c.bf16 %v958, %v957
    %v1033 = vpack.c.bf16 %v960, %v959
    %v1034 = vld [vmem:[%s11] sm:$0xf]
    %1043 = vrot.lane.b32.xlu0 %v1026, 120
    %v1044 = vpop.permute.xlu0 %1043
    %1045 = vrot.lane.b32.xlu0 %v1027, 120
    %v1046 = vpop.permute.xlu0 %1045
    %1047 = vrot.lane.b32.xlu0 %v1028, 120
    %v1048 = vpop.permute.xlu0 %1047
    %1049 = vrot.lane.b32.xlu0 %v1029, 120
    %v1050 = vpop.permute.xlu0 %1049
    %1051 = vrot.lane.b32.xlu0 %v1030, 120
    %v1052 = vpop.permute.xlu0 %1051
    %1053 = vrot.lane.b32.xlu0 %v1031, 120
    %v1054 = vpop.permute.xlu0 %1053
    %1055 = vrot.lane.b32.xlu0 %v1032, 120
    %v1056 = vpop.permute.xlu0 %1055
    %1057 = vrot.lane.b32.xlu0 %v1033, 120
    %v1058 = vpop.permute.xlu0 %1057
    %v1060 = vsel %vm343, %v1044, 0
    %v1063 = vsel %vm343, %v1046, 0
    %v1066 = vsel %vm343, %v1048, 0
    %v1069 = vsel %vm343, %v1050, 0
    %v1072 = vsel %vm343, %v1052, 0
    %v1075 = vsel %vm343, %v1054, 0
    %v1078 = vsel %vm343, %v1056, 0
    %v1081 = vsel %vm343, %v1058, 0
    %v1084 = vsel %vm368, %v1034, 0
    %1086 = vmatprep.subr.bf16.mxu0 0
    %1087 = vmatpush1.bf16.msra.mxu0 %v1084
    %1088 = vmatprep.subr.bf16.mxu0 0
    %1089 = vmatpush1.bf16.msra.mxu0 0
    %1090 = vmatprep.subr.bf16.mxu0 0
    %1091 = vmatpush1.bf16.msra.mxu0 0
    %1092 = vmatprep.subr.bf16.mxu0 0
    %1093 = vmatpush1.bf16.msra.mxu0 0
    %1094 = vmatprep.subr.bf16.mxu0 0
    %1095 = vmatpush1.bf16.msra.mxu0 0
    %1096 = vmatprep.subr.bf16.mxu0 0
    %1097 = vmatpush1.bf16.msra.mxu0 0
    %1098 = vmatprep.subr.bf16.mxu0 0
    %1099 = vmatpush1.bf16.msra.mxu0 0
    %1100 = vmatprep.subr.bf16.mxu0 0
    %1101 = vmatpush1.bf16.msra.mxu0 0
    %1102 = vmatprep.subr.bf16.mxu0 0
    %1103 = vmatpush1.bf16.msra.mxu0 0
    %1104 = vmatprep.subr.bf16.mxu0 0
    %1105 = vmatpush1.bf16.msra.mxu0 0
    %1106 = vmatprep.subr.bf16.mxu0 0
    %1107 = vmatpush1.bf16.msra.mxu0 0
    %1108 = vmatprep.subr.bf16.mxu0 0
    %1109 = vmatpush1.bf16.msra.mxu0 0
    %1110 = vmatprep.subr.bf16.mxu0 0
    %1111 = vmatpush1.bf16.msra.mxu0 0
    %1112 = vmatprep.subr.bf16.mxu0 0
    %1113 = vmatpush1.bf16.msra.mxu0 0
    %1114 = vmatprep.subr.bf16.mxu0 0
    %1115 = vmatpush1.bf16.msra.mxu0 0
    %1116 = vmatprep.subr.bf16.mxu0 0
    %1117 = vmatpush1.bf16.msra.mxu0 0
    %1118 = vmatprep.mubr.bf16.mxu0 0
    %1119 = vmatmul.mubr.bf16.gmra.mrb[0].mxu0 %v1060
    %v1120 = vpop.f32.mrb[0].mxu0
    %v1121 = vadd.f32 0.0, %v1120
    %v1122 = vpop.f32.mrb[0].mxu0
    %v1123 = vpop.f32.mrb[0].mxu0
    %v1124 = vadd.f32 0.0, %v1123
    %v1125 = vpop.f32.mrb[0].mxu0
    %1126 = vmatprep.mubr.bf16.mxu0 0
    %1127 = vmatmul.mubr.bf16.gmra.mrb[0].mxu0 %v1063
    %v1128 = vpop.f32.mrb[0].mxu0
    %v1129 = vadd.f32 0.0, %v1128
    %v1130 = vpop.f32.mrb[0].mxu0
    %v1131 = vpop.f32.mrb[0].mxu0
    %v1132 = vadd.f32 0.0, %v1131
    %v1133 = vpop.f32.mrb[0].mxu0
    %1134 = vmatprep.mubr.bf16.mxu0 0
    %1135 = vmatmul.mubr.bf16.gmra.mrb[0].mxu0 %v1066
    %v1136 = vpop.f32.mrb[0].mxu0
    %v1137 = vadd.f32 0.0, %v1136
    %v1138 = vpop.f32.mrb[0].mxu0
    %v1139 = vpop.f32.mrb[0].mxu0
    %v1140 = vadd.f32 0.0, %v1139
    %v1141 = vpop.f32.mrb[0].mxu0
    %1142 = vmatprep.mubr.bf16.mxu0 0
    %1143 = vmatmul.mubr.bf16.gmra.mrb[0].mxu0 %v1069
    %v1144 = vpop.f32.mrb[0].mxu0
    %v1145 = vadd.f32 0.0, %v1144
    %v1146 = vpop.f32.mrb[0].mxu0
    %v1147 = vpop.f32.mrb[0].mxu0
    %v1148 = vadd.f32 0.0, %v1147
    %v1149 = vpop.f32.mrb[0].mxu0
    %1150 = vmatprep.mubr.bf16.mxu0 0
    %1151 = vmatmul.mubr.bf16.gmra.mrb[0].mxu0 %v1072
    %v1152 = vpop.f32.mrb[0].mxu0
    %v1153 = vadd.f32 0.0, %v1152
    %v1154 = vpop.f32.mrb[0].mxu0
    %v1155 = vpop.f32.mrb[0].mxu0
    %v1156 = vadd.f32 0.0, %v1155
    %v1157 = vpop.f32.mrb[0].mxu0
    %1158 = vmatprep.mubr.bf16.mxu0 0
    %1159 = vmatmul.mubr.bf16.gmra.mrb[0].mxu0 %v1075
    %v1160 = vpop.f32.mrb[0].mxu0
    %v1161 = vadd.f32 0.0, %v1160
    %v1162 = vpop.f32.mrb[0].mxu0
    %v1163 = vpop.f32.mrb[0].mxu0
    %v1164 = vadd.f32 0.0, %v1163
    %v1165 = vpop.f32.mrb[0].mxu0
    %1166 = vmatprep.mubr.bf16.mxu0 0
    %1167 = vmatmul.mubr.bf16.gmra.mrb[0].mxu0 %v1078
    %v1168 = vpop.f32.mrb[0].mxu0
    %v1169 = vadd.f32 0.0, %v1168
    %v1170 = vpop.f32.mrb[0].mxu0
    %v1171 = vpop.f32.mrb[0].mxu0
    %v1172 = vadd.f32 0.0, %v1171
    %v1173 = vpop.f32.mrb[0].mxu0
    %1174 = vmatprep.mubr.bf16.mxu0 0
    %1175 = vmatmul.mubr.bf16.gmra.mrb[0].mxu0 %v1081
    %v1176 = vpop.f32.mrb[0].mxu0
    %v1177 = vadd.f32 0.0, %v1176
    %v1178 = vpop.f32.mrb[0].mxu0
    %v1179 = vpop.f32.mrb[0].mxu0
    %v1180 = vadd.f32 0.0, %v1179
    %v1181 = vpop.f32.mrb[0].mxu0
    %1182 = vdwg.mxu0
    %v1184 = vsel %vm368, %v1025, 0
    %1186 = vmatprep.subr.bf16.mxu0 0
    %1187 = vmatpush1.bf16.msra.mxu0 %v1184
    %1188 = vmatprep.subr.bf16.mxu0 0
    %1189 = vmatpush1.bf16.msra.mxu0 0
    %1190 = vmatprep.subr.bf16.mxu0 0
    %1191 = vmatpush1.bf16.msra.mxu0 0
    %1192 = vmatprep.subr.bf16.mxu0 0
    %1193 = vmatpush1.bf16.msra.mxu0 0
    %1194 = vmatprep.subr.bf16.mxu0 0
    %1195 = vmatpush1.bf16.msra.mxu0 0
    %1196 = vmatprep.subr.bf16.mxu0 0
    %1197 = vmatpush1.bf16.msra.mxu0 0
    %1198 = vmatprep.subr.bf16.mxu0 0
    %1199 = vmatpush1.bf16.msra.mxu0 0
    %1200 = vmatprep.subr.bf16.mxu0 0
    %1201 = vmatpush1.bf16.msra.mxu0 0
    %1202 = vmatprep.subr.bf16.mxu0 0
    %1203 = vmatpush1.bf16.msra.mxu0 0
    %1204 = vmatprep.subr.bf16.mxu0 0
    %1205 = vmatpush1.bf16.msra.mxu0 0
    %1206 = vmatprep.subr.bf16.mxu0 0
    %1207 = vmatpush1.bf16.msra.mxu0 0
    %1208 = vmatprep.subr.bf16.mxu0 0
    %1209 = vmatpush1.bf16.msra.mxu0 0
    %1210 = vmatprep.subr.bf16.mxu0 0
    %1211 = vmatpush1.bf16.msra.mxu0 0
    %1212 = vmatprep.subr.bf16.mxu0 0
    %1213 = vmatpush1.bf16.msra.mxu0 0
    %1214 = vmatprep.subr.bf16.mxu0 0
    %1215 = vmatpush1.bf16.msra.mxu0 0
    %1216 = vmatprep.subr.bf16.mxu0 0
    %1217 = vmatpush1.bf16.msra.mxu0 0
    %1218 = vmatprep.mubr.bf16.mxu0 0
    %1219 = vmatmul.mubr.bf16.gmra.mrb[0].mxu0 %v470
    %v1220 = vpop.f32.mrb[0].mxu0
    %v1221 = vadd.f32 %v1121, %v1220
    %v1222 = vpop.f32.mrb[0].mxu0
    %v1223 = vpop.f32.mrb[0].mxu0
    %v1224 = vadd.f32 %v1124, %v1223
    %v1225 = vpop.f32.mrb[0].mxu0
    %1226 = vmatprep.mubr.bf16.mxu0 0
    %1227 = vmatmul.mubr.bf16.gmra.mrb[0].mxu0 %v473
    %v1228 = vpop.f32.mrb[0].mxu0
    %v1229 = vadd.f32 %v1129, %v1228
    %v1230 = vpop.f32.mrb[0].mxu0
    %v1231 = vpop.f32.mrb[0].mxu0
    %v1232 = vadd.f32 %v1132, %v1231
    %v1233 = vpop.f32.mrb[0].mxu0
    %1234 = vmatprep.mubr.bf16.mxu0 0
    %1235 = vmatmul.mubr.bf16.gmra.mrb[0].mxu0 %v476
    %v1236 = vpop.f32.mrb[0].mxu0
    %v1237 = vadd.f32 %v1137, %v1236
    %v1238 = vpop.f32.mrb[0].mxu0
    %v1239 = vpop.f32.mrb[0].mxu0
    %v1240 = vadd.f32 %v1140, %v1239
    %v1241 = vpop.f32.mrb[0].mxu0
    %1242 = vmatprep.mubr.bf16.mxu0 0
    %1243 = vmatmul.mubr.bf16.gmra.mrb[0].mxu0 %v479
    %v1244 = vpop.f32.mrb[0].mxu0
    %v1245 = vadd.f32 %v1145, %v1244
    %v1246 = vpop.f32.mrb[0].mxu0
    %v1247 = vpop.f32.mrb[0].mxu0
    %v1248 = vadd.f32 %v1148, %v1247
    %v1249 = vpop.f32.mrb[0].mxu0
    %1250 = vmatprep.mubr.bf16.mxu0 0
    %1251 = vmatmul.mubr.bf16.gmra.mrb[0].mxu0 %v482
    %v1252 = vpop.f32.mrb[0].mxu0
    %v1253 = vadd.f32 %v1153, %v1252
    %v1254 = vpop.f32.mrb[0].mxu0
    %v1255 = vpop.f32.mrb[0].mxu0
    %v1256 = vadd.f32 %v1156, %v1255
    %v1257 = vpop.f32.mrb[0].mxu0
    %1258 = vmatprep.mubr.bf16.mxu0 0
    %1259 = vmatmul.mubr.bf16.gmra.mrb[0].mxu0 %v485
    %v1260 = vpop.f32.mrb[0].mxu0
    %v1261 = vadd.f32 %v1161, %v1260
    %v1262 = vpop.f32.mrb[0].mxu0
    %v1263 = vpop.f32.mrb[0].mxu0
    %v1264 = vadd.f32 %v1164, %v1263
    %v1265 = vpop.f32.mrb[0].mxu0
    %1266 = vmatprep.mubr.bf16.mxu0 0
    %1267 = vmatmul.mubr.bf16.gmra.mrb[0].mxu0 %v488
    %v1268 = vpop.f32.mrb[0].mxu0
    %v1269 = vadd.f32 %v1169, %v1268
    %v1270 = vpop.f32.mrb[0].mxu0
    %v1271 = vpop.f32.mrb[0].mxu0
    %v1272 = vadd.f32 %v1172, %v1271
    %v1273 = vpop.f32.mrb[0].mxu0
    %1274 = vmatprep.mubr.bf16.mxu0 0
    %1275 = vmatmul.mubr.bf16.gmra.mrb[0].mxu0 %v491
    %v1276 = vpop.f32.mrb[0].mxu0
    %v1277 = vadd.f32 %v1177, %v1276
    %v1278 = vpop.f32.mrb[0].mxu0
    %v1279 = vpop.f32.mrb[0].mxu0
    %v1280 = vadd.f32 %v1180, %v1279
    %v1281 = vpop.f32.mrb[0].mxu0
    %1282 = vdwg.mxu0
    %v1283 = vld [vmem:[%s12] sm:$0x1]
    %v1285 = vlaneseq
    %v1286 = vshrl.u32 %v1285, 7
    %v1287 = vsub.s32 0, %v1286
    %v1288 = vrot.slane %v1283, %v1287
    %v1290 = vadd.f32 %v1221, %v1288
    %v1291 = vadd.f32 %v1224, %v1288
    %v1292 = vadd.f32 %v1229, %v1288
    %v1293 = vadd.f32 %v1232, %v1288
    %v1294 = vadd.f32 %v1237, %v1288
    %v1295 = vadd.f32 %v1240, %v1288
    %v1296 = vadd.f32 %v1245, %v1288
    %v1297 = vadd.f32 %v1248, %v1288
    %v1298 = vadd.f32 %v1253, %v1288
    %v1299 = vadd.f32 %v1256, %v1288
    %v1300 = vadd.f32 %v1261, %v1288
    %v1301 = vadd.f32 %v1264, %v1288
    %v1302 = vadd.f32 %v1269, %v1288
    %v1303 = vadd.f32 %v1272, %v1288
    %v1304 = vadd.f32 %v1277, %v1288
    %v1305 = vadd.f32 %v1280, %v1288
    %v1306 = vpack.c.bf16 %v1291, %v1290
    %v1307 = vpack.c.bf16 %v1293, %v1292
    %v1308 = vpack.c.bf16 %v1295, %v1294
    %v1309 = vpack.c.bf16 %v1297, %v1296
    %v1310 = vpack.c.bf16 %v1299, %v1298
    %v1311 = vpack.c.bf16 %v1301, %v1300
    %v1312 = vpack.c.bf16 %v1303, %v1302
    %v1313 = vpack.c.bf16 %v1305, %v1304
    %v1314 = vld [vmem:[%s13] sm:$0xf]
    %v1315 = vld [vmem:[%s14] sm:$0xf]
    %v1317 = vsel %vm368, %v1315, 0
    %1319 = vmatprep.subr.bf16.mxu0 0
    %1320 = vmatpush1.bf16.msra.mxu0 %v1317
    %1321 = vmatprep.subr.bf16.mxu0 0
    %1322 = vmatpush1.bf16.msra.mxu0 0
    %1323 = vmatprep.subr.bf16.mxu0 0
    %1324 = vmatpush1.bf16.msra.mxu0 0
    %1325 = vmatprep.subr.bf16.mxu0 0
    %1326 = vmatpush1.bf16.msra.mxu0 0
    %1327 = vmatprep.subr.bf16.mxu0 0
    %1328 = vmatpush1.bf16.msra.mxu0 0
    %1329 = vmatprep.subr.bf16.mxu0 0
    %1330 = vmatpush1.bf16.msra.mxu0 0
    %1331 = vmatprep.subr.bf16.mxu0 0
    %1332 = vmatpush1.bf16.msra.mxu0 0
    %1333 = vmatprep.subr.bf16.mxu0 0
    %1334 = vmatpush1.bf16.msra.mxu0 0
    %1335 = vmatprep.subr.bf16.mxu0 0
    %1336 = vmatpush1.bf16.msra.mxu0 0
    %1337 = vmatprep.subr.bf16.mxu0 0
    %1338 = vmatpush1.bf16.msra.mxu0 0
    %1339 = vmatprep.subr.bf16.mxu0 0
    %1340 = vmatpush1.bf16.msra.mxu0 0
    %1341 = vmatprep.subr.bf16.mxu0 0
    %1342 = vmatpush1.bf16.msra.mxu0 0
    %1343 = vmatprep.subr.bf16.mxu0 0
    %1344 = vmatpush1.bf16.msra.mxu0 0
    %1345 = vmatprep.subr.bf16.mxu0 0
    %1346 = vmatpush1.bf16.msra.mxu0 0
    %1347 = vmatprep.subr.bf16.mxu0 0
    %1348 = vmatpush1.bf16.msra.mxu0 0
    %1349 = vmatprep.subr.bf16.mxu0 0
    %1350 = vmatpush1.bf16.msra.mxu0 0
    %1351 = vmatprep.mubr.bf16.mxu0 0
    %1352 = vmatmul.mubr.bf16.gmra.mrb[0].mxu0 %v345
    %v1353 = vpop.f32.mrb[0].mxu0
    %v1354 = vadd.f32 0.0, %v1353
    %v1355 = vpop.f32.mrb[0].mxu0
    %v1356 = vpop.f32.mrb[0].mxu0
    %v1357 = vadd.f32 0.0, %v1356
    %v1358 = vpop.f32.mrb[0].mxu0
    %1359 = vmatprep.mubr.bf16.mxu0 0
    %1360 = vmatmul.mubr.bf16.gmra.mrb[0].mxu0 %v348
    %v1361 = vpop.f32.mrb[0].mxu0
    %v1362 = vadd.f32 0.0, %v1361
    %v1363 = vpop.f32.mrb[0].mxu0
    %v1364 = vpop.f32.mrb[0].mxu0
    %v1365 = vadd.f32 0.0, %v1364
    %v1366 = vpop.f32.mrb[0].mxu0
    %1367 = vmatprep.mubr.bf16.mxu0 0
    %1368 = vmatmul.mubr.bf16.gmra.mrb[0].mxu0 %v351
    %v1369 = vpop.f32.mrb[0].mxu0
    %v1370 = vadd.f32 0.0, %v1369
    %v1371 = vpop.f32.mrb[0].mxu0
    %v1372 = vpop.f32.mrb[0].mxu0
    %v1373 = vadd.f32 0.0, %v1372
    %v1374 = vpop.f32.mrb[0].mxu0
    %1375 = vmatprep.mubr.bf16.mxu0 0
    %1376 = vmatmul.mubr.bf16.gmra.mrb[0].mxu0 %v354
    %v1377 = vpop.f32.mrb[0].mxu0
    %v1378 = vadd.f32 0.0, %v1377
    %v1379 = vpop.f32.mrb[0].mxu0
    %v1380 = vpop.f32.mrb[0].mxu0
    %v1381 = vadd.f32 0.0, %v1380
    %v1382 = vpop.f32.mrb[0].mxu0
    %1383 = vmatprep.mubr.bf16.mxu0 0
    %1384 = vmatmul.mubr.bf16.gmra.mrb[0].mxu0 %v357
    %v1385 = vpop.f32.mrb[0].mxu0
    %v1386 = vadd.f32 0.0, %v1385
    %v1387 = vpop.f32.mrb[0].mxu0
    %v1388 = vpop.f32.mrb[0].mxu0
    %v1389 = vadd.f32 0.0, %v1388
    %v1390 = vpop.f32.mrb[0].mxu0
    %1391 = vmatprep.mubr.bf16.mxu0 0
    %1392 = vmatmul.mubr.bf16.gmra.mrb[0].mxu0 %v360
    %v1393 = vpop.f32.mrb[0].mxu0
    %v1394 = vadd.f32 0.0, %v1393
    %v1395 = vpop.f32.mrb[0].mxu0
    %v1396 = vpop.f32.mrb[0].mxu0
    %v1397 = vadd.f32 0.0, %v1396
    %v1398 = vpop.f32.mrb[0].mxu0
    %1399 = vmatprep.mubr.bf16.mxu0 0
    %1400 = vmatmul.mubr.bf16.gmra.mrb[0].mxu0 %v363
    %v1401 = vpop.f32.mrb[0].mxu0
    %v1402 = vadd.f32 0.0, %v1401
    %v1403 = vpop.f32.mrb[0].mxu0
    %v1404 = vpop.f32.mrb[0].mxu0
    %v1405 = vadd.f32 0.0, %v1404
    %v1406 = vpop.f32.mrb[0].mxu0
    %1407 = vmatprep.mubr.bf16.mxu0 0
    %1408 = vmatmul.mubr.bf16.gmra.mrb[0].mxu0 %v366
    %v1409 = vpop.f32.mrb[0].mxu0
    %v1410 = vadd.f32 0.0, %v1409
    %v1411 = vpop.f32.mrb[0].mxu0
    %v1412 = vpop.f32.mrb[0].mxu0
    %v1413 = vadd.f32 0.0, %v1412
    %v1414 = vpop.f32.mrb[0].mxu0
    %1415 = vdwg.mxu0
    %v1417 = vsel %vm343, %v1306, 0
    %v1420 = vsel %vm343, %v1307, 0
    %v1423 = vsel %vm343, %v1308, 0
    %v1426 = vsel %vm343, %v1309, 0
    %v1429 = vsel %vm343, %v1310, 0
    %v1432 = vsel %vm343, %v1311, 0
    %v1435 = vsel %vm343, %v1312, 0
    %v1438 = vsel %vm343, %v1313, 0
    %v1441 = vsel %vm368, %v1314, 0
    %1443 = vmatprep.subr.bf16.mxu0 0
    %1444 = vmatpush1.bf16.msra.mxu0 %v1441
    %1445 = vmatprep.subr.bf16.mxu0 0
    %1446 = vmatpush1.bf16.msra.mxu0 0
    %1447 = vmatprep.subr.bf16.mxu0 0
    %1448 = vmatpush1.bf16.msra.mxu0 0
    %1449 = vmatprep.subr.bf16.mxu0 0
    %1450 = vmatpush1.bf16.msra.mxu0 0
    %1451 = vmatprep.subr.bf16.mxu0 0
    %1452 = vmatpush1.bf16.msra.mxu0 0
    %1453 = vmatprep.subr.bf16.mxu0 0
    %1454 = vmatpush1.bf16.msra.mxu0 0
    %1455 = vmatprep.subr.bf16.mxu0 0
    %1456 = vmatpush1.bf16.msra.mxu0 0
    %1457 = vmatprep.subr.bf16.mxu0 0
    %1458 = vmatpush1.bf16.msra.mxu0 0
    %1459 = vmatprep.subr.bf16.mxu0 0
    %1460 = vmatpush1.bf16.msra.mxu0 0
    %1461 = vmatprep.subr.bf16.mxu0 0
    %1462 = vmatpush1.bf16.msra.mxu0 0
    %1463 = vmatprep.subr.bf16.mxu0 0
    %1464 = vmatpush1.bf16.msra.mxu0 0
    %1465 = vmatprep.subr.bf16.mxu0 0
    %1466 = vmatpush1.bf16.msra.mxu0 0
    %1467 = vmatprep.subr.bf16.mxu0 0
    %1468 = vmatpush1.bf16.msra.mxu0 0
    %1469 = vmatprep.subr.bf16.mxu0 0
    %1470 = vmatpush1.bf16.msra.mxu0 0
    %1471 = vmatprep.subr.bf16.mxu0 0
    %1472 = vmatpush1.bf16.msra.mxu0 0
    %1473 = vmatprep.subr.bf16.mxu0 0
    %1474 = vmatpush1.bf16.msra.mxu0 0
    %1475 = vmatprep.mubr.bf16.mxu0 0
    %1476 = vmatmul.mubr.bf16.gmra.mrb[0].mxu0 %v1417
    %v1477 = vpop.f32.mrb[0].mxu0
    %v1478 = vadd.f32 %v1354, %v1477
    %v1479 = vpop.f32.mrb[0].mxu0
    %v1480 = vpop.f32.mrb[0].mxu0
    %v1481 = vadd.f32 %v1357, %v1480
    %v1482 = vpop.f32.mrb[0].mxu0
    %1483 = vmatprep.mubr.bf16.mxu0 0
    %1484 = vmatmul.mubr.bf16.gmra.mrb[0].mxu0 %v1420
    %v1485 = vpop.f32.mrb[0].mxu0
    %v1486 = vadd.f32 %v1362, %v1485
    %v1487 = vpop.f32.mrb[0].mxu0
    %v1488 = vpop.f32.mrb[0].mxu0
    %v1489 = vadd.f32 %v1365, %v1488
    %v1490 = vpop.f32.mrb[0].mxu0
    %1491 = vmatprep.mubr.bf16.mxu0 0
    %1492 = vmatmul.mubr.bf16.gmra.mrb[0].mxu0 %v1423
    %v1493 = vpop.f32.mrb[0].mxu0
    %v1494 = vadd.f32 %v1370, %v1493
    %v1495 = vpop.f32.mrb[0].mxu0
    %v1496 = vpop.f32.mrb[0].mxu0
    %v1497 = vadd.f32 %v1373, %v1496
    %v1498 = vpop.f32.mrb[0].mxu0
    %1499 = vmatprep.mubr.bf16.mxu0 0
    %1500 = vmatmul.mubr.bf16.gmra.mrb[0].mxu0 %v1426
    %v1501 = vpop.f32.mrb[0].mxu0
    %v1502 = vadd.f32 %v1378, %v1501
    %v1503 = vpop.f32.mrb[0].mxu0
    %v1504 = vpop.f32.mrb[0].mxu0
    %v1505 = vadd.f32 %v1381, %v1504
    %v1506 = vpop.f32.mrb[0].mxu0
    %1507 = vmatprep.mubr.bf16.mxu0 0
    %1508 = vmatmul.mubr.bf16.gmra.mrb[0].mxu0 %v1429
    %v1509 = vpop.f32.mrb[0].mxu0
    %v1510 = vadd.f32 %v1386, %v1509
    %v1511 = vpop.f32.mrb[0].mxu0
    %v1512 = vpop.f32.mrb[0].mxu0
    %v1513 = vadd.f32 %v1389, %v1512
    %v1514 = vpop.f32.mrb[0].mxu0
    %1515 = vmatprep.mubr.bf16.mxu0 0
    %1516 = vmatmul.mubr.bf16.gmra.mrb[0].mxu0 %v1432
    %v1517 = vpop.f32.mrb[0].mxu0
    %v1518 = vadd.f32 %v1394, %v1517
    %v1519 = vpop.f32.mrb[0].mxu0
    %v1520 = vpop.f32.mrb[0].mxu0
    %v1521 = vadd.f32 %v1397, %v1520
    %v1522 = vpop.f32.mrb[0].mxu0
    %1523 = vmatprep.mubr.bf16.mxu0 0
    %1524 = vmatmul.mubr.bf16.gmra.mrb[0].mxu0 %v1435
    %v1525 = vpop.f32.mrb[0].mxu0
    %v1526 = vadd.f32 %v1402, %v1525
    %v1527 = vpop.f32.mrb[0].mxu0
    %v1528 = vpop.f32.mrb[0].mxu0
    %v1529 = vadd.f32 %v1405, %v1528
    %v1530 = vpop.f32.mrb[0].mxu0
    %1531 = vmatprep.mubr.bf16.mxu0 0
    %1532 = vmatmul.mubr.bf16.gmra.mrb[0].mxu0 %v1438
    %v1533 = vpop.f32.mrb[0].mxu0
    %v1534 = vadd.f32 %v1410, %v1533
    %v1535 = vpop.f32.mrb[0].mxu0
    %v1536 = vpop.f32.mrb[0].mxu0
    %v1537 = vadd.f32 %v1413, %v1536
    %v1538 = vpop.f32.mrb[0].mxu0
    %1539 = vdwg.mxu0
    %v1540 = vld [vmem:[%s15] sm:$0x1]
    %v1542 = vlaneseq
    %v1543 = vshrl.u32 %v1542, 7
    %v1544 = vsub.s32 0, %v1543
    %v1545 = vrot.slane %v1540, %v1544
    %v1547 = vadd.f32 %v1478, %v1545
    %v1548 = vadd.f32 %v1481, %v1545
    %v1549 = vadd.f32 %v1486, %v1545
    %v1550 = vadd.f32 %v1489, %v1545
    %v1551 = vadd.f32 %v1494, %v1545
    %v1552 = vadd.f32 %v1497, %v1545
    %v1553 = vadd.f32 %v1502, %v1545
    %v1554 = vadd.f32 %v1505, %v1545
    %v1555 = vadd.f32 %v1510, %v1545
    %v1556 = vadd.f32 %v1513, %v1545
    %v1557 = vadd.f32 %v1518, %v1545
    %v1558 = vadd.f32 %v1521, %v1545
    %v1559 = vadd.f32 %v1526, %v1545
    %v1560 = vadd.f32 %v1529, %v1545
    %v1561 = vadd.f32 %v1534, %v1545
    %v1562 = vadd.f32 %v1537, %v1545
    %v1563 = vmax.f32 %v1547, 0.0
    %v1564 = vmax.f32 %v1548, 0.0
    %v1565 = vmax.f32 %v1549, 0.0
    %v1566 = vmax.f32 %v1550, 0.0
    %v1567 = vmax.f32 %v1551, 0.0
    %v1568 = vmax.f32 %v1552, 0.0
    %v1569 = vmax.f32 %v1553, 0.0
    %v1570 = vmax.f32 %v1554, 0.0
    %v1571 = vmax.f32 %v1555, 0.0
    %v1572 = vmax.f32 %v1556, 0.0
    %v1573 = vmax.f32 %v1557, 0.0
    %v1574 = vmax.f32 %v1558, 0.0
    %v1575 = vmax.f32 %v1559, 0.0
    %v1576 = vmax.f32 %v1560, 0.0
    %v1577 = vmax.f32 %v1561, 0.0
    %v1578 = vmax.f32 %v1562, 0.0
    %v1579 = vpack.c.bf16 %v1564, %v1563
    %v1580 = vpack.c.bf16 %v1566, %v1565
    %v1581 = vpack.c.bf16 %v1568, %v1567
    %v1582 = vpack.c.bf16 %v1570, %v1569
    %v1583 = vpack.c.bf16 %v1572, %v1571
    %v1584 = vpack.c.bf16 %v1574, %v1573
    %v1585 = vpack.c.bf16 %v1576, %v1575
    %v1586 = vpack.c.bf16 %v1578, %v1577
    %v1587 = vld [vmem:[%s16] sm:$0xf]
    %v1588 = vld [vmem:[%s16 + $0x4] sm:$0xf]
    %v1589 = vld [vmem:[%s16 + $0x8] sm:$0xf]
    %v1590 = vld [vmem:[%s16 + $0xc] sm:$0xf]
    %v1591 = vld [vmem:[%s17] sm:$0x1]
    %v1593 = vlaneseq
    %v1594 = vshrl.u32 %v1593, 7
    %v1595 = vsub.s32 0, %v1594
    %v1596 = vrot.slane %v1591, %v1595
    %v1602 = vunpack.c.l.b16 %v1587
    %v1603 = vunpack.c.l.b16 %v1588
    %v1604 = vunpack.c.l.b16 %v1589
    %v1605 = vunpack.c.l.b16 %v1590
    %v1606 = vpack.c.b16 %v1603, %v1602
    %v1607 = vpack.c.b16 %v1605, %v1604
    %v1611 = vsel %vm663, %v1579, 0
    %v1614 = vsel %vm663, %v1580, 0
    %v1617 = vsel %vm663, %v1581, 0
    %v1620 = vsel %vm663, %v1582, 0
    %v1623 = vsel %vm663, %v1583, 0
    %v1626 = vsel %vm663, %v1584, 0
    %v1629 = vsel %vm663, %v1585, 0
    %v1632 = vsel %vm663, %v1586, 0
    %1634 = vmatprep.subr.bf16.mxu0 0
    %1635 = vmatpush1.bf16.msra.mxu0 %v1606
    %1636 = vmatprep.subr.bf16.mxu0 0
    %1637 = vmatpush1.bf16.msra.mxu0 %v1607
    %1638 = vmatprep.subr.bf16.mxu0 0
    %1639 = vmatpush1.bf16.msra.mxu0 0
    %1640 = vmatprep.subr.bf16.mxu0 0
    %1641 = vmatpush1.bf16.msra.mxu0 0
    %1642 = vmatprep.subr.bf16.mxu0 0
    %1643 = vmatpush1.bf16.msra.mxu0 0
    %1644 = vmatprep.subr.bf16.mxu0 0
    %1645 = vmatpush1.bf16.msra.mxu0 0
    %1646 = vmatprep.subr.bf16.mxu0 0
    %1647 = vmatpush1.bf16.msra.mxu0 0
    %1648 = vmatprep.subr.bf16.mxu0 0
    %1649 = vmatpush1.bf16.msra.mxu0 0
    %1650 = vmatprep.subr.bf16.mxu0 0
    %1651 = vmatpush1.bf16.msra.mxu0 0
    %1652 = vmatprep.subr.bf16.mxu0 0
    %1653 = vmatpush1.bf16.msra.mxu0 0
    %1654 = vmatprep.subr.bf16.mxu0 0
    %1655 = vmatpush1.bf16.msra.mxu0 0
    %1656 = vmatprep.subr.bf16.mxu0 0
    %1657 = vmatpush1.bf16.msra.mxu0 0
    %1658 = vmatprep.subr.bf16.mxu0 0
    %1659 = vmatpush1.bf16.msra.mxu0 0
    %1660 = vmatprep.subr.bf16.mxu0 0
    %1661 = vmatpush1.bf16.msra.mxu0 0
    %1662 = vmatprep.subr.bf16.mxu0 0
    %1663 = vmatpush1.bf16.msra.mxu0 0
    %1664 = vmatprep.subr.bf16.mxu0 0
    %1665 = vmatpush1.bf16.msra.mxu0 0
    %1666 = vmatprep.mubr.bf16.mxu0 0
    %1667 = vmatmul.mubr.bf16.gmra.mrb[0].mxu0 %v1611
    %v1668 = vpop.f32.mrb[0].mxu0
    %v1669 = vadd.f32 %v1596, %v1668
    %v1670 = vpop.f32.mrb[0].mxu0
    %v1671 = vpop.f32.mrb[0].mxu0
    %v1672 = vadd.f32 %v1596, %v1671
    %v1673 = vpop.f32.mrb[0].mxu0
    %1674 = vmatprep.mubr.bf16.mxu0 0
    %1675 = vmatmul.mubr.bf16.gmra.mrb[0].mxu0 %v1614
    %v1676 = vpop.f32.mrb[0].mxu0
    %v1677 = vadd.f32 %v1596, %v1676
    %v1678 = vpop.f32.mrb[0].mxu0
    %v1679 = vpop.f32.mrb[0].mxu0
    %v1680 = vadd.f32 %v1596, %v1679
    %v1681 = vpop.f32.mrb[0].mxu0
    %1682 = vmatprep.mubr.bf16.mxu0 0
    %1683 = vmatmul.mubr.bf16.gmra.mrb[0].mxu0 %v1617
    %v1684 = vpop.f32.mrb[0].mxu0
    %v1685 = vadd.f32 %v1596, %v1684
    %v1686 = vpop.f32.mrb[0].mxu0
    %v1687 = vpop.f32.mrb[0].mxu0
    %v1688 = vadd.f32 %v1596, %v1687
    %v1689 = vpop.f32.mrb[0].mxu0
    %1690 = vmatprep.mubr.bf16.mxu0 0
    %1691 = vmatmul.mubr.bf16.gmra.mrb[0].mxu0 %v1620
    %v1692 = vpop.f32.mrb[0].mxu0
    %v1693 = vadd.f32 %v1596, %v1692
    %v1694 = vpop.f32.mrb[0].mxu0
    %v1695 = vpop.f32.mrb[0].mxu0
    %v1696 = vadd.f32 %v1596, %v1695
    %v1697 = vpop.f32.mrb[0].mxu0
    %1698 = vmatprep.mubr.bf16.mxu0 0
    %1699 = vmatmul.mubr.bf16.gmra.mrb[0].mxu0 %v1623
    %v1700 = vpop.f32.mrb[0].mxu0
    %v1701 = vadd.f32 %v1596, %v1700
    %v1702 = vpop.f32.mrb[0].mxu0
    %v1703 = vpop.f32.mrb[0].mxu0
    %v1704 = vadd.f32 %v1596, %v1703
    %v1705 = vpop.f32.mrb[0].mxu0
    %1706 = vmatprep.mubr.bf16.mxu0 0
    %1707 = vmatmul.mubr.bf16.gmra.mrb[0].mxu0 %v1626
    %v1708 = vpop.f32.mrb[0].mxu0
    %v1709 = vadd.f32 %v1596, %v1708
    %v1710 = vpop.f32.mrb[0].mxu0
    %v1711 = vpop.f32.mrb[0].mxu0
    %v1712 = vadd.f32 %v1596, %v1711
    %v1713 = vpop.f32.mrb[0].mxu0
    %1714 = vmatprep.mubr.bf16.mxu0 0
    %1715 = vmatmul.mubr.bf16.gmra.mrb[0].mxu0 %v1629
    %v1716 = vpop.f32.mrb[0].mxu0
    %v1717 = vadd.f32 %v1596, %v1716
    %v1718 = vpop.f32.mrb[0].mxu0
    %v1719 = vpop.f32.mrb[0].mxu0
    %v1720 = vadd.f32 %v1596, %v1719
    %v1721 = vpop.f32.mrb[0].mxu0
    %1722 = vmatprep.mubr.bf16.mxu0 0
    %1723 = vmatmul.mubr.bf16.gmra.mrb[0].mxu0 %v1632
    %v1724 = vpop.f32.mrb[0].mxu0
    %v1725 = vadd.f32 %v1596, %v1724
    %v1726 = vpop.f32.mrb[0].mxu0
    %v1727 = vpop.f32.mrb[0].mxu0
    %v1728 = vadd.f32 %v1596, %v1727
    %v1729 = vpop.f32.mrb[0].mxu0
    %1730 = vdwg.mxu0
    %v1731 = vmul.f32 %v1669, 0.1
    %v1732 = vmul.f32 %v1672, 0.1
    %v1733 = vmul.f32 %v1677, 0.1
    %v1734 = vmul.f32 %v1680, 0.1
    %v1735 = vmul.f32 %v1685, 0.1
    %v1736 = vmul.f32 %v1688, 0.1
    %v1737 = vmul.f32 %v1693, 0.1
    %v1738 = vmul.f32 %v1696, 0.1
    %v1739 = vmul.f32 %v1701, 0.1
    %v1740 = vmul.f32 %v1704, 0.1
    %v1741 = vmul.f32 %v1709, 0.1
    %v1742 = vmul.f32 %v1712, 0.1
    %v1743 = vmul.f32 %v1717, 0.1
    %v1744 = vmul.f32 %v1720, 0.1
    %v1745 = vmul.f32 %v1725, 0.1
    %v1746 = vmul.f32 %v1728, 0.1
    %v1747 = vtanh.pop %v1731
    %v1748 = vtanh.pop %v1732
    %v1749 = vtanh.pop %v1733
    %v1750 = vtanh.pop %v1734
    %v1751 = vtanh.pop %v1735
    %v1752 = vtanh.pop %v1736
    %v1753 = vtanh.pop %v1737
    %v1754 = vtanh.pop %v1738
    %v1755 = vtanh.pop %v1739
    %v1756 = vtanh.pop %v1740
    %v1757 = vtanh.pop %v1741
    %v1758 = vtanh.pop %v1742
    %v1759 = vtanh.pop %v1743
    %v1760 = vtanh.pop %v1744
    %v1761 = vtanh.pop %v1745
    %v1762 = vtanh.pop %v1746
    %v1763 = vmul.f32 %v1747, 1.9
    %v1764 = vmul.f32 %v1748, 1.9
    %v1765 = vmul.f32 %v1749, 1.9
    %v1766 = vmul.f32 %v1750, 1.9
    %v1767 = vmul.f32 %v1751, 1.9
    %v1768 = vmul.f32 %v1752, 1.9
    %v1769 = vmul.f32 %v1753, 1.9
    %v1770 = vmul.f32 %v1754, 1.9
    %v1771 = vmul.f32 %v1755, 1.9
    %v1772 = vmul.f32 %v1756, 1.9
    %v1773 = vmul.f32 %v1757, 1.9
    %v1774 = vmul.f32 %v1758, 1.9
    %v1775 = vmul.f32 %v1759, 1.9
    %v1776 = vmul.f32 %v1760, 1.9
    %v1777 = vmul.f32 %v1761, 1.9
    %v1778 = vmul.f32 %v1762, 1.9
    %v1779 = vmul.f32 %v1763, 1.442695
    %v1780 = vpow.pop %v1779
    %v1781 = vmul.f32 %v1764, 1.442695
    %v1782 = vpow.pop %v1781
    %v1783 = vmul.f32 %v1765, 1.442695
    %v1784 = vpow.pop %v1783
    %v1785 = vmul.f32 %v1766, 1.442695
    %v1786 = vpow.pop %v1785
    %v1787 = vmul.f32 %v1767, 1.442695
    %v1788 = vpow.pop %v1787
    %v1789 = vmul.f32 %v1768, 1.442695
    %v1790 = vpow.pop %v1789
    %v1791 = vmul.f32 %v1769, 1.442695
    %v1792 = vpow.pop %v1791
    %v1793 = vmul.f32 %v1770, 1.442695
    %v1794 = vpow.pop %v1793
    %v1795 = vmul.f32 %v1771, 1.442695
    %v1796 = vpow.pop %v1795
    %v1797 = vmul.f32 %v1772, 1.442695
    %v1798 = vpow.pop %v1797
    %v1799 = vmul.f32 %v1773, 1.442695
    %v1800 = vpow.pop %v1799
    %v1801 = vmul.f32 %v1774, 1.442695
    %v1802 = vpow.pop %v1801
    %v1803 = vmul.f32 %v1775, 1.442695
    %v1804 = vpow.pop %v1803
    %v1805 = vmul.f32 %v1776, 1.442695
    %v1806 = vpow.pop %v1805
    %v1807 = vmul.f32 %v1777, 1.442695
    %v1808 = vpow.pop %v1807
    %v1809 = vmul.f32 %v1778, 1.442695
    %v1810 = vpow.pop %v1809
    %1827 = vrot.lane.b32.xlu0 %v1780, 8
    %v1828 = vpop.permute.xlu0 %1827
    %1829 = vrot.lane.b32.xlu0 %v1782, 8
    %v1830 = vpop.permute.xlu0 %1829
    %1831 = vrot.lane.b32.xlu0 %v1784, 8
    %v1832 = vpop.permute.xlu0 %1831
    %1833 = vrot.lane.b32.xlu0 %v1786, 8
    %v1834 = vpop.permute.xlu0 %1833
    %1835 = vrot.lane.b32.xlu0 %v1788, 8
    %v1836 = vpop.permute.xlu0 %1835
    %1837 = vrot.lane.b32.xlu0 %v1790, 8
    %v1838 = vpop.permute.xlu0 %1837
    %1839 = vrot.lane.b32.xlu0 %v1792, 8
    %v1840 = vpop.permute.xlu0 %1839
    %1841 = vrot.lane.b32.xlu0 %v1794, 8
    %v1842 = vpop.permute.xlu0 %1841
    %1843 = vrot.lane.b32.xlu0 %v1796, 8
    %v1844 = vpop.permute.xlu0 %1843
    %1845 = vrot.lane.b32.xlu0 %v1798, 8
    %v1846 = vpop.permute.xlu0 %1845
    %1847 = vrot.lane.b32.xlu0 %v1800, 8
    %v1848 = vpop.permute.xlu0 %1847
    %1849 = vrot.lane.b32.xlu0 %v1802, 8
    %v1850 = vpop.permute.xlu0 %1849
    %1851 = vrot.lane.b32.xlu0 %v1804, 8
    %v1852 = vpop.permute.xlu0 %1851
    %1853 = vrot.lane.b32.xlu0 %v1806, 8
    %v1854 = vpop.permute.xlu0 %1853
    %1855 = vrot.lane.b32.xlu0 %v1808, 8
    %v1856 = vpop.permute.xlu0 %1855
    %1857 = vrot.lane.b32.xlu0 %v1810, 8
    %v1858 = vpop.permute.xlu0 %1857
    %v1875 = vmul.f32 %v1290, %v1828
    %v1876 = vmul.f32 %v1291, %v1830
    %v1877 = vmul.f32 %v1292, %v1832
    %v1878 = vmul.f32 %v1293, %v1834
    %v1879 = vmul.f32 %v1294, %v1836
    %v1880 = vmul.f32 %v1295, %v1838
    %v1881 = vmul.f32 %v1296, %v1840
    %v1882 = vmul.f32 %v1297, %v1842
    %v1883 = vmul.f32 %v1298, %v1844
    %v1884 = vmul.f32 %v1299, %v1846
    %v1885 = vmul.f32 %v1300, %v1848
    %v1886 = vmul.f32 %v1301, %v1850
    %v1887 = vmul.f32 %v1302, %v1852
    %v1888 = vmul.f32 %v1303, %v1854
    %v1889 = vmul.f32 %v1304, %v1856
    %v1890 = vmul.f32 %v1305, %v1858
    %v1891 = vadd.f32 %v1875, %v1731
    %v1892 = vadd.f32 %v1876, %v1732
    %v1893 = vadd.f32 %v1877, %v1733
    %v1894 = vadd.f32 %v1878, %v1734
    %v1895 = vadd.f32 %v1879, %v1735
    %v1896 = vadd.f32 %v1880, %v1736
    %v1897 = vadd.f32 %v1881, %v1737
    %v1898 = vadd.f32 %v1882, %v1738
    %v1899 = vadd.f32 %v1883, %v1739
    %v1900 = vadd.f32 %v1884, %v1740
    %v1901 = vadd.f32 %v1885, %v1741
    %v1902 = vadd.f32 %v1886, %v1742
    %v1903 = vadd.f32 %v1887, %v1743
    %v1904 = vadd.f32 %v1888, %v1744
    %v1905 = vadd.f32 %v1889, %v1745
    %v1906 = vadd.f32 %v1890, %v1746
    %v1907 = vsel %vm343, %v1763, 0.0
    %1908 = vadd.xlane.f32.xlu0 %v1907
    %v1909 = vpop.xlane.xlu0 %1908
    %v1910 = vsel %vm343, %v1764, 0.0
    %1911 = vadd.xlane.f32.xlu0 %v1910
    %v1912 = vpop.xlane.xlu0 %1911
    %v1913 = vsel %vm343, %v1765, 0.0
    %1914 = vadd.xlane.f32.xlu0 %v1913
    %v1915 = vpop.xlane.xlu0 %1914
    %v1916 = vsel %vm343, %v1766, 0.0
    %1917 = vadd.xlane.f32.xlu0 %v1916
    %v1918 = vpop.xlane.xlu0 %1917
    %v1919 = vsel %vm343, %v1767, 0.0
    %1920 = vadd.xlane.f32.xlu0 %v1919
    %v1921 = vpop.xlane.xlu0 %1920
    %v1922 = vsel %vm343, %v1768, 0.0
    %1923 = vadd.xlane.f32.xlu0 %v1922
    %v1924 = vpop.xlane.xlu0 %1923
    %v1925 = vsel %vm343, %v1769, 0.0
    %1926 = vadd.xlane.f32.xlu0 %v1925
    %v1927 = vpop.xlane.xlu0 %1926
    %v1928 = vsel %vm343, %v1770, 0.0
    %1929 = vadd.xlane.f32.xlu0 %v1928
    %v1930 = vpop.xlane.xlu0 %1929
    %v1931 = vsel %vm343, %v1771, 0.0
    %1932 = vadd.xlane.f32.xlu0 %v1931
    %v1933 = vpop.xlane.xlu0 %1932
    %v1934 = vsel %vm343, %v1772, 0.0
    %1935 = vadd.xlane.f32.xlu0 %v1934
    %v1936 = vpop.xlane.xlu0 %1935
    %v1937 = vsel %vm343, %v1773, 0.0
    %1938 = vadd.xlane.f32.xlu0 %v1937
    %v1939 = vpop.xlane.xlu0 %1938
    %v1940 = vsel %vm343, %v1774, 0.0
    %1941 = vadd.xlane.f32.xlu0 %v1940
    %v1942 = vpop.xlane.xlu0 %1941
    %v1943 = vsel %vm343, %v1775, 0.0
    %1944 = vadd.xlane.f32.xlu0 %v1943
    %v1945 = vpop.xlane.xlu0 %1944
    %v1946 = vsel %vm343, %v1776, 0.0
    %1947 = vadd.xlane.f32.xlu0 %v1946
    %v1948 = vpop.xlane.xlu0 %1947
    %v1949 = vsel %vm343, %v1777, 0.0
    %1950 = vadd.xlane.f32.xlu0 %v1949
    %v1951 = vpop.xlane.xlu0 %1950
    %v1952 = vsel %vm343, %v1778, 0.0
    %1953 = vadd.xlane.f32.xlu0 %v1952
    %v1954 = vpop.xlane.xlu0 %1953
    %v1955 = vadd.f32 %v1009, %v1909
    %v1956 = vadd.f32 %v1010, %v1912
    %v1957 = vadd.f32 %v1011, %v1915
    %v1958 = vadd.f32 %v1012, %v1918
    %v1959 = vadd.f32 %v1013, %v1921
    %v1960 = vadd.f32 %v1014, %v1924
    %v1961 = vadd.f32 %v1015, %v1927
    %v1962 = vadd.f32 %v1016, %v1930
    %v1963 = vadd.f32 %v1017, %v1933
    %v1964 = vadd.f32 %v1018, %v1936
    %v1965 = vadd.f32 %v1019, %v1939
    %v1966 = vadd.f32 %v1020, %v1942
    %v1967 = vadd.f32 %v1021, %v1945
    %v1968 = vadd.f32 %v1022, %v1948
    %v1969 = vadd.f32 %v1023, %v1951
    %v1970 = vadd.f32 %v1024, %v1954
    %v1971 = vld [vmem:[%s20] sm:$0x1]
    %v1972 = vld [vmem:[%s18] sm:$0x1]
    %v1974 = vlaneseq
    %v1975 = vshrl.u32 %v1974, 7
    %v1976 = vsub.s32 0, %v1975
    %v1977 = vrot.slane %v1972, %v1976
    %v1979 = vmul.f32 %v1290, %v1977
    %v1980 = vmul.f32 %v1291, %v1977
    %v1981 = vmul.f32 %v1292, %v1977
    %v1982 = vmul.f32 %v1293, %v1977
    %v1983 = vmul.f32 %v1294, %v1977
    %v1984 = vmul.f32 %v1295, %v1977
    %v1985 = vmul.f32 %v1296, %v1977
    %v1986 = vmul.f32 %v1297, %v1977
    %v1987 = vmul.f32 %v1298, %v1977
    %v1988 = vmul.f32 %v1299, %v1977
    %v1989 = vmul.f32 %v1300, %v1977
    %v1990 = vmul.f32 %v1301, %v1977
    %v1991 = vmul.f32 %v1302, %v1977
    %v1992 = vmul.f32 %v1303, %v1977
    %v1993 = vmul.f32 %v1304, %v1977
    %v1994 = vmul.f32 %v1305, %v1977
    %v1996 = vlaneseq
    %v1997 = vshrl.u32 %v1996, 7
    %v1998 = vsub.s32 0, %v1997
    %v1999 = vrot.slane %v1971, %v1998
    %v2001 = vadd.f32 %v1979, %v1999
    %v2002 = vadd.f32 %v1980, %v1999
    %v2003 = vadd.f32 %v1981, %v1999
    %v2004 = vadd.f32 %v1982, %v1999
    %v2005 = vadd.f32 %v1983, %v1999
    %v2006 = vadd.f32 %v1984, %v1999
    %v2007 = vadd.f32 %v1985, %v1999
    %v2008 = vadd.f32 %v1986, %v1999
    %v2009 = vadd.f32 %v1987, %v1999
    %v2010 = vadd.f32 %v1988, %v1999
    %v2011 = vadd.f32 %v1989, %v1999
    %v2012 = vadd.f32 %v1990, %v1999
    %v2013 = vadd.f32 %v1991, %v1999
    %v2014 = vadd.f32 %v1992, %v1999
    %v2015 = vadd.f32 %v1993, %v1999
    %v2016 = vadd.f32 %v1994, %v1999
    %v2017 = vld [vmem:[%s19] sm:$0x1]
    %v2019 = vlaneseq
    %v2020 = vshrl.u32 %v2019, 7
    %v2021 = vsub.s32 0, %v2020
    %v2022 = vrot.slane %v2017, %v2021
    %2023 = vrot.lane.b32.xlu0 %v2022, 8
    %v2024 = vpop.permute.xlu0 %2023
    %v2026 = vmul.f32 %v1891, %v2024
    %v2027 = vmul.f32 %v1892, %v2024
    %v2028 = vmul.f32 %v1893, %v2024
    %v2029 = vmul.f32 %v1894, %v2024
    %v2030 = vmul.f32 %v1895, %v2024
    %v2031 = vmul.f32 %v1896, %v2024
    %v2032 = vmul.f32 %v1897, %v2024
    %v2033 = vmul.f32 %v1898, %v2024
    %v2034 = vmul.f32 %v1899, %v2024
    %v2035 = vmul.f32 %v1900, %v2024
    %v2036 = vmul.f32 %v1901, %v2024
    %v2037 = vmul.f32 %v1902, %v2024
    %v2038 = vmul.f32 %v1903, %v2024
    %v2039 = vmul.f32 %v1904, %v2024
    %v2040 = vmul.f32 %v1905, %v2024
    %v2041 = vmul.f32 %v1906, %v2024
    %v2042 = vadd.f32 %v2026, %v1999
    %v2043 = vadd.f32 %v2027, %v1999
    %v2044 = vadd.f32 %v2028, %v1999
    %v2045 = vadd.f32 %v2029, %v1999
    %v2046 = vadd.f32 %v2030, %v1999
    %v2047 = vadd.f32 %v2031, %v1999
    %v2048 = vadd.f32 %v2032, %v1999
    %v2049 = vadd.f32 %v2033, %v1999
    %v2050 = vadd.f32 %v2034, %v1999
    %v2051 = vadd.f32 %v2035, %v1999
    %v2052 = vadd.f32 %v2036, %v1999
    %v2053 = vadd.f32 %v2037, %v1999
    %v2054 = vadd.f32 %v2038, %v1999
    %v2055 = vadd.f32 %v2039, %v1999
    %v2056 = vadd.f32 %v2040, %v1999
    %v2057 = vadd.f32 %v2041, %v1999
    %v2058 = vmul.f32 %v2001, %v2001
    %v2059 = vmul.f32 %v2002, %v2002
    %v2060 = vmul.f32 %v2003, %v2003
    %v2061 = vmul.f32 %v2004, %v2004
    %v2062 = vmul.f32 %v2005, %v2005
    %v2063 = vmul.f32 %v2006, %v2006
    %v2064 = vmul.f32 %v2007, %v2007
    %v2065 = vmul.f32 %v2008, %v2008
    %v2066 = vmul.f32 %v2009, %v2009
    %v2067 = vmul.f32 %v2010, %v2010
    %v2068 = vmul.f32 %v2011, %v2011
    %v2069 = vmul.f32 %v2012, %v2012
    %v2070 = vmul.f32 %v2013, %v2013
    %v2071 = vmul.f32 %v2014, %v2014
    %v2072 = vmul.f32 %v2015, %v2015
    %v2073 = vmul.f32 %v2016, %v2016
    %v2074 = vsel %vm343, %v2058, 0.0
    %2075 = vadd.xlane.f32.xlu0 %v2074
    %v2076 = vpop.xlane.xlu0 %2075
    %v2077 = vsel %vm343, %v2059, 0.0
    %2078 = vadd.xlane.f32.xlu0 %v2077
    %v2079 = vpop.xlane.xlu0 %2078
    %v2080 = vsel %vm343, %v2060, 0.0
    %2081 = vadd.xlane.f32.xlu0 %v2080
    %v2082 = vpop.xlane.xlu0 %2081
    %v2083 = vsel %vm343, %v2061, 0.0
    %2084 = vadd.xlane.f32.xlu0 %v2083
    %v2085 = vpop.xlane.xlu0 %2084
    %v2086 = vsel %vm343, %v2062, 0.0
    %2087 = vadd.xlane.f32.xlu0 %v2086
    %v2088 = vpop.xlane.xlu0 %2087
    %v2089 = vsel %vm343, %v2063, 0.0
    %2090 = vadd.xlane.f32.xlu0 %v2089
    %v2091 = vpop.xlane.xlu0 %2090
    %v2092 = vsel %vm343, %v2064, 0.0
    %2093 = vadd.xlane.f32.xlu0 %v2092
    %v2094 = vpop.xlane.xlu0 %2093
    %v2095 = vsel %vm343, %v2065, 0.0
    %2096 = vadd.xlane.f32.xlu0 %v2095
    %v2097 = vpop.xlane.xlu0 %2096
    %v2098 = vsel %vm343, %v2066, 0.0
    %2099 = vadd.xlane.f32.xlu0 %v2098
    %v2100 = vpop.xlane.xlu0 %2099
    %v2101 = vsel %vm343, %v2067, 0.0
    %2102 = vadd.xlane.f32.xlu0 %v2101
    %v2103 = vpop.xlane.xlu0 %2102
    %v2104 = vsel %vm343, %v2068, 0.0
    %2105 = vadd.xlane.f32.xlu0 %v2104
    %v2106 = vpop.xlane.xlu0 %2105
    %v2107 = vsel %vm343, %v2069, 0.0
    %2108 = vadd.xlane.f32.xlu0 %v2107
    %v2109 = vpop.xlane.xlu0 %2108
    %v2110 = vsel %vm343, %v2070, 0.0
    %2111 = vadd.xlane.f32.xlu0 %v2110
    %v2112 = vpop.xlane.xlu0 %2111
    %v2113 = vsel %vm343, %v2071, 0.0
    %2114 = vadd.xlane.f32.xlu0 %v2113
    %v2115 = vpop.xlane.xlu0 %2114
    %v2116 = vsel %vm343, %v2072, 0.0
    %2117 = vadd.xlane.f32.xlu0 %v2116
    %v2118 = vpop.xlane.xlu0 %2117
    %v2119 = vsel %vm343, %v2073, 0.0
    %2120 = vadd.xlane.f32.xlu0 %v2119
    %v2121 = vpop.xlane.xlu0 %2120
    %v2122 = vmul.f32 %v2042, %v2042
    %v2123 = vmul.f32 %v2043, %v2043
    %v2124 = vmul.f32 %v2044, %v2044
    %v2125 = vmul.f32 %v2045, %v2045
    %v2126 = vmul.f32 %v2046, %v2046
    %v2127 = vmul.f32 %v2047, %v2047
    %v2128 = vmul.f32 %v2048, %v2048
    %v2129 = vmul.f32 %v2049, %v2049
    %v2130 = vmul.f32 %v2050, %v2050
    %v2131 = vmul.f32 %v2051, %v2051
    %v2132 = vmul.f32 %v2052, %v2052
    %v2133 = vmul.f32 %v2053, %v2053
    %v2134 = vmul.f32 %v2054, %v2054
    %v2135 = vmul.f32 %v2055, %v2055
    %v2136 = vmul.f32 %v2056, %v2056
    %v2137 = vmul.f32 %v2057, %v2057
    %2154 = vrot.lane.b32.xlu0 %v2122, 120
    %v2155 = vpop.permute.xlu0 %2154
    %2156 = vrot.lane.b32.xlu0 %v2123, 120
    %v2157 = vpop.permute.xlu0 %2156
    %2158 = vrot.lane.b32.xlu0 %v2124, 120
    %v2159 = vpop.permute.xlu0 %2158
    %2160 = vrot.lane.b32.xlu0 %v2125, 120
    %v2161 = vpop.permute.xlu0 %2160
    %2162 = vrot.lane.b32.xlu0 %v2126, 120
    %v2163 = vpop.permute.xlu0 %2162
    %2164 = vrot.lane.b32.xlu0 %v2127, 120
    %v2165 = vpop.permute.xlu0 %2164
    %2166 = vrot.lane.b32.xlu0 %v2128, 120
    %v2167 = vpop.permute.xlu0 %2166
    %2168 = vrot.lane.b32.xlu0 %v2129, 120
    %v2169 = vpop.permute.xlu0 %2168
    %2170 = vrot.lane.b32.xlu0 %v2130, 120
    %v2171 = vpop.permute.xlu0 %2170
    %2172 = vrot.lane.b32.xlu0 %v2131, 120
    %v2173 = vpop.permute.xlu0 %2172
    %2174 = vrot.lane.b32.xlu0 %v2132, 120
    %v2175 = vpop.permute.xlu0 %2174
    %2176 = vrot.lane.b32.xlu0 %v2133, 120
    %v2177 = vpop.permute.xlu0 %2176
    %2178 = vrot.lane.b32.xlu0 %v2134, 120
    %v2179 = vpop.permute.xlu0 %2178
    %2180 = vrot.lane.b32.xlu0 %v2135, 120
    %v2181 = vpop.permute.xlu0 %2180
    %2182 = vrot.lane.b32.xlu0 %v2136, 120
    %v2183 = vpop.permute.xlu0 %2182
    %2184 = vrot.lane.b32.xlu0 %v2137, 120
    %v2185 = vpop.permute.xlu0 %2184
    %v2202 = vsel %vm343, %v2155, 0.0
    %2203 = vadd.xlane.f32.xlu0 %v2202
    %v2204 = vpop.xlane.xlu0 %2203
    %v2205 = vsel %vm343, %v2157, 0.0
    %2206 = vadd.xlane.f32.xlu0 %v2205
    %v2207 = vpop.xlane.xlu0 %2206
    %v2208 = vsel %vm343, %v2159, 0.0
    %2209 = vadd.xlane.f32.xlu0 %v2208
    %v2210 = vpop.xlane.xlu0 %2209
    %v2211 = vsel %vm343, %v2161, 0.0
    %2212 = vadd.xlane.f32.xlu0 %v2211
    %v2213 = vpop.xlane.xlu0 %2212
    %v2214 = vsel %vm343, %v2163, 0.0
    %2215 = vadd.xlane.f32.xlu0 %v2214
    %v2216 = vpop.xlane.xlu0 %2215
    %v2217 = vsel %vm343, %v2165, 0.0
    %2218 = vadd.xlane.f32.xlu0 %v2217
    %v2219 = vpop.xlane.xlu0 %2218
    %v2220 = vsel %vm343, %v2167, 0.0
    %2221 = vadd.xlane.f32.xlu0 %v2220
    %v2222 = vpop.xlane.xlu0 %2221
    %v2223 = vsel %vm343, %v2169, 0.0
    %2224 = vadd.xlane.f32.xlu0 %v2223
    %v2225 = vpop.xlane.xlu0 %2224
    %v2226 = vsel %vm343, %v2171, 0.0
    %2227 = vadd.xlane.f32.xlu0 %v2226
    %v2228 = vpop.xlane.xlu0 %2227
    %v2229 = vsel %vm343, %v2173, 0.0
    %2230 = vadd.xlane.f32.xlu0 %v2229
    %v2231 = vpop.xlane.xlu0 %2230
    %v2232 = vsel %vm343, %v2175, 0.0
    %2233 = vadd.xlane.f32.xlu0 %v2232
    %v2234 = vpop.xlane.xlu0 %2233
    %v2235 = vsel %vm343, %v2177, 0.0
    %2236 = vadd.xlane.f32.xlu0 %v2235
    %v2237 = vpop.xlane.xlu0 %2236
    %v2238 = vsel %vm343, %v2179, 0.0
    %2239 = vadd.xlane.f32.xlu0 %v2238
    %v2240 = vpop.xlane.xlu0 %2239
    %v2241 = vsel %vm343, %v2181, 0.0
    %2242 = vadd.xlane.f32.xlu0 %v2241
    %v2243 = vpop.xlane.xlu0 %2242
    %v2244 = vsel %vm343, %v2183, 0.0
    %2245 = vadd.xlane.f32.xlu0 %v2244
    %v2246 = vpop.xlane.xlu0 %2245
    %v2247 = vsel %vm343, %v2185, 0.0
    %2248 = vadd.xlane.f32.xlu0 %v2247
    %v2249 = vpop.xlane.xlu0 %2248
    %v2250 = vadd.f32 %v2076, %v2204
    %v2251 = vadd.f32 %v2079, %v2207
    %v2252 = vadd.f32 %v2082, %v2210
    %v2253 = vadd.f32 %v2085, %v2213
    %v2254 = vadd.f32 %v2088, %v2216
    %v2255 = vadd.f32 %v2091, %v2219
    %v2256 = vadd.f32 %v2094, %v2222
    %v2257 = vadd.f32 %v2097, %v2225
    %v2258 = vadd.f32 %v2100, %v2228
    %v2259 = vadd.f32 %v2103, %v2231
    %v2260 = vadd.f32 %v2106, %v2234
    %v2261 = vadd.f32 %v2109, %v2237
    %v2262 = vadd.f32 %v2112, %v2240
    %v2263 = vadd.f32 %v2115, %v2243
    %v2264 = vadd.f32 %v2118, %v2246
    %v2265 = vadd.f32 %v2121, %v2249
    %s2266 = sld [smem:[#allocation2]]
    %s2267 = sadd.f32 %s2266, -14.703016
    %v2268 = vmul.f32 %v2250, 0.5
    %v2269 = vmul.f32 %v2251, 0.5
    %v2270 = vmul.f32 %v2252, 0.5
    %v2271 = vmul.f32 %v2253, 0.5
    %v2272 = vmul.f32 %v2254, 0.5
    %v2273 = vmul.f32 %v2255, 0.5
    %v2274 = vmul.f32 %v2256, 0.5
    %v2275 = vmul.f32 %v2257, 0.5
    %v2276 = vmul.f32 %v2258, 0.5
    %v2277 = vmul.f32 %v2259, 0.5
    %v2278 = vmul.f32 %v2260, 0.5
    %v2279 = vmul.f32 %v2261, 0.5
    %v2280 = vmul.f32 %v2262, 0.5
    %v2281 = vmul.f32 %v2263, 0.5
    %v2282 = vmul.f32 %v2264, 0.5
    %v2283 = vmul.f32 %v2265, 0.5
    %v2284 = vstv %s2267
    %v2285 = vsub.f32 %v2284, %v2268
    %v2286 = vsub.f32 %v2284, %v2269
    %v2287 = vsub.f32 %v2284, %v2270
    %v2288 = vsub.f32 %v2284, %v2271
    %v2289 = vsub.f32 %v2284, %v2272
    %v2290 = vsub.f32 %v2284, %v2273
    %v2291 = vsub.f32 %v2284, %v2274
    %v2292 = vsub.f32 %v2284, %v2275
    %v2293 = vsub.f32 %v2284, %v2276
    %v2294 = vsub.f32 %v2284, %v2277
    %v2295 = vsub.f32 %v2284, %v2278
    %v2296 = vsub.f32 %v2284, %v2279
    %v2297 = vsub.f32 %v2284, %v2280
    %v2298 = vsub.f32 %v2284, %v2281
    %v2299 = vsub.f32 %v2284, %v2282
    %v2300 = vsub.f32 %v2284, %v2283
    %v2301 = vadd.f32 %v2285, %v1955
    %v2302 = vadd.f32 %v2286, %v1956
    %v2303 = vadd.f32 %v2287, %v1957
    %v2304 = vadd.f32 %v2288, %v1958
    %v2305 = vadd.f32 %v2289, %v1959
    %v2306 = vadd.f32 %v2290, %v1960
    %v2307 = vadd.f32 %v2291, %v1961
    %v2308 = vadd.f32 %v2292, %v1962
    %v2309 = vadd.f32 %v2293, %v1963
    %v2310 = vadd.f32 %v2294, %v1964
    %v2311 = vadd.f32 %v2295, %v1965
    %v2312 = vadd.f32 %v2296, %v1966
    %v2313 = vadd.f32 %v2297, %v1967
    %v2314 = vadd.f32 %v2298, %v1968
    %v2315 = vadd.f32 %v2299, %v1969
    %v2316 = vadd.f32 %v2300, %v1970
    %v2317 = vlaneseq
    %v2318 = vshrl.u32 %v2317, 7
    %v2319 = vadd.s32 %v2318, 8
    %v2320 = vadd.s32 %v2318, 16
    %v2321 = vadd.s32 %v2318, 24
    %v2322 = vadd.s32 %v2318, 32
    %v2323 = vadd.s32 %v2318, 40
    %v2324 = vadd.s32 %v2318, 48
    %v2325 = vadd.s32 %v2318, 56
    %v2326 = vadd.s32 %v2318, 64
    %v2327 = vadd.s32 %v2318, 72
    %v2328 = vadd.s32 %v2318, 80
    %v2329 = vadd.s32 %v2318, 88
    %v2330 = vadd.s32 %v2318, 96
    %v2331 = vadd.s32 %v2318, 104
    %v2332 = vadd.s32 %v2318, 112
    %v2333 = vadd.s32 %v2318, 120
    %v2334 = vlaneseq
    %v2335 = vand.u32 %v2334, 127
    %vm2336 = vcmp.eq.s32.totalorder %v2318, %v2335
    %vm2337 = vcmp.eq.s32.totalorder %v2319, %v2335
    %vm2338 = vcmp.eq.s32.totalorder %v2320, %v2335
    %vm2339 = vcmp.eq.s32.totalorder %v2321, %v2335
    %vm2340 = vcmp.eq.s32.totalorder %v2322, %v2335
    %vm2341 = vcmp.eq.s32.totalorder %v2323, %v2335
    %vm2342 = vcmp.eq.s32.totalorder %v2324, %v2335
    %vm2343 = vcmp.eq.s32.totalorder %v2325, %v2335
    %vm2344 = vcmp.eq.s32.totalorder %v2326, %v2335
    %vm2345 = vcmp.eq.s32.totalorder %v2327, %v2335
    %vm2346 = vcmp.eq.s32.totalorder %v2328, %v2335
    %vm2347 = vcmp.eq.s32.totalorder %v2329, %v2335
    %vm2348 = vcmp.eq.s32.totalorder %v2330, %v2335
    %vm2349 = vcmp.eq.s32.totalorder %v2331, %v2335
    %vm2350 = vcmp.eq.s32.totalorder %v2332, %v2335
    %vm2351 = vcmp.eq.s32.totalorder %v2333, %v2335
    %v2352 = vsel %vm2336, %v2301, 0.0
    %v2353 = vsel %vm2337, %v2302, 0.0
    %v2354 = vsel %vm2338, %v2303, 0.0
    %v2355 = vsel %vm2339, %v2304, 0.0
    %v2356 = vsel %vm2340, %v2305, 0.0
    %v2357 = vsel %vm2341, %v2306, 0.0
    %v2358 = vsel %vm2342, %v2307, 0.0
    %v2359 = vsel %vm2343, %v2308, 0.0
    %v2360 = vsel %vm2344, %v2309, 0.0
    %v2361 = vsel %vm2345, %v2310, 0.0
    %v2362 = vsel %vm2346, %v2311, 0.0
    %v2363 = vsel %vm2347, %v2312, 0.0
    %v2364 = vsel %vm2348, %v2313, 0.0
    %v2365 = vsel %vm2349, %v2314, 0.0
    %v2366 = vsel %vm2350, %v2315, 0.0
    %v2367 = vsel %vm2351, %v2316, 0.0
    %v2368 = vadd.f32 %v2352, %v2353
    %v2369 = vadd.f32 %v2368, %v2354
    %v2370 = vadd.f32 %v2369, %v2355
    %v2371 = vadd.f32 %v2370, %v2356
    %v2372 = vadd.f32 %v2371, %v2357
    %v2373 = vadd.f32 %v2372, %v2358
    %v2374 = vadd.f32 %v2373, %v2359
    %v2375 = vadd.f32 %v2374, %v2360
    %v2376 = vadd.f32 %v2375, %v2361
    %v2377 = vadd.f32 %v2376, %v2362
    %v2378 = vadd.f32 %v2377, %v2363
    %v2379 = vadd.f32 %v2378, %v2364
    %v2380 = vadd.f32 %v2379, %v2365
    %v2381 = vadd.f32 %v2380, %v2366
    %v2382 = vadd.f32 %v2381, %v2367
    %v2383 = vrot.slane %v2382, 4
    %v2384 = vadd.f32 %v2382, %v2383
    %v2385 = vrot.slane %v2384, 2
    %v2386 = vadd.f32 %v2384, %v2385
    %v2387 = vrot.slane %v2386, 1
    %v2388 = vadd.f32 %v2386, %v2387
    %v2389 = vmul.f32 %v2388, 0.0625
    %2390 = vst [vmem:[#allocation3] sm:$0x1] %v2389
    // Predicated region
    $region86: #{tpu_custom_call.1} parent=1 // pred_check
      _
    $region87: #{tpu_custom_call.1} parent=1 // pred_check_branch
      %2392 = sbr.rel (0) target = $region89
    $region88: #{tpu_custom_call.1} parent=1 // pred_region
      %s2394 = ssub.s32 16, 16
      %2395 = vsyncadd [#allocation4], %s2394
      %s2397 = sshll.u32 [#allocation3], 4
      %s2398 = int_to_ptr.vmem [resolvable:$true] %s2397
      %2400 = dma.vmem_to_hbm [thread:$0]  %s2398, 16, %s21, [#allocation4]
    $region89: #{tpu_custom_call.1} parent=1 // pred_fallthru
      _
    // Predicated region
    $region90: #{tpu_custom_call.1} parent=1 // pred_check
      _
    $region91: #{tpu_custom_call.1} parent=1 // pred_check_branch
      %2402 = sbr.rel (0) target = $region93
    $region92: #{tpu_custom_call.1} parent=1 // pred_region
      %2403 = dma.done [#allocation4], 16
    $region93: #{tpu_custom_call.1} parent=1 // pred_fallthru
      _
    %2404 = vsyncpa [#allocation4], 1

</llo_original>
